<compile_context>
chip_gen: v7x
topology: tpu7x:2x2x1
jax: 0.10.0
libtpu: 0.0.40
codegen_flags: <defaults>
</compile_context>

<pallas_src>
import functools

import jax
import jax.numpy as jnp
from jax.experimental import pallas as pl
from jax.experimental.pallas import tpu as pltpu


# ------------------------------ constants ---------------------------------- #
HPAD = 128            # hidden channels padded to lane width
OPAD = 128            # output channels padded to lane width
FPAD = 128            # input feature channels padded to lane width
TQ = 256              # destination-node tile (rows of attention)
TK = 256              # source-node tile (cols of attention)
TR = 256              # row tile for the per-node (precompute / projection) kernels
NEG = -1e30           # softmax mask value (kept in f32 stats, bf16-safe not needed)
VMEM_LIMIT = 32 * 1024 * 1024   # explicit, well under 64 MiB (v7x) / 128 MiB (v5e/v6e)


def _round_up(x, m):
    return ((x + m - 1) // m) * m


def _pad2(a, rows, cols):
    r, c = a.shape
    return jnp.pad(a, ((0, rows - r), (0, cols - c)))


# ------------------------------- kernels ----------------------------------- #
def _proj_gat_precompute_kernel(x_ref, wp_ref, bp_ref, w_ref, att_ref,
                                hw_ref, a2_ref):
    # h = relu(x @ Wproj + bproj)   (input projection fused with layer-1 precompute)
    h = jnp.dot(x_ref[...].astype(jnp.bfloat16), wp_ref[...],
                preferred_element_type=jnp.float32) + bp_ref[...]
    h = jnp.maximum(h, 0.0)
    # hw = h @ W1 ; a2 = hw @ [att_src | att_dst]   (single fused (H,2) matmul)
    hw = jnp.dot(h.astype(jnp.bfloat16), w_ref[...],
                 preferred_element_type=jnp.float32)
    hw_ref[...] = hw.astype(jnp.bfloat16)
    a2_ref[...] = jnp.dot(hw.astype(jnp.bfloat16), att_ref[...],
                          preferred_element_type=jnp.float32)


def _gat_precompute_kernel(h_ref, w_ref, att_ref, hw_ref, a2_ref):
    hw = jnp.dot(h_ref[...].astype(jnp.bfloat16), w_ref[...],
                 preferred_element_type=jnp.float32)
    hw_ref[...] = hw.astype(jnp.bfloat16)
    a2_ref[...] = jnp.dot(hw.astype(jnp.bfloat16), att_ref[...],
                          preferred_element_type=jnp.float32)


def _gat_aggregate_kernel(adst_ref, asrc_ref, adj_ref, hw_ref, b_ref,
                          o_ref, m_sc, l_sc, acc_sc):
    k = pl.program_id(1)

    @pl.when(k == 0)
    def _init():
        m_sc[...] = jnp.full_like(m_sc, -jnp.inf)
        l_sc[...] = jnp.zeros_like(l_sc)
        acc_sc[...] = jnp.zeros_like(acc_sc)

    # e[i, j] = LeakyReLU(a_dst[i] + a_src[j]) over the (TQ, TK) tile
    e = adst_ref[...] + asrc_ref[...]
    e = jnp.where(e > 0, e, 0.2 * e)
    adj = adj_ref[...].astype(jnp.float32)
    e = jnp.where(adj > 0.0, e, NEG)

    # online (flash-style) masked softmax accumulation
    m_prev = m_sc[...]
    m_new = jnp.maximum(m_prev, jnp.max(e, axis=1, keepdims=True))
    scale = jnp.exp(m_prev - m_new)
    p = jnp.exp(e - m_new)                      # masked entries underflow to 0
    l_sc[...] = scale * l_sc[...] + jnp.sum(p, axis=1, keepdims=True)
    acc_sc[...] = scale * acc_sc[...] + jnp.dot(
        p.astype(jnp.bfloat16), hw_ref[...], preferred_element_type=jnp.float32)
    m_sc[...] = m_new

    @pl.when(k == pl.num_programs(1) - 1)
    def _final():
        inv = pl.reciprocal(l_sc[...], approx=True)   # deferred divide on the EUP
        o_ref[...] = jnp.maximum(acc_sc[...] * inv + b_ref[...], 0.0)


def _pool_head_kernel(onehot_ref, h_ref, counts_ref, wlin_ref, blin_ref,
                      out_ref, acc_sc):
    k = pl.program_id(0)

    @pl.when(k == 0)
    def _init():
        acc_sc[...] = jnp.zeros_like(acc_sc)

    acc_sc[...] += jnp.dot(onehot_ref[...], h_ref[...].astype(jnp.bfloat16),
                           preferred_element_type=jnp.float32)

    @pl.when(k == pl.num_programs(0) - 1)
    def _final():
        pooled = acc_sc[...] / counts_ref[...]        # global mean pool
        z = jnp.dot(pooled.astype(jnp.bfloat16), wlin_ref[...],
                    preferred_element_type=jnp.float32) + blin_ref[...]
        norm = jnp.sqrt(jnp.sum(z * z, axis=1, keepdims=True))
        out_ref[...] = z / jnp.maximum(norm, 1e-12)   # F.normalize(p=2, dim=1)


# --------------------------- pallas_call wrappers --------------------------- #
def _call_proj_precompute(x, wp, bp, w, att, n_pad):
    return pl.pallas_call(
        _proj_gat_precompute_kernel,
        out_shape=(jax.ShapeDtypeStruct((n_pad, HPAD), jnp.bfloat16),
                   jax.ShapeDtypeStruct((n_pad, 2), jnp.float32)),
        grid=(n_pad // TR,),
        in_specs=[
            pl.BlockSpec((TR, FPAD), lambda i: (i, 0)),
            pl.BlockSpec((FPAD, HPAD), lambda i: (0, 0)),
            pl.BlockSpec((1, HPAD), lambda i: (0, 0)),
            pl.BlockSpec((HPAD, HPAD), lambda i: (0, 0)),
            pl.BlockSpec((HPAD, 2), lambda i: (0, 0)),
        ],
        out_specs=(pl.BlockSpec((TR, HPAD), lambda i: (i, 0)),
                   pl.BlockSpec((TR, 2), lambda i: (i, 0))),
        compiler_params=pltpu.CompilerParams(
            dimension_semantics=("parallel",), vmem_limit_bytes=VMEM_LIMIT),
    )(x, wp, bp, w, att)


def _call_gat_precompute(h, w, att, n_pad):
    return pl.pallas_call(
        _gat_precompute_kernel,
        out_shape=(jax.ShapeDtypeStruct((n_pad, HPAD), jnp.bfloat16),
                   jax.ShapeDtypeStruct((n_pad, 2), jnp.float32)),
        grid=(n_pad // TR,),
        in_specs=[
            pl.BlockSpec((TR, HPAD), lambda i: (i, 0)),
            pl.BlockSpec((HPAD, HPAD), lambda i: (0, 0)),
            pl.BlockSpec((HPAD, 2), lambda i: (0, 0)),
        ],
        out_specs=(pl.BlockSpec((TR, HPAD), lambda i: (i, 0)),
                   pl.BlockSpec((TR, 2), lambda i: (i, 0))),
        compiler_params=pltpu.CompilerParams(
            dimension_semantics=("parallel",), vmem_limit_bytes=VMEM_LIMIT),
    )(h, w, att)


def _call_gat_aggregate(a2, adj, hw, bias, n_pad):
    a_dst = a2[:, 1:2]              # (N, 1)  - dst-tile column
    a_src_row = a2[:, 0][None, :]   # (1, N)  - transposed once, outside the kernel
    gi, gk = n_pad // TQ, n_pad // TK
    cost = pl.CostEstimate(
        flops=2 * n_pad * n_pad * HPAD + 10 * n_pad * n_pad,
        transcendentals=n_pad * n_pad,
        bytes_accessed=n_pad * n_pad                    # int8 adjacency
                       + gi * n_pad * HPAD * 2          # hw streamed per dst tile
                       + n_pad * HPAD * 4)              # f32 output
    return pl.pallas_call(
        _gat_aggregate_kernel,
        out_shape=jax.ShapeDtypeStruct((n_pad, HPAD), jnp.float32),
        grid=(gi, gk),
        in_specs=[
            pl.BlockSpec((TQ, 1), lambda i, k: (i, 0)),     # a_dst
            pl.BlockSpec((1, TK), lambda i, k: (0, k)),     # a_src (row)
            pl.BlockSpec((TQ, TK), lambda i, k: (i, k)),    # adjacency (int8)
            pl.BlockSpec((TK, HPAD), lambda i, k: (k, 0)),  # source messages (bf16)
            pl.BlockSpec((1, HPAD), lambda i, k: (0, 0)),   # bias
        ],
        out_specs=pl.BlockSpec((TQ, HPAD), lambda i, k: (i, 0)),
        scratch_shapes=[
            pltpu.VMEM((TQ, 1), jnp.float32),   # running max
            pltpu.VMEM((TQ, 1), jnp.float32),   # running denom
            pltpu.VMEM((TQ, HPAD), jnp.float32),
        ],
        compiler_params=pltpu.CompilerParams(
            dimension_semantics=("parallel", "arbitrary"),
            vmem_limit_bytes=VMEM_LIMIT),
        cost_estimate=cost,
    )(a_dst, a_src_row, adj, hw, bias)


def _call_pool_head(onehot, h, counts, wlin, blin, n_pad, num_graphs):
    return pl.pallas_call(
        _pool_head_kernel,
        out_shape=jax.ShapeDtypeStruct((num_graphs, OPAD), jnp.float32),
        grid=(n_pad // TK,),
        in_specs=[
            pl.BlockSpec((num_graphs, TK), lambda k: (0, k)),
            pl.BlockSpec((TK, HPAD), lambda k: (k, 0)),
            pl.BlockSpec((num_graphs, 1), lambda k: (0, 0)),
            pl.BlockSpec((HPAD, OPAD), lambda k: (0, 0)),
            pl.BlockSpec((1, OPAD), lambda k: (0, 0)),
        ],
        out_specs=pl.BlockSpec((num_graphs, OPAD), lambda k: (0, 0)),
        scratch_shapes=[pltpu.VMEM((num_graphs, HPAD), jnp.float32)],
        compiler_params=pltpu.CompilerParams(
            dimension_semantics=("arbitrary",), vmem_limit_bytes=VMEM_LIMIT),
    )(onehot, h, counts, wlin, blin)


# ------------------------------ forward pass -------------------------------- #
@functools.partial(jax.jit, static_argnames=("out_channels",))
def gnn_encoder_forward(x_pad, adj, onehot, counts, params, *, out_channels):
    n_pad = x_pad.shape[0]
    hw1, a21 = _call_proj_precompute(x_pad, params["wp"], params["bp"],
                                     params["w1"], params["att1"], n_pad)
    h1 = _call_gat_aggregate(a21, adj, hw1, params["b1"], n_pad)
    hw2, a22 = _call_gat_precompute(h1, params["w2"], params["att2"], n_pad)
    h2 = _call_gat_aggregate(a22, adj, hw2, params["b2"], n_pad)
    out = _call_pool_head(onehot, h2, counts, params["wlin"], params["blin"],
                          n_pad, onehot.shape[0])
    return out[:, :out_channels]


# --------------------------- host-side preparation -------------------------- #
def build_graph_operands(edge_index, batch, num_nodes, num_graphs, n_pad):
    """Dense int8 adjacency (with self loops) + mean-pool operands. Built once,
    shared by the anchor and pattern encoder calls."""
    src, dst = edge_index[0], edge_index[1]
    adj = jnp.zeros((n_pad, n_pad), jnp.int8).at[dst, src].set(1)
    diag = jnp.arange(n_pad)
    adj = adj.at[diag, diag].set(1)          # self loops (also keep padded rows sane)

    batch_pad = jnp.full((n_pad,), num_graphs, jnp.int32).at[:num_nodes].set(batch)
    onehot_f = (batch_pad[None, :] == jnp.arange(num_graphs)[:, None]).astype(jnp.float32)
    counts = jnp.maximum(jnp.sum(onehot_f, axis=1, keepdims=True), 1.0)
    return adj, onehot_f.astype(jnp.bfloat16), counts


def pad_features(x, n_pad):
    n, f = x.shape
    return jnp.pad(x, ((0, n_pad - n), (0, FPAD - f)))


def prepare_params(raw):
    """Zero-pad to lane-dense shapes, cast matmul weights to bf16, fuse att_src/att_dst."""
    att1 = jnp.concatenate([raw["asrc1"], raw["adst1"]], axis=1)
    att2 = jnp.concatenate([raw["asrc2"], raw["adst2"]], axis=1)
    return {
        "wp":   _pad2(raw["wproj"], FPAD, HPAD).astype(jnp.bfloat16),
        "bp":   _pad2(raw["bproj"], 1, HPAD),
        "w1":   _pad2(raw["w1"], HPAD, HPAD).astype(jnp.bfloat16),
        "att1": _pad2(att1, HPAD, 2).astype(jnp.bfloat16),
        "b1":   _pad2(raw["b1"], 1, HPAD),
        "w2":   _pad2(raw["w2"], HPAD, HPAD).astype(jnp.bfloat16),
        "att2": _pad2(att2, HPAD, 2).astype(jnp.bfloat16),
        "b2":   _pad2(raw["b2"], 1, HPAD),
        "wlin": _pad2(raw["wlin"], HPAD, OPAD).astype(jnp.bfloat16),
        "blin": _pad2(raw["blin"], 1, OPAD),
    }


def init_params(key, in_channels, hidden, out_channels):
    """Deterministic synthetic parameters (shapes match the torch module)."""
    ks = jax.random.split(key, 12)
    s = 0.1
    return {
        "wproj": s * jax.random.normal(ks[0], (in_channels, hidden), jnp.float32),
        "bproj": s * jax.random.normal(ks[1], (1, hidden), jnp.float32),
        "w1":    s * jax.random.normal(ks[2], (hidden, hidden), jnp.float32),
        "asrc1": s * jax.random.normal(ks[3], (hidden, 1), jnp.float32),
        "adst1": s * jax.random.normal(ks[4], (hidden, 1), jnp.float32),
        "b1":    s * jax.random.normal(ks[5], (1, hidden), jnp.float32),
        "w2":    s * jax.random.normal(ks[6], (hidden, hidden), jnp.float32),
        "asrc2": s * jax.random.normal(ks[7], (hidden, 1), jnp.float32),
        "adst2": s * jax.random.normal(ks[8], (hidden, 1), jnp.float32),
        "b2":    s * jax.random.normal(ks[9], (1, hidden), jnp.float32),
        "wlin":  s * jax.random.normal(ks[10], (hidden, out_channels), jnp.float32),
        "blin":  s * jax.random.normal(ks[11], (1, out_channels), jnp.float32),
    }


if __name__ == "__main__":
    key = jax.random.PRNGKey(0)

    # small, module-consistent shapes
    N = 16                    # total nodes (2 graphs x 8 nodes)
    ANCHOR_IN = 4
    PATTERN_IN = 6
    HIDDEN = 32
    OUT = 8
    NUM_GRAPHS = 2

    k_xa, k_xp, k_pa, k_pp = jax.random.split(key, 4)

    x_anchor = jax.random.normal(k_xa, (N, ANCHOR_IN), jnp.float32)
    x_pattern = jax.random.normal(k_xp, (N, PATTERN_IN), jnp.float32)

    # simple deterministic graph: ring within each 8-node graph (both directions)
    src_list, dst_list = [], []
    for g in range(NUM_GRAPHS):
        base = g * 8
        for i in range(8):
            j = (i + 1) % 8
            src_list += [base + i, base + j]
            dst_list += [base + j, base + i]
    edge_index = jnp.array([src_list, dst_list], dtype=jnp.int32)
    batch = jnp.array([0] * 8 + [1] * 8, dtype=jnp.int32)

    # siamese encoder: shared GNN trunk, separate input projections
    anchor_raw = init_params(k_pa, ANCHOR_IN, HIDDEN, OUT)
    pattern_raw = init_params(k_pp, PATTERN_IN, HIDDEN, OUT)
    for name in ("w1", "asrc1", "adst1", "b1", "w2", "asrc2", "adst2", "b2",
                 "wlin", "blin"):
        pattern_raw[name] = anchor_raw[name]

    anchor_params = prepare_params(anchor_raw)
    pattern_params = prepare_params(pattern_raw)

    # graph operands built once and reused by both encoder calls
    n_pad = _round_up(N, max(TQ, TK))
    adj, onehot, counts = build_graph_operands(edge_index, batch, N, NUM_GRAPHS, n_pad)

    xa_pad = pad_features(x_anchor, n_pad)
    xp_pad = pad_features(x_pattern, n_pad)

    emb_anchor = gnn_encoder_forward(xa_pad, adj, onehot, counts, anchor_params,
                                     out_channels=OUT)
    emb_pattern = gnn_encoder_forward(xp_pad, adj, onehot, counts, pattern_params,
                                      out_channels=OUT)

    jax.block_until_ready(emb_anchor)
    jax.block_until_ready(emb_pattern)

    assert emb_anchor.shape == (NUM_GRAPHS, OUT)
    assert emb_pattern.shape == (NUM_GRAPHS, OUT)
    # embeddings are L2-normalized
    assert bool(jnp.allclose(jnp.linalg.norm(emb_anchor, axis=1), 1.0, atol=1e-4))
    assert bool(jnp.allclose(jnp.linalg.norm(emb_pattern, axis=1), 1.0, atol=1e-4))

    print("KERNEL_OK")
</pallas_src>

<mosaic_0001>
module attributes {stable_mosaic.version = 11 : i64} {
  func.func @_proj_gat_precompute_kernel(%arg0: i32, %arg1: memref<256x128xf32, #tpu.memory_space<vmem>>, %arg2: memref<128x128xbf16, #tpu.memory_space<vmem>>, %arg3: memref<1x128xf32, #tpu.memory_space<vmem>>, %arg4: memref<128x128xbf16, #tpu.memory_space<vmem>>, %arg5: memref<128x2xbf16, #tpu.memory_space<vmem>>, %arg6: memref<256x128xbf16, #tpu.memory_space<vmem>>, %arg7: memref<256x2xf32, #tpu.memory_space<vmem>>) attributes {dimension_semantics = [#tpu.dimension_semantics<parallel>], iteration_bounds = array<i64: 1>, scalar_prefetch = 0 : i64, scratch_operands = 0 : i64, tpu.core_type = #tpu.core_type<tc>, window_params = [{transform_indices = @transform_0, window_bounds = array<i64: 256, 128>}, {pipeline_mode = #tpu.pipeline_mode<synchronous>, transform_indices = @transform_1, window_bounds = array<i64: 128, 128>}, {pipeline_mode = #tpu.pipeline_mode<synchronous>, transform_indices = @transform_2, window_bounds = array<i64: 1, 128>}, {pipeline_mode = #tpu.pipeline_mode<synchronous>, transform_indices = @transform_3, window_bounds = array<i64: 128, 128>}, {pipeline_mode = #tpu.pipeline_mode<synchronous>, transform_indices = @transform_4, window_bounds = array<i64: 128, 2>}, {transform_indices = @transform_5, window_bounds = array<i64: 256, 128>}, {transform_indices = @transform_6, window_bounds = array<i64: 256, 2>}]} {
    %c0 = arith.constant 0 : index
    %c0_0 = arith.constant 0 : index
    %0 = vector.load %arg1[%c0, %c0_0] : memref<256x128xf32, #tpu.memory_space<vmem>>, vector<256x128xf32>
    %1 = arith.truncf %0 : vector<256x128xf32> to vector<256x128xbf16>
    %c0_1 = arith.constant 0 : index
    %c0_2 = arith.constant 0 : index
    %2 = vector.load %arg2[%c0_1, %c0_2] : memref<128x128xbf16, #tpu.memory_space<vmem>>, vector<128x128xbf16>
    %cst = arith.constant dense<0.000000e+00> : vector<256x128xf32>
    %3 = tpu.matmul %1, %2, %cst {dimension_numbers = #tpu.dot_dimension_numbers<[1], [0], [0], [1], [0, 0, 1, 1], [], []>} : vector<256x128xbf16>, vector<128x128xbf16>, vector<256x128xf32> -> vector<256x128xf32>
    %c0_3 = arith.constant 0 : index
    %c0_4 = arith.constant 0 : index
    %4 = vector.load %arg3[%c0_3, %c0_4] : memref<1x128xf32, #tpu.memory_space<vmem>>, vector<1x128xf32>
    %5 = vector.broadcast %4 : vector<1x128xf32> to vector<256x128xf32>
    %6 = arith.addf %3, %5 : vector<256x128xf32>
    %cst_5 = arith.constant 0.000000e+00 : f32
    %7 = vector.broadcast %cst_5 : f32 to vector<256x128xf32>
    %8 = arith.maximumf %6, %7 : vector<256x128xf32>
    %9 = arith.truncf %8 : vector<256x128xf32> to vector<256x128xbf16>
    %c0_6 = arith.constant 0 : index
    %c0_7 = arith.constant 0 : index
    %10 = vector.load %arg4[%c0_6, %c0_7] : memref<128x128xbf16, #tpu.memory_space<vmem>>, vector<128x128xbf16>
    %cst_8 = arith.constant dense<0.000000e+00> : vector<256x128xf32>
    %11 = tpu.matmul %9, %10, %cst_8 {dimension_numbers = #tpu.dot_dimension_numbers<[1], [0], [0], [1], [0, 0, 1, 1], [], []>} : vector<256x128xbf16>, vector<128x128xbf16>, vector<256x128xf32> -> vector<256x128xf32>
    %12 = arith.truncf %11 : vector<256x128xf32> to vector<256x128xbf16>
    %c0_9 = arith.constant 0 : index
    %c0_10 = arith.constant 0 : index
    %13 = vector.load %arg6[%c0_9, %c0_10] : memref<256x128xbf16, #tpu.memory_space<vmem>>, vector<256x128xbf16>
    tpu.vector_store %arg6[%c0_9, %c0_10], %12 {strides = array<i32>} : memref<256x128xbf16, #tpu.memory_space<vmem>>, vector<256x128xbf16>,
    %14 = arith.truncf %11 : vector<256x128xf32> to vector<256x128xbf16>
    %c0_11 = arith.constant 0 : index
    %c0_12 = arith.constant 0 : index
    %15 = vector.load %arg5[%c0_11, %c0_12] : memref<128x2xbf16, #tpu.memory_space<vmem>>, vector<128x2xbf16>
    %cst_13 = arith.constant dense<0.000000e+00> : vector<256x2xf32>
    %16 = tpu.matmul %14, %15, %cst_13 {dimension_numbers = #tpu.dot_dimension_numbers<[1], [0], [0], [1], [0, 0, 1, 1], [], []>} : vector<256x128xbf16>, vector<128x2xbf16>, vector<256x2xf32> -> vector<256x2xf32>
    %c0_14 = arith.constant 0 : index
    %c0_15 = arith.constant 0 : index
    %17 = vector.load %arg7[%c0_14, %c0_15] : memref<256x2xf32, #tpu.memory_space<vmem>>, vector<256x2xf32>
    tpu.vector_store %arg7[%c0_14, %c0_15], %16 {strides = array<i32>} : memref<256x2xf32, #tpu.memory_space<vmem>>, vector<256x2xf32>,
    return
  }
  func.func @transform_0(%arg0: i32) -> (i32, i32) {
    %c0_i32 = arith.constant 0 : i32
    %c0_i32_0 = arith.constant 0 : i32
    return %arg0, %c0_i32 : i32, i32
  }
  func.func @transform_1(%arg0: i32) -> (i32, i32) {
    %c0_i32 = arith.constant 0 : i32
    %c0_i32_0 = arith.constant 0 : i32
    %c0_i32_1 = arith.constant 0 : i32
    return %c0_i32, %c0_i32_0 : i32, i32
  }
  func.func @transform_2(%arg0: i32) -> (i32, i32) {
    %c0_i32 = arith.constant 0 : i32
    %c0_i32_0 = arith.constant 0 : i32
    %c0_i32_1 = arith.constant 0 : i32
    return %c0_i32, %c0_i32_0 : i32, i32
  }
  func.func @transform_3(%arg0: i32) -> (i32, i32) {
    %c0_i32 = arith.constant 0 : i32
    %c0_i32_0 = arith.constant 0 : i32
    %c0_i32_1 = arith.constant 0 : i32
    return %c0_i32, %c0_i32_0 : i32, i32
  }
  func.func @transform_4(%arg0: i32) -> (i32, i32) {
    %c0_i32 = arith.constant 0 : i32
    %c0_i32_0 = arith.constant 0 : i32
    %c0_i32_1 = arith.constant 0 : i32
    return %c0_i32, %c0_i32_0 : i32, i32
  }
  func.func @transform_5(%arg0: i32) -> (i32, i32) {
    %c0_i32 = arith.constant 0 : i32
    %c0_i32_0 = arith.constant 0 : i32
    return %arg0, %c0_i32 : i32, i32
  }
  func.func @transform_6(%arg0: i32) -> (i32, i32) {
    %c0_i32 = arith.constant 0 : i32
    %c0_i32_0 = arith.constant 0 : i32
    return %arg0, %c0_i32 : i32, i32
  }
}

module attributes {stable_mosaic.version = 11 : i64} {
  func.func @_gat_aggregate_kernel(%arg0: i32, %arg1: i32, %arg2: memref<256x1xf32, #tpu.memory_space<vmem>>, %arg3: memref<1x256xf32, #tpu.memory_space<vmem>>, %arg4: memref<256x256xi8, #tpu.memory_space<vmem>>, %arg5: memref<256x128xbf16, #tpu.memory_space<vmem>>, %arg6: memref<1x128xf32, #tpu.memory_space<vmem>>, %arg7: memref<256x128xf32, #tpu.memory_space<vmem>>, %arg8: memref<256x1xf32, #tpu.memory_space<vmem>>, %arg9: memref<256x1xf32, #tpu.memory_space<vmem>>, %arg10: memref<256x128xf32, #tpu.memory_space<vmem>>) attributes {dimension_semantics = [#tpu.dimension_semantics<parallel>, #tpu.dimension_semantics<arbitrary>], iteration_bounds = array<i64: 1, 1>, scalar_prefetch = 0 : i64, scratch_operands = 3 : i64, tpu.core_type = #tpu.core_type<tc>, window_params = [{transform_indices = @transform_0, window_bounds = array<i64: 256, 1>}, {transform_indices = @transform_1, window_bounds = array<i64: 1, 256>}, {transform_indices = @transform_2, window_bounds = array<i64: 256, 256>}, {transform_indices = @transform_3, window_bounds = array<i64: 256, 128>}, {pipeline_mode = #tpu.pipeline_mode<synchronous>, transform_indices = @transform_4, window_bounds = array<i64: 1, 128>}, {transform_indices = @transform_5, window_bounds = array<i64: 256, 128>}]} {
    %c0_i32 = arith.constant 0 : i32
    %0 = arith.cmpi eq, %arg1, %c0_i32 : i32
    %1 = arith.extui %0 : i1 to i32
    %c0_i32_0 = arith.constant 0 : i32
    %2 = arith.cmpi ne, %1, %c0_i32_0 : i32
    scf.if %2 {
      %cst_28 = arith.constant 0xFF800000 : f32
      %46 = vector.broadcast %cst_28 : f32 to vector<256x1xf32>
      %c0_29 = arith.constant 0 : index
      %c0_30 = arith.constant 0 : index
      %47 = vector.load %arg8[%c0_29, %c0_30] : memref<256x1xf32, #tpu.memory_space<vmem>>, vector<256x1xf32>
      tpu.vector_store %arg8[%c0_29, %c0_30], %46 {strides = array<i32>} : memref<256x1xf32, #tpu.memory_space<vmem>>, vector<256x1xf32>,
      %cst_31 = arith.constant 0.000000e+00 : f32
      %48 = vector.broadcast %cst_31 : f32 to vector<256x1xf32>
      %c0_32 = arith.constant 0 : index
      %c0_33 = arith.constant 0 : index
      %49 = vector.load %arg9[%c0_32, %c0_33] : memref<256x1xf32, #tpu.memory_space<vmem>>, vector<256x1xf32>
      tpu.vector_store %arg9[%c0_32, %c0_33], %48 {strides = array<i32>} : memref<256x1xf32, #tpu.memory_space<vmem>>, vector<256x1xf32>,
      %cst_34 = arith.constant 0.000000e+00 : f32
      %50 = vector.broadcast %cst_34 : f32 to vector<256x128xf32>
      %c0_35 = arith.constant 0 : index
      %c0_36 = arith.constant 0 : index
      %51 = vector.load %arg10[%c0_35, %c0_36] : memref<256x128xf32, #tpu.memory_space<vmem>>, vector<256x128xf32>
      tpu.vector_store %arg10[%c0_35, %c0_36], %50 {strides = array<i32>} : memref<256x128xf32, #tpu.memory_space<vmem>>, vector<256x128xf32>,
    } else {
    }
    %c0 = arith.constant 0 : index
    %c0_1 = arith.constant 0 : index
    %3 = vector.load %arg2[%c0, %c0_1] : memref<256x1xf32, #tpu.memory_space<vmem>>, vector<256x1xf32>
    %c0_2 = arith.constant 0 : index
    %c0_3 = arith.constant 0 : index
    %4 = vector.load %arg3[%c0_2, %c0_3] : memref<1x256xf32, #tpu.memory_space<vmem>>, vector<1x256xf32>
    %5 = vector.broadcast %3 : vector<256x1xf32> to vector<256x256xf32>
    %6 = vector.broadcast %4 : vector<1x256xf32> to vector<256x256xf32>
    %7 = arith.addf %5, %6 : vector<256x256xf32>
    %cst = arith.constant 0.000000e+00 : f32
    %8 = vector.broadcast %cst : f32 to vector<256x256xf32>
    %9 = arith.cmpf ogt, %7, %8 : vector<256x256xf32>
    %cst_4 = arith.constant 2.000000e-01 : f32
    %10 = vector.broadcast %cst_4 : f32 to vector<256x256xf32>
    %11 = arith.mulf %10, %7 : vector<256x256xf32>
    %12 = arith.select %9, %7, %11 : vector<256x256xi1>, vector<256x256xf32>
    %c0_5 = arith.constant 0 : index
    %c0_6 = arith.constant 0 : index
    %13 = vector.load %arg4[%c0_5, %c0_6] : memref<256x256xi8, #tpu.memory_space<vmem>>, vector<256x256xi8>
    %14 = arith.sitofp %13 : vector<256x256xi8> to vector<256x256xf32>
    %cst_7 = arith.constant 0.000000e+00 : f32
    %15 = vector.broadcast %cst_7 : f32 to vector<256x256xf32>
    %16 = arith.cmpf ogt, %14, %15 : vector<256x256xf32>
    %cst_8 = arith.constant -1.000000e+30 : f32
    %17 = vector.broadcast %cst_8 : f32 to vector<256x256xf32>
    %18 = arith.select %16, %12, %17 : vector<256x256xi1>, vector<256x256xf32>
    %c0_9 = arith.constant 0 : index
    %c0_10 = arith.constant 0 : index
    %19 = vector.load %arg8[%c0_9, %c0_10] : memref<256x1xf32, #tpu.memory_space<vmem>>, vector<256x1xf32>
    %cst_11 = arith.constant dense<0xFF800000> : vector<256xf32>
    %20 = vector.multi_reduction <maximumf>, %18, %cst_11 [1] : vector<256x256xf32> to vector<256xf32>
    %21 = vector.shape_cast %20 : vector<256xf32> to vector<256x1xf32>
    %22 = arith.maximumf %19, %21 : vector<256x1xf32>
    %23 = arith.subf %19, %22 : vector<256x1xf32>
    %24 = math.exp %23 : vector<256x1xf32>
    %25 = vector.broadcast %22 : vector<256x1xf32> to vector<256x256xf32>
    %26 = arith.subf %18, %25 : vector<256x256xf32>
    %27 = math.exp %26 : vector<256x256xf32>
    %c0_12 = arith.constant 0 : index
    %c0_13 = arith.constant 0 : index
    %28 = vector.load %arg9[%c0_12, %c0_13] : memref<256x1xf32, #tpu.memory_space<vmem>>, vector<256x1xf32>
    %29 = arith.mulf %24, %28 : vector<256x1xf32>
    %cst_14 = arith.constant dense<0.000000e+00> : vector<256xf32>
    %30 = vector.multi_reduction <add>, %27, %cst_14 [1] : vector<256x256xf32> to vector<256xf32>
    %31 = vector.shape_cast %30 : vector<256xf32> to vector<256x1xf32>
    %32 = arith.addf %29, %31 : vector<256x1xf32>
    %c0_15 = arith.constant 0 : index
    %c0_16 = arith.constant 0 : index
    %33 = vector.load %arg9[%c0_15, %c0_16] : memref<256x1xf32, #tpu.memory_space<vmem>>, vector<256x1xf32>
    tpu.vector_store %arg9[%c0_15, %c0_16], %32 {strides = array<i32>} : memref<256x1xf32, #tpu.memory_space<vmem>>, vector<256x1xf32>,
    %c0_17 = arith.constant 0 : index
    %c0_18 = arith.constant 0 : index
    %34 = vector.load %arg10[%c0_17, %c0_18] : memref<256x128xf32, #tpu.memory_space<vmem>>, vector<256x128xf32>
    %35 = vector.broadcast %24 : vector<256x1xf32> to vector<256x128xf32>
    %36 = arith.mulf %35, %34 : vector<256x128xf32>
    %37 = arith.truncf %27 : vector<256x256xf32> to vector<256x256xbf16>
    %c0_19 = arith.constant 0 : index
    %c0_20 = arith.constant 0 : index
    %38 = vector.load %arg5[%c0_19, %c0_20] : memref<256x128xbf16, #tpu.memory_space<vmem>>, vector<256x128xbf16>
    %cst_21 = arith.constant dense<0.000000e+00> : vector<256x128xf32>
    %39 = tpu.matmul %37, %38, %cst_21 {dimension_numbers = #tpu.dot_dimension_numbers<[1], [0], [0], [1], [0, 0, 1, 1], [], []>} : vector<256x256xbf16>, vector<256x128xbf16>, vector<256x128xf32> -> vector<256x128xf32>
    %40 = arith.addf %36, %39 : vector<256x128xf32>
    %c0_22 = arith.constant 0 : index
    %c0_23 = arith.constant 0 : index
    %41 = vector.load %arg10[%c0_22, %c0_23] : memref<256x128xf32, #tpu.memory_space<vmem>>, vector<256x128xf32>
    tpu.vector_store %arg10[%c0_22, %c0_23], %40 {strides = array<i32>} : memref<256x128xf32, #tpu.memory_space<vmem>>, vector<256x128xf32>,
    %c0_24 = arith.constant 0 : index
    %c0_25 = arith.constant 0 : index
    %42 = vector.load %arg8[%c0_24, %c0_25] : memref<256x1xf32, #tpu.memory_space<vmem>>, vector<256x1xf32>
    tpu.vector_store %arg8[%c0_24, %c0_25], %22 {strides = array<i32>} : memref<256x1xf32, #tpu.memory_space<vmem>>, vector<256x1xf32>,
    %c0_i32_26 = arith.constant 0 : i32
    %43 = arith.cmpi eq, %arg1, %c0_i32_26 : i32
    %44 = arith.extui %43 : i1 to i32
    %c0_i32_27 = arith.constant 0 : i32
    %45 = arith.cmpi ne, %44, %c0_i32_27 : i32
    scf.if %45 {
      %c0_28 = arith.constant 0 : index
      %c0_29 = arith.constant 0 : index
      %46 = vector.load %arg9[%c0_28, %c0_29] : memref<256x1xf32, #tpu.memory_space<vmem>>, vector<256x1xf32>
      %47 = tpu.reciprocal %46 {approx = true} : vector<256x1xf32> -> vector<256x1xf32>
      %c0_30 = arith.constant 0 : index
      %c0_31 = arith.constant 0 : index
      %48 = vector.load %arg10[%c0_30, %c0_31] : memref<256x128xf32, #tpu.memory_space<vmem>>, vector<256x128xf32>
      %49 = vector.broadcast %47 : vector<256x1xf32> to vector<256x128xf32>
      %50 = arith.mulf %48, %49 : vector<256x128xf32>
      %c0_32 = arith.constant 0 : index
      %c0_33 = arith.constant 0 : index
      %51 = vector.load %arg6[%c0_32, %c0_33] : memref<1x128xf32, #tpu.memory_space<vmem>>, vector<1x128xf32>
      %52 = vector.broadcast %51 : vector<1x128xf32> to vector<256x128xf32>
      %53 = arith.addf %50, %52 : vector<256x128xf32>
      %cst_34 = arith.constant 0.000000e+00 : f32
      %54 = vector.broadcast %cst_34 : f32 to vector<256x128xf32>
      %55 = arith.maximumf %53, %54 : vector<256x128xf32>
      %c0_35 = arith.constant 0 : index
      %c0_36 = arith.constant 0 : index
      %56 = vector.load %arg7[%c0_35, %c0_36] : memref<256x128xf32, #tpu.memory_space<vmem>>, vector<256x128xf32>
      tpu.vector_store %arg7[%c0_35, %c0_36], %55 {strides = array<i32>} : memref<256x128xf32, #tpu.memory_space<vmem>>, vector<256x128xf32>,
    } else {
    }
    return
  }
  func.func @transform_0(%arg0: i32, %arg1: i32) -> (i32, i32) {
    %c0_i32 = arith.constant 0 : i32
    %c0_i32_0 = arith.constant 0 : i32
    return %arg0, %c0_i32 : i32, i32
  }
  func.func @transform_1(%arg0: i32, %arg1: i32) -> (i32, i32) {
    %c0_i32 = arith.constant 0 : i32
    %c0_i32_0 = arith.constant 0 : i32
    return %c0_i32, %arg1 : i32, i32
  }
  func.func @transform_2(%arg0: i32, %arg1: i32) -> (i32, i32) {
    %c0_i32 = arith.constant 0 : i32
    return %arg0, %arg1 : i32, i32
  }
  func.func @transform_3(%arg0: i32, %arg1: i32) -> (i32, i32) {
    %c0_i32 = arith.constant 0 : i32
    %c0_i32_0 = arith.constant 0 : i32
    return %arg1, %c0_i32 : i32, i32
  }
  func.func @transform_4(%arg0: i32, %arg1: i32) -> (i32, i32) {
    %c0_i32 = arith.constant 0 : i32
    %c0_i32_0 = arith.constant 0 : i32
    %c0_i32_1 = arith.constant 0 : i32
    return %c0_i32, %c0_i32_0 : i32, i32
  }
  func.func @transform_5(%arg0: i32, %arg1: i32) -> (i32, i32) {
    %c0_i32 = arith.constant 0 : i32
    %c0_i32_0 = arith.constant 0 : i32
    return %arg0, %c0_i32 : i32, i32
  }
}

module attributes {stable_mosaic.version = 11 : i64} {
  func.func @_gat_precompute_kernel(%arg0: i32, %arg1: memref<256x128xf32, #tpu.memory_space<vmem>>, %arg2: memref<128x128xbf16, #tpu.memory_space<vmem>>, %arg3: memref<128x2xbf16, #tpu.memory_space<vmem>>, %arg4: memref<256x128xbf16, #tpu.memory_space<vmem>>, %arg5: memref<256x2xf32, #tpu.memory_space<vmem>>) attributes {dimension_semantics = [#tpu.dimension_semantics<parallel>], iteration_bounds = array<i64: 1>, scalar_prefetch = 0 : i64, scratch_operands = 0 : i64, tpu.core_type = #tpu.core_type<tc>, window_params = [{transform_indices = @transform_0, window_bounds = array<i64: 256, 128>}, {pipeline_mode = #tpu.pipeline_mode<synchronous>, transform_indices = @transform_1, window_bounds = array<i64: 128, 128>}, {pipeline_mode = #tpu.pipeline_mode<synchronous>, transform_indices = @transform_2, window_bounds = array<i64: 128, 2>}, {transform_indices = @transform_3, window_bounds = array<i64: 256, 128>}, {transform_indices = @transform_4, window_bounds = array<i64: 256, 2>}]} {
    %c0 = arith.constant 0 : index
    %c0_0 = arith.constant 0 : index
    %0 = vector.load %arg1[%c0, %c0_0] : memref<256x128xf32, #tpu.memory_space<vmem>>, vector<256x128xf32>
    %1 = arith.truncf %0 : vector<256x128xf32> to vector<256x128xbf16>
    %c0_1 = arith.constant 0 : index
    %c0_2 = arith.constant 0 : index
    %2 = vector.load %arg2[%c0_1, %c0_2] : memref<128x128xbf16, #tpu.memory_space<vmem>>, vector<128x128xbf16>
    %cst = arith.constant dense<0.000000e+00> : vector<256x128xf32>
    %3 = tpu.matmul %1, %2, %cst {dimension_numbers = #tpu.dot_dimension_numbers<[1], [0], [0], [1], [0, 0, 1, 1], [], []>} : vector<256x128xbf16>, vector<128x128xbf16>, vector<256x128xf32> -> vector<256x128xf32>
    %4 = arith.truncf %3 : vector<256x128xf32> to vector<256x128xbf16>
    %c0_3 = arith.constant 0 : index
    %c0_4 = arith.constant 0 : index
    %5 = vector.load %arg4[%c0_3, %c0_4] : memref<256x128xbf16, #tpu.memory_space<vmem>>, vector<256x128xbf16>
    tpu.vector_store %arg4[%c0_3, %c0_4], %4 {strides = array<i32>} : memref<256x128xbf16, #tpu.memory_space<vmem>>, vector<256x128xbf16>,
    %6 = arith.truncf %3 : vector<256x128xf32> to vector<256x128xbf16>
    %c0_5 = arith.constant 0 : index
    %c0_6 = arith.constant 0 : index
    %7 = vector.load %arg3[%c0_5, %c0_6] : memref<128x2xbf16, #tpu.memory_space<vmem>>, vector<128x2xbf16>
    %cst_7 = arith.constant dense<0.000000e+00> : vector<256x2xf32>
    %8 = tpu.matmul %6, %7, %cst_7 {dimension_numbers = #tpu.dot_dimension_numbers<[1], [0], [0], [1], [0, 0, 1, 1], [], []>} : vector<256x128xbf16>, vector<128x2xbf16>, vector<256x2xf32> -> vector<256x2xf32>
    %c0_8 = arith.constant 0 : index
    %c0_9 = arith.constant 0 : index
    %9 = vector.load %arg5[%c0_8, %c0_9] : memref<256x2xf32, #tpu.memory_space<vmem>>, vector<256x2xf32>
    tpu.vector_store %arg5[%c0_8, %c0_9], %8 {strides = array<i32>} : memref<256x2xf32, #tpu.memory_space<vmem>>, vector<256x2xf32>,
    return
  }
  func.func @transform_0(%arg0: i32) -> (i32, i32) {
    %c0_i32 = arith.constant 0 : i32
    %c0_i32_0 = arith.constant 0 : i32
    return %arg0, %c0_i32 : i32, i32
  }
  func.func @transform_1(%arg0: i32) -> (i32, i32) {
    %c0_i32 = arith.constant 0 : i32
    %c0_i32_0 = arith.constant 0 : i32
    %c0_i32_1 = arith.constant 0 : i32
    return %c0_i32, %c0_i32_0 : i32, i32
  }
  func.func @transform_2(%arg0: i32) -> (i32, i32) {
    %c0_i32 = arith.constant 0 : i32
    %c0_i32_0 = arith.constant 0 : i32
    %c0_i32_1 = arith.constant 0 : i32
    return %c0_i32, %c0_i32_0 : i32, i32
  }
  func.func @transform_3(%arg0: i32) -> (i32, i32) {
    %c0_i32 = arith.constant 0 : i32
    %c0_i32_0 = arith.constant 0 : i32
    return %arg0, %c0_i32 : i32, i32
  }
  func.func @transform_4(%arg0: i32) -> (i32, i32) {
    %c0_i32 = arith.constant 0 : i32
    %c0_i32_0 = arith.constant 0 : i32
    return %arg0, %c0_i32 : i32, i32
  }
}

module attributes {stable_mosaic.version = 11 : i64} {
  func.func @_pool_head_kernel(%arg0: i32, %arg1: memref<2x256xbf16, #tpu.memory_space<vmem>>, %arg2: memref<256x128xf32, #tpu.memory_space<vmem>>, %arg3: memref<2x1xf32, #tpu.memory_space<vmem>>, %arg4: memref<128x128xbf16, #tpu.memory_space<vmem>>, %arg5: memref<1x128xf32, #tpu.memory_space<vmem>>, %arg6: memref<2x128xf32, #tpu.memory_space<vmem>>, %arg7: memref<2x128xf32, #tpu.memory_space<vmem>>) attributes {dimension_semantics = [#tpu.dimension_semantics<arbitrary>], iteration_bounds = array<i64: 1>, scalar_prefetch = 0 : i64, scratch_operands = 1 : i64, tpu.core_type = #tpu.core_type<tc>, window_params = [{transform_indices = @transform_0, window_bounds = array<i64: 2, 256>}, {transform_indices = @transform_1, window_bounds = array<i64: 256, 128>}, {pipeline_mode = #tpu.pipeline_mode<synchronous>, transform_indices = @transform_2, window_bounds = array<i64: 2, 1>}, {pipeline_mode = #tpu.pipeline_mode<synchronous>, transform_indices = @transform_3, window_bounds = array<i64: 128, 128>}, {pipeline_mode = #tpu.pipeline_mode<synchronous>, transform_indices = @transform_4, window_bounds = array<i64: 1, 128>}, {pipeline_mode = #tpu.pipeline_mode<synchronous>, transform_indices = @transform_5, window_bounds = array<i64: 2, 128>}]} {
    %c0_i32 = arith.constant 0 : i32
    %0 = arith.cmpi eq, %arg0, %c0_i32 : i32
    %1 = arith.extui %0 : i1 to i32
    %c0_i32_0 = arith.constant 0 : i32
    %2 = arith.cmpi ne, %1, %c0_i32_0 : i32
    scf.if %2 {
      %cst_10 = arith.constant 0.000000e+00 : f32
      %13 = vector.broadcast %cst_10 : f32 to vector<2x128xf32>
      %c0_11 = arith.constant 0 : index
      %c0_12 = arith.constant 0 : index
      %14 = vector.load %arg7[%c0_11, %c0_12] : memref<2x128xf32, #tpu.memory_space<vmem>>, vector<2x128xf32>
      tpu.vector_store %arg7[%c0_11, %c0_12], %13 {strides = array<i32>} : memref<2x128xf32, #tpu.memory_space<vmem>>, vector<2x128xf32>,
    } else {
    }
    %c0 = arith.constant 0 : index
    %c0_1 = arith.constant 0 : index
    %3 = vector.load %arg7[%c0, %c0_1] : memref<2x128xf32, #tpu.memory_space<vmem>>, vector<2x128xf32>
    %c0_2 = arith.constant 0 : index
    %c0_3 = arith.constant 0 : index
    %4 = vector.load %arg1[%c0_2, %c0_3] : memref<2x256xbf16, #tpu.memory_space<vmem>>, vector<2x256xbf16>
    %c0_4 = arith.constant 0 : index
    %c0_5 = arith.constant 0 : index
    %5 = vector.load %arg2[%c0_4, %c0_5] : memref<256x128xf32, #tpu.memory_space<vmem>>, vector<256x128xf32>
    %6 = arith.truncf %5 : vector<256x128xf32> to vector<256x128xbf16>
    %cst = arith.constant dense<0.000000e+00> : vector<2x128xf32>
    %7 = tpu.matmul %4, %6, %cst {dimension_numbers = #tpu.dot_dimension_numbers<[1], [0], [0], [1], [0, 0, 1, 1], [], []>} : vector<2x256xbf16>, vector<256x128xbf16>, vector<2x128xf32> -> vector<2x128xf32>
    %8 = arith.addf %3, %7 : vector<2x128xf32>
    %c0_6 = arith.constant 0 : index
    %c0_7 = arith.constant 0 : index
    %9 = vector.load %arg7[%c0_6, %c0_7] : memref<2x128xf32, #tpu.memory_space<vmem>>, vector<2x128xf32>
    tpu.vector_store %arg7[%c0_6, %c0_7], %8 {strides = array<i32>} : memref<2x128xf32, #tpu.memory_space<vmem>>, vector<2x128xf32>,
    %c0_i32_8 = arith.constant 0 : i32
    %10 = arith.cmpi eq, %arg0, %c0_i32_8 : i32
    %11 = arith.extui %10 : i1 to i32
    %c0_i32_9 = arith.constant 0 : i32
    %12 = arith.cmpi ne, %11, %c0_i32_9 : i32
    scf.if %12 {
      %c0_10 = arith.constant 0 : index
      %c0_11 = arith.constant 0 : index
      %13 = vector.load %arg7[%c0_10, %c0_11] : memref<2x128xf32, #tpu.memory_space<vmem>>, vector<2x128xf32>
      %c0_12 = arith.constant 0 : index
      %c0_13 = arith.constant 0 : index
      %14 = vector.load %arg3[%c0_12, %c0_13] : memref<2x1xf32, #tpu.memory_space<vmem>>, vector<2x1xf32>
      %15 = vector.broadcast %14 : vector<2x1xf32> to vector<2x128xf32>
      %16 = arith.divf %13, %15 : vector<2x128xf32>
      %17 = arith.truncf %16 : vector<2x128xf32> to vector<2x128xbf16>
      %c0_14 = arith.constant 0 : index
      %c0_15 = arith.constant 0 : index
      %18 = vector.load %arg4[%c0_14, %c0_15] : memref<128x128xbf16, #tpu.memory_space<vmem>>, vector<128x128xbf16>
      %cst_16 = arith.constant dense<0.000000e+00> : vector<2x128xf32>
      %19 = tpu.matmul %17, %18, %cst_16 {dimension_numbers = #tpu.dot_dimension_numbers<[1], [0], [0], [1], [0, 0, 1, 1], [], []>} : vector<2x128xbf16>, vector<128x128xbf16>, vector<2x128xf32> -> vector<2x128xf32>
      %c0_17 = arith.constant 0 : index
      %c0_18 = arith.constant 0 : index
      %20 = vector.load %arg5[%c0_17, %c0_18] : memref<1x128xf32, #tpu.memory_space<vmem>>, vector<1x128xf32>
      %21 = vector.broadcast %20 : vector<1x128xf32> to vector<2x128xf32>
      %22 = arith.addf %19, %21 : vector<2x128xf32>
      %23 = arith.mulf %22, %22 : vector<2x128xf32>
      %cst_19 = arith.constant dense<0.000000e+00> : vector<2xf32>
      %24 = vector.multi_reduction <add>, %23, %cst_19 [1] : vector<2x128xf32> to vector<2xf32>
      %25 = vector.shape_cast %24 : vector<2xf32> to vector<2x1xf32>
      %26 = math.sqrt %25 : vector<2x1xf32>
      %cst_20 = arith.constant 9.99999996E-13 : f32
      %27 = vector.broadcast %cst_20 : f32 to vector<2x1xf32>
      %28 = arith.maximumf %26, %27 : vector<2x1xf32>
      %29 = vector.broadcast %28 : vector<2x1xf32> to vector<2x128xf32>
      %30 = arith.divf %22, %29 : vector<2x128xf32>
      %c0_21 = arith.constant 0 : index
      %c0_22 = arith.constant 0 : index
      %31 = vector.load %arg6[%c0_21, %c0_22] : memref<2x128xf32, #tpu.memory_space<vmem>>, vector<2x128xf32>
      tpu.vector_store %arg6[%c0_21, %c0_22], %30 {strides = array<i32>} : memref<2x128xf32, #tpu.memory_space<vmem>>, vector<2x128xf32>,
    } else {
    }
    return
  }
  func.func @transform_0(%arg0: i32) -> (i32, i32) {
    %c0_i32 = arith.constant 0 : i32
    %c0_i32_0 = arith.constant 0 : i32
    return %c0_i32, %arg0 : i32, i32
  }
  func.func @transform_1(%arg0: i32) -> (i32, i32) {
    %c0_i32 = arith.constant 0 : i32
    %c0_i32_0 = arith.constant 0 : i32
    return %arg0, %c0_i32 : i32, i32
  }
  func.func @transform_2(%arg0: i32) -> (i32, i32) {
    %c0_i32 = arith.constant 0 : i32
    %c0_i32_0 = arith.constant 0 : i32
    %c0_i32_1 = arith.constant 0 : i32
    return %c0_i32, %c0_i32_0 : i32, i32
  }
  func.func @transform_3(%arg0: i32) -> (i32, i32) {
    %c0_i32 = arith.constant 0 : i32
    %c0_i32_0 = arith.constant 0 : i32
    %c0_i32_1 = arith.constant 0 : i32
    return %c0_i32, %c0_i32_0 : i32, i32
  }
  func.func @transform_4(%arg0: i32) -> (i32, i32) {
    %c0_i32 = arith.constant 0 : i32
    %c0_i32_0 = arith.constant 0 : i32
    %c0_i32_1 = arith.constant 0 : i32
    return %c0_i32, %c0_i32_0 : i32, i32
  }
  func.func @transform_5(%arg0: i32) -> (i32, i32) {
    %c0_i32 = arith.constant 0 : i32
    %c0_i32_0 = arith.constant 0 : i32
    %c0_i32_1 = arith.constant 0 : i32
    return %c0_i32, %c0_i32_0 : i32, i32
  }
}

</mosaic_0001>

<llo_original>
// kernel: gnn_encoder_forward.9
$region0: #{gnn_encoder_forward.9}
  #allocation0 [shape = 'u32[]', space=smem, size = 0x4, offset = 0x4, fixed_abs, tag = 'smem constant byte address 0x4 - core index']
  #allocation1 [shape = 'u32[144,128]{1,0:T(1,128)}', space=vmem, size = 0x12000, scoped, tag = 'internal scratch']
  #allocation2 [shape = 'f32[2,128]{1,0:T(2,128)}', space=vmem, size = 0x400, scoped, tag = 'scratch operand']
  %s0 = inlined_call_operand.vmem [shape: bf16[2,256], index: 0, kind: input, shape index: {}]
  %s1 = inlined_call_operand.vmem [shape: f32[256,128], index: 1, kind: input, shape index: {}]
  %s2 = inlined_call_operand.vmem [shape: f32[2,1], index: 2, kind: input, shape index: {}]
  %s3 = inlined_call_operand.vmem [shape: bf16[128,128], index: 3, kind: input, shape index: {}]
  %s4 = inlined_call_operand.vmem [shape: f32[1,128], index: 4, kind: input, shape index: {}]
  %s5 = inlined_call_operand.hbm [shape: f32[2,128], index: 5, kind: output, shape index: {}]
  %s6 = sld [smem:[#allocation0]]
  $region38: #{gnn_encoder_forward.9} parent=0
    _
  %s8 = ssub.s32 1, %s6
  %s9 = scalar_select 0, %s8, %s6
  $region1: #{gnn_encoder_forward.9} parent=0
    #allocation3 [shape = 'u8[1024]{0}', space=vmem, size = 0x400, scoped, tag = 'output window, operand 0, single buffered']
    #allocation4 [shape = 's32[1]{0}', space=sflag, size = 0x4, scoped, tag = 'scoped memory for gnn_encoder_forward.9']
    %10 = vsyncpa [#allocation4], 0
    // Predicated region
    $region2: #{gnn_encoder_forward.9} parent=1 // pred_check
      _
    $region3: #{gnn_encoder_forward.9} parent=1 // pred_check_branch
      %12 = sbr.rel (0) target = $region5
    $region4: #{gnn_encoder_forward.9} parent=1 // pred_region
      _
    $region5: #{gnn_encoder_forward.9} parent=1 // pred_fallthru
      _
    // Predicated region
    $region6: #{gnn_encoder_forward.9} parent=1 // pred_check
      _
    $region7: #{gnn_encoder_forward.9} parent=1 // pred_check_branch
      %14 = sbr.rel (0) target = $region9
    $region8: #{gnn_encoder_forward.9} parent=1 // pred_region
      _
    $region9: #{gnn_encoder_forward.9} parent=1 // pred_fallthru
      _
    // Predicated region
    $region10: #{gnn_encoder_forward.9} parent=1 // pred_check
      _
    $region11: #{gnn_encoder_forward.9} parent=1 // pred_check_branch
      %16 = sbr.rel (0) target = $region13
    $region12: #{gnn_encoder_forward.9} parent=1 // pred_region
      _
    $region13: #{gnn_encoder_forward.9} parent=1 // pred_fallthru
      _
    // Predicated region
    $region14: #{gnn_encoder_forward.9} parent=1 // pred_check
      _
    $region15: #{gnn_encoder_forward.9} parent=1 // pred_check_branch
      %18 = sbr.rel (0) target = $region17
    $region16: #{gnn_encoder_forward.9} parent=1 // pred_region
      _
    $region17: #{gnn_encoder_forward.9} parent=1 // pred_fallthru
      _
    // Predicated region
    $region18: #{gnn_encoder_forward.9} parent=1 // pred_check
      _
    $region19: #{gnn_encoder_forward.9} parent=1 // pred_check_branch
      %20 = sbr.rel (0) target = $region21
    $region20: #{gnn_encoder_forward.9} parent=1 // pred_region
      _
    $region21: #{gnn_encoder_forward.9} parent=1 // pred_fallthru
      _
    %p22 = scmp.eq.s32.totalorder 0, 0
    // Predicated region
    $region22: #{gnn_encoder_forward.9} parent=1 // pred_check
      %p23 = pneg %p22
    $region23: #{gnn_encoder_forward.9} parent=1 // pred_check_branch
      %25 = sbr.rel (%p23) target = $region25
    $region24: #{gnn_encoder_forward.9} parent=1 // pred_region
      %26 = vst [vmem:[#allocation2] sm:$0x3] 0.0
    $region25: #{gnn_encoder_forward.9} parent=1 // pred_fallthru
      _
    %v27 = vld [vmem:[#allocation2] sm:$0x3]
    %v28 = vld [vmem:[%s0] sm:$0x3]
    %v29 = vld [vmem:[%s1] sm:$0xff]
    %v30 = vld [vmem:[%s1 + $0x8] sm:$0xff]
    %v31 = vld [vmem:[%s1 + $0x10] sm:$0xff]
    %v32 = vld [vmem:[%s1 + $0x18] sm:$0xff]
    %v33 = vld [vmem:[%s1 + $0x20] sm:$0xff]
    %v34 = vld [vmem:[%s1 + $0x28] sm:$0xff]
    %v35 = vld [vmem:[%s1 + $0x30] sm:$0xff]
    %v36 = vld [vmem:[%s1 + $0x38] sm:$0xff]
    %v37 = vld [vmem:[%s1 + $0x40] sm:$0xff]
    %v38 = vld [vmem:[%s1 + $0x48] sm:$0xff]
    %v39 = vld [vmem:[%s1 + $0x50] sm:$0xff]
    %v40 = vld [vmem:[%s1 + $0x58] sm:$0xff]
    %v41 = vld [vmem:[%s1 + $0x60] sm:$0xff]
    %v42 = vld [vmem:[%s1 + $0x68] sm:$0xff]
    %v43 = vld [vmem:[%s1 + $0x70] sm:$0xff]
    %v44 = vld [vmem:[%s1 + $0x78] sm:$0xff]
    %v45 = vld [vmem:[%s1 + $0x80] sm:$0xff]
    %v46 = vld [vmem:[%s1 + $0x88] sm:$0xff]
    %v47 = vld [vmem:[%s1 + $0x90] sm:$0xff]
    %v48 = vld [vmem:[%s1 + $0x98] sm:$0xff]
    %v49 = vld [vmem:[%s1 + $0xa0] sm:$0xff]
    %v50 = vld [vmem:[%s1 + $0xa8] sm:$0xff]
    %v51 = vld [vmem:[%s1 + $0xb0] sm:$0xff]
    %v52 = vld [vmem:[%s1 + $0xb8] sm:$0xff]
    %v53 = vld [vmem:[%s1 + $0xc0] sm:$0xff]
    %v54 = vld [vmem:[%s1 + $0xc8] sm:$0xff]
    %v55 = vld [vmem:[%s1 + $0xd0] sm:$0xff]
    %v56 = vld [vmem:[%s1 + $0xd8] sm:$0xff]
    %v57 = vld [vmem:[%s1 + $0xe0] sm:$0xff]
    %v58 = vld [vmem:[%s1 + $0xe8] sm:$0xff]
    %v59 = vld [vmem:[%s1 + $0xf0] sm:$0xff]
    %v60 = vld [vmem:[%s1 + $0xf8] sm:$0xff]
    %v61 = vpack.c.bf16 %v30, %v29
    %v62 = vpack.c.bf16 %v32, %v31
    %v63 = vpack.c.bf16 %v34, %v33
    %v64 = vpack.c.bf16 %v36, %v35
    %v65 = vpack.c.bf16 %v38, %v37
    %v66 = vpack.c.bf16 %v40, %v39
    %v67 = vpack.c.bf16 %v42, %v41
    %v68 = vpack.c.bf16 %v44, %v43
    %v69 = vpack.c.bf16 %v46, %v45
    %v70 = vpack.c.bf16 %v48, %v47
    %v71 = vpack.c.bf16 %v50, %v49
    %v72 = vpack.c.bf16 %v52, %v51
    %v73 = vpack.c.bf16 %v54, %v53
    %v74 = vpack.c.bf16 %v56, %v55
    %v75 = vpack.c.bf16 %v58, %v57
    %v76 = vpack.c.bf16 %v60, %v59
    %v79 = vunpack.c.l.s4 1966171168
    %v80 = vunpack.c.0.s8 %v79
    %v81 = vlaneseq
    %v82 = vshrl.u32 %v81, 7
    %v83 = vsub.s32 %v80, %v82
    %v84 = vrot.slane %v28, %v83
    %v85 = vcombine.high %v84, %v84
    %v87 = vunpack.c.l.s4 1966171168
    %v88 = vunpack.c.0.s8 %v87
    %v89 = vlaneseq
    %v90 = vshrl.u32 %v89, 7
    %v91 = vsub.s32 %v88, %v90
    %v92 = vrot.slane %v84, %v91
    %v94 = vunpack.c.l.s4 1966171168
    %v95 = vunpack.c.0.s8 %v94
    %v96 = vlaneseq
    %v97 = vshrl.u32 %v96, 7
    %v98 = vsub.s32 %v95, %v97
    %v99 = vrot.slane %v85, %v98
    %102 = vmatprep.subr.bf16.mxu0 0
    %103 = vmatpush1.bf16.msra.mxu0 %v61
    %104 = vmatprep.subr.bf16.mxu0 0
    %105 = vmatpush1.bf16.msra.mxu0 %v62
    %106 = vmatprep.subr.bf16.mxu0 0
    %107 = vmatpush1.bf16.msra.mxu0 %v63
    %108 = vmatprep.subr.bf16.mxu0 0
    %109 = vmatpush1.bf16.msra.mxu0 %v64
    %110 = vmatprep.subr.bf16.mxu0 0
    %111 = vmatpush1.bf16.msra.mxu0 %v65
    %112 = vmatprep.subr.bf16.mxu0 0
    %113 = vmatpush1.bf16.msra.mxu0 %v66
    %114 = vmatprep.subr.bf16.mxu0 0
    %115 = vmatpush1.bf16.msra.mxu0 %v67
    %116 = vmatprep.subr.bf16.mxu0 0
    %117 = vmatpush1.bf16.msra.mxu0 %v68
    %118 = vmatprep.subr.bf16.mxu0 0
    %119 = vmatpush1.bf16.msra.mxu0 %v69
    %120 = vmatprep.subr.bf16.mxu0 0
    %121 = vmatpush1.bf16.msra.mxu0 %v70
    %122 = vmatprep.subr.bf16.mxu0 0
    %123 = vmatpush1.bf16.msra.mxu0 %v71
    %124 = vmatprep.subr.bf16.mxu0 0
    %125 = vmatpush1.bf16.msra.mxu0 %v72
    %126 = vmatprep.subr.bf16.mxu0 0
    %127 = vmatpush1.bf16.msra.mxu0 %v73
    %128 = vmatprep.subr.bf16.mxu0 0
    %129 = vmatpush1.bf16.msra.mxu0 %v74
    %130 = vmatprep.subr.bf16.mxu0 0
    %131 = vmatpush1.bf16.msra.mxu0 %v75
    %132 = vmatprep.subr.bf16.mxu0 0
    %133 = vmatpush1.bf16.msra.mxu0 %v76
    %134 = vmatprep.mubr.bf16.mxu0 %v99
    %135 = vmatmul.mubr.bf16.gmra.mrb[0].mxu0 %v92
    %v136 = vpop.f32.mrb[0].mxu0
    %v137 = vadd.f32 0.0, %v136
    %v138 = vpop.f32.mrb[0].mxu0
    %v139 = vpop.f32.mrb[0].mxu0
    %v140 = vpop.f32.mrb[0].mxu0
    %141 = vdwg.mxu0
    %v142 = vadd.f32 %v27, %v137
    %143 = vst [vmem:[#allocation2] sm:$0x3] %v142
    // Predicated region
    $region26: #{gnn_encoder_forward.9} parent=1 // pred_check
      %p144 = pneg %p22
    $region27: #{gnn_encoder_forward.9} parent=1 // pred_check_branch
      %146 = sbr.rel (%p144) target = $region29
    $region28: #{gnn_encoder_forward.9} parent=1 // pred_region
      %v147 = vld [vmem:[#allocation2] sm:$0x3]
      %v148 = vld [vmem:[%s2] sm:$0x3]
      %150 = vset.pattern.permute.xlu0 0
      %151 = vperm.xlu0 %150, %v148
      %v152 = vpop.permute.xlu0 %151
      %v154 = vrcp.pop %v152
      %v155 = vmul.f32 %v147, %v154
      %v156 = vpack.c.bf16 %v155, %v155
      %v157 = vld [vmem:[%s3] sm:$0xf]
      %v158 = vld [vmem:[%s3 + $0x4] sm:$0xf]
      %v159 = vld [vmem:[%s3 + $0x8] sm:$0xf]
      %v160 = vld [vmem:[%s3 + $0xc] sm:$0xf]
      %v161 = vld [vmem:[%s3 + $0x10] sm:$0xf]
      %v162 = vld [vmem:[%s3 + $0x14] sm:$0xf]
      %v163 = vld [vmem:[%s3 + $0x18] sm:$0xf]
      %v164 = vld [vmem:[%s3 + $0x1c] sm:$0xf]
      %v165 = vld [vmem:[%s3 + $0x20] sm:$0xf]
      %v166 = vld [vmem:[%s3 + $0x24] sm:$0xf]
      %v167 = vld [vmem:[%s3 + $0x28] sm:$0xf]
      %v168 = vld [vmem:[%s3 + $0x2c] sm:$0xf]
      %v169 = vld [vmem:[%s3 + $0x30] sm:$0xf]
      %v170 = vld [vmem:[%s3 + $0x34] sm:$0xf]
      %v171 = vld [vmem:[%s3 + $0x38] sm:$0xf]
      %v172 = vld [vmem:[%s3 + $0x3c] sm:$0xf]
      %v173 = vld [vmem:[%s4] sm:$0x1]
      %v175 = vlaneseq
      %v176 = vshrl.u32 %v175, 7
      %v177 = vsub.s32 0, %v176
      %v178 = vrot.slane %v173, %v177
      %v196 = vunpack.c.l.b16 %v157
      %v197 = vunpack.c.l.b16 %v158
      %v198 = vunpack.c.l.b16 %v159
      %v199 = vunpack.c.l.b16 %v160
      %v200 = vunpack.c.l.b16 %v161
      %v201 = vunpack.c.l.b16 %v162
      %v202 = vunpack.c.l.b16 %v163
      %v203 = vunpack.c.l.b16 %v164
      %v204 = vunpack.c.l.b16 %v165
      %v205 = vunpack.c.l.b16 %v166
      %v206 = vunpack.c.l.b16 %v167
      %v207 = vunpack.c.l.b16 %v168
      %v208 = vunpack.c.l.b16 %v169
      %v209 = vunpack.c.l.b16 %v170
      %v210 = vunpack.c.l.b16 %v171
      %v211 = vunpack.c.l.b16 %v172
      %v212 = vpack.c.b16 %v197, %v196
      %v213 = vpack.c.b16 %v199, %v198
      %v214 = vpack.c.b16 %v201, %v200
      %v215 = vpack.c.b16 %v203, %v202
      %v216 = vpack.c.b16 %v205, %v204
      %v217 = vpack.c.b16 %v207, %v206
      %v218 = vpack.c.b16 %v209, %v208
      %v219 = vpack.c.b16 %v211, %v210
      %228 = vmatprep.subr.bf16.mxu0 0
      %229 = vmatpush1.bf16.msra.mxu0 %v212
      %230 = vmatprep.subr.bf16.mxu0 0
      %231 = vmatpush1.bf16.msra.mxu0 %v213
      %232 = vmatprep.subr.bf16.mxu0 0
      %233 = vmatpush1.bf16.msra.mxu0 %v214
      %234 = vmatprep.subr.bf16.mxu0 0
      %235 = vmatpush1.bf16.msra.mxu0 %v215
      %236 = vmatprep.subr.bf16.mxu0 0
      %237 = vmatpush1.bf16.msra.mxu0 %v216
      %238 = vmatprep.subr.bf16.mxu0 0
      %239 = vmatpush1.bf16.msra.mxu0 %v217
      %240 = vmatprep.subr.bf16.mxu0 0
      %241 = vmatpush1.bf16.msra.mxu0 %v218
      %242 = vmatprep.subr.bf16.mxu0 0
      %243 = vmatpush1.bf16.msra.mxu0 %v219
      %244 = vmatprep.subr.bf16.mxu0 0
      %245 = vmatpush1.bf16.msra.mxu0 0
      %246 = vmatprep.subr.bf16.mxu0 0
      %247 = vmatpush1.bf16.msra.mxu0 0
      %248 = vmatprep.subr.bf16.mxu0 0
      %249 = vmatpush1.bf16.msra.mxu0 0
      %250 = vmatprep.subr.bf16.mxu0 0
      %251 = vmatpush1.bf16.msra.mxu0 0
      %252 = vmatprep.subr.bf16.mxu0 0
      %253 = vmatpush1.bf16.msra.mxu0 0
      %254 = vmatprep.subr.bf16.mxu0 0
      %255 = vmatpush1.bf16.msra.mxu0 0
      %256 = vmatprep.subr.bf16.mxu0 0
      %257 = vmatpush1.bf16.msra.mxu0 0
      %258 = vmatprep.subr.bf16.mxu0 0
      %259 = vmatpush1.bf16.msra.mxu0 0
      %260 = vmatprep.mubr.bf16.mxu0 0
      %261 = vmatmul.mubr.bf16.gmra.mrb[0].mxu0 %v156
      %v262 = vpop.f32.mrb[0].mxu0
      %v263 = vadd.f32 %v178, %v262
      %v264 = vpop.f32.mrb[0].mxu0
      %v265 = vpop.f32.mrb[0].mxu0
      %v266 = vpop.f32.mrb[0].mxu0
      %267 = vdwg.mxu0
      %v268 = vmul.f32 %v263, %v263
      %vm269 = vcmask 1041408
      %v270 = vsel %vm269, %v268, 0.0
      %271 = vadd.xlane.f32.xlu0 %v270
      %v272 = vpop.xlane.xlu0 %271
      %v273 = vrsqrt.pop %v272
      %v274 = vmul.f32 %v272, %v273
      %vm275 = vcmp.eq.f32.partialorder %v272, inf
      %v276 = vsel %vm275, %v272, %v274
      %vm277 = vcmp.eq.f32.partialorder %v272, 0.0
      %v278 = vand.u32 %v272, 2147483648
      %v279 = vsel %vm277, %v278, %v276
      %v280 = vmax.f32 %v279, 1e-12
      %v281 = vrcp.pop %v280
      %v282 = vmul.f32 %v263, %v281
      %283 = vst [vmem:[#allocation3] sm:$0x3] %v282
    $region29: #{gnn_encoder_forward.9} parent=1 // pred_fallthru
      _
    // Predicated region
    $region30: #{gnn_encoder_forward.9} parent=1 // pred_check
      _
    $region31: #{gnn_encoder_forward.9} parent=1 // pred_check_branch
      %285 = sbr.rel (0) target = $region33
    $region32: #{gnn_encoder_forward.9} parent=1 // pred_region
      %s287 = ssub.s32 32, 32
      %288 = vsyncadd [#allocation4], %s287
      %s290 = sshll.u32 [#allocation3], 4
      %s291 = int_to_ptr.vmem [resolvable:$true] %s290
      %293 = dma.vmem_to_hbm [thread:$0]  %s291, 32, %s5, [#allocation4]
    $region33: #{gnn_encoder_forward.9} parent=1 // pred_fallthru
      _
    // Predicated region
    $region34: #{gnn_encoder_forward.9} parent=1 // pred_check
      _
    $region35: #{gnn_encoder_forward.9} parent=1 // pred_check_branch
      %295 = sbr.rel (0) target = $region37
    $region36: #{gnn_encoder_forward.9} parent=1 // pred_region
      %296 = dma.done [#allocation4], 32
    $region37: #{gnn_encoder_forward.9} parent=1 // pred_fallthru
      _
    %297 = vsyncpa [#allocation4], 1

// kernel: gnn_encoder_forward.7
$region0: #{gnn_encoder_forward.7}
  #allocation0 [shape = 'u32[]', space=smem, size = 0x4, offset = 0x4, fixed_abs, tag = 'smem constant byte address 0x4 - core index']
  #allocation1 [shape = 'u32[144,128]{1,0:T(1,128)}', space=vmem, size = 0x12000, scoped, tag = 'internal scratch']
  %s0 = inlined_call_operand.vmem [shape: f32[256,128], index: 0, kind: input, shape index: {}]
  %s1 = inlined_call_operand.vmem [shape: bf16[128,128], index: 1, kind: input, shape index: {}]
  %s2 = inlined_call_operand.vmem [shape: bf16[128,2], index: 2, kind: input, shape index: {}]
  %s3 = inlined_call_operand.vmem [shape: bf16[256,128], index: 3, kind: output, shape index: {0}]
  %s4 = inlined_call_operand.vmem [shape: f32[256,2], index: 4, kind: output, shape index: {1}]
  %5 = xla_tuple %s3, %s4
  %s6 = sld [smem:[#allocation0]]
  $region30: #{gnn_encoder_forward.7} parent=0
    _
  %s8 = ssub.s32 1, %s6
  %s9 = scalar_select 0, %s8, %s6
  // Predicated region
  $region2: #{gnn_encoder_forward.7} parent=0 // pred_check
    _
  $region3: #{gnn_encoder_forward.7} parent=0 // pred_check_branch
    %11 = sbr.rel (0) target = $region5
  $region4: #{gnn_encoder_forward.7} parent=0 // pred_region
    _
  $region5: #{gnn_encoder_forward.7} parent=0 // pred_fallthru
    _
  // Predicated region
  $region6: #{gnn_encoder_forward.7} parent=0 // pred_check
    _
  $region7: #{gnn_encoder_forward.7} parent=0 // pred_check_branch
    %13 = sbr.rel (0) target = $region9
  $region8: #{gnn_encoder_forward.7} parent=0 // pred_region
    _
  $region9: #{gnn_encoder_forward.7} parent=0 // pred_fallthru
    _
  // Predicated region
  $region10: #{gnn_encoder_forward.7} parent=0 // pred_check
    _
  $region11: #{gnn_encoder_forward.7} parent=0 // pred_check_branch
    %15 = sbr.rel (0) target = $region13
  $region12: #{gnn_encoder_forward.7} parent=0 // pred_region
    _
  $region13: #{gnn_encoder_forward.7} parent=0 // pred_fallthru
    _
  %v17 = vld [vmem:[%s0] sm:$0xff]
  %v18 = vld [vmem:[%s0 + $0x8] sm:$0xff]
  %v19 = vld [vmem:[%s0 + $0x10] sm:$0xff]
  %v20 = vld [vmem:[%s0 + $0x18] sm:$0xff]
  %v21 = vld [vmem:[%s0 + $0x20] sm:$0xff]
  %v22 = vld [vmem:[%s0 + $0x28] sm:$0xff]
  %v23 = vld [vmem:[%s0 + $0x30] sm:$0xff]
  %v24 = vld [vmem:[%s0 + $0x38] sm:$0xff]
  %v25 = vld [vmem:[%s0 + $0x40] sm:$0xff]
  %v26 = vld [vmem:[%s0 + $0x48] sm:$0xff]
  %v27 = vld [vmem:[%s0 + $0x50] sm:$0xff]
  %v28 = vld [vmem:[%s0 + $0x58] sm:$0xff]
  %v29 = vld [vmem:[%s0 + $0x60] sm:$0xff]
  %v30 = vld [vmem:[%s0 + $0x68] sm:$0xff]
  %v31 = vld [vmem:[%s0 + $0x70] sm:$0xff]
  %v32 = vld [vmem:[%s0 + $0x78] sm:$0xff]
  %v33 = vld [vmem:[%s0 + $0x80] sm:$0xff]
  %v34 = vld [vmem:[%s0 + $0x88] sm:$0xff]
  %v35 = vld [vmem:[%s0 + $0x90] sm:$0xff]
  %v36 = vld [vmem:[%s0 + $0x98] sm:$0xff]
  %v37 = vld [vmem:[%s0 + $0xa0] sm:$0xff]
  %v38 = vld [vmem:[%s0 + $0xa8] sm:$0xff]
  %v39 = vld [vmem:[%s0 + $0xb0] sm:$0xff]
  %v40 = vld [vmem:[%s0 + $0xb8] sm:$0xff]
  %v41 = vld [vmem:[%s0 + $0xc0] sm:$0xff]
  %v42 = vld [vmem:[%s0 + $0xc8] sm:$0xff]
  %v43 = vld [vmem:[%s0 + $0xd0] sm:$0xff]
  %v44 = vld [vmem:[%s0 + $0xd8] sm:$0xff]
  %v45 = vld [vmem:[%s0 + $0xe0] sm:$0xff]
  %v46 = vld [vmem:[%s0 + $0xe8] sm:$0xff]
  %v47 = vld [vmem:[%s0 + $0xf0] sm:$0xff]
  %v48 = vld [vmem:[%s0 + $0xf8] sm:$0xff]
  %v49 = vpack.c.bf16 %v18, %v17
  %v50 = vpack.c.bf16 %v20, %v19
  %v51 = vpack.c.bf16 %v22, %v21
  %v52 = vpack.c.bf16 %v24, %v23
  %v53 = vpack.c.bf16 %v26, %v25
  %v54 = vpack.c.bf16 %v28, %v27
  %v55 = vpack.c.bf16 %v30, %v29
  %v56 = vpack.c.bf16 %v32, %v31
  %v57 = vpack.c.bf16 %v34, %v33
  %v58 = vpack.c.bf16 %v36, %v35
  %v59 = vpack.c.bf16 %v38, %v37
  %v60 = vpack.c.bf16 %v40, %v39
  %v61 = vpack.c.bf16 %v42, %v41
  %v62 = vpack.c.bf16 %v44, %v43
  %v63 = vpack.c.bf16 %v46, %v45
  %v64 = vpack.c.bf16 %v48, %v47
  %v65 = vld [vmem:[%s1] sm:$0xf]
  %v66 = vld [vmem:[%s1 + $0x4] sm:$0xf]
  %v67 = vld [vmem:[%s1 + $0x8] sm:$0xf]
  %v68 = vld [vmem:[%s1 + $0xc] sm:$0xf]
  %v69 = vld [vmem:[%s1 + $0x10] sm:$0xf]
  %v70 = vld [vmem:[%s1 + $0x14] sm:$0xf]
  %v71 = vld [vmem:[%s1 + $0x18] sm:$0xf]
  %v72 = vld [vmem:[%s1 + $0x1c] sm:$0xf]
  %v73 = vld [vmem:[%s1 + $0x20] sm:$0xf]
  %v74 = vld [vmem:[%s1 + $0x24] sm:$0xf]
  %v75 = vld [vmem:[%s1 + $0x28] sm:$0xf]
  %v76 = vld [vmem:[%s1 + $0x2c] sm:$0xf]
  %v77 = vld [vmem:[%s1 + $0x30] sm:$0xf]
  %v78 = vld [vmem:[%s1 + $0x34] sm:$0xf]
  %v79 = vld [vmem:[%s1 + $0x38] sm:$0xf]
  %v80 = vld [vmem:[%s1 + $0x3c] sm:$0xf]
  %v97 = vunpack.c.l.b16 %v65
  %v98 = vunpack.c.l.b16 %v66
  %v99 = vunpack.c.l.b16 %v67
  %v100 = vunpack.c.l.b16 %v68
  %v101 = vunpack.c.l.b16 %v69
  %v102 = vunpack.c.l.b16 %v70
  %v103 = vunpack.c.l.b16 %v71
  %v104 = vunpack.c.l.b16 %v72
  %v105 = vunpack.c.l.b16 %v73
  %v106 = vunpack.c.l.b16 %v74
  %v107 = vunpack.c.l.b16 %v75
  %v108 = vunpack.c.l.b16 %v76
  %v109 = vunpack.c.l.b16 %v77
  %v110 = vunpack.c.l.b16 %v78
  %v111 = vunpack.c.l.b16 %v79
  %v112 = vunpack.c.l.b16 %v80
  %v113 = vpack.c.b16 %v98, %v97
  %v114 = vpack.c.b16 %v100, %v99
  %v115 = vpack.c.b16 %v102, %v101
  %v116 = vpack.c.b16 %v104, %v103
  %v117 = vpack.c.b16 %v106, %v105
  %v118 = vpack.c.b16 %v108, %v107
  %v119 = vpack.c.b16 %v110, %v109
  %v120 = vpack.c.b16 %v112, %v111
  %129 = vmatprep.subr.bf16.mxu0 0
  %130 = vmatpush1.bf16.msra.mxu0 %v113
  %131 = vmatprep.subr.bf16.mxu0 0
  %132 = vmatpush1.bf16.msra.mxu0 %v114
  %133 = vmatprep.subr.bf16.mxu0 0
  %134 = vmatpush1.bf16.msra.mxu0 %v115
  %135 = vmatprep.subr.bf16.mxu0 0
  %136 = vmatpush1.bf16.msra.mxu0 %v116
  %137 = vmatprep.subr.bf16.mxu0 0
  %138 = vmatpush1.bf16.msra.mxu0 %v117
  %139 = vmatprep.subr.bf16.mxu0 0
  %140 = vmatpush1.bf16.msra.mxu0 %v118
  %141 = vmatprep.subr.bf16.mxu0 0
  %142 = vmatpush1.bf16.msra.mxu0 %v119
  %143 = vmatprep.subr.bf16.mxu0 0
  %144 = vmatpush1.bf16.msra.mxu0 %v120
  %145 = vmatprep.subr.bf16.mxu0 0
  %146 = vmatpush1.bf16.msra.mxu0 0
  %147 = vmatprep.subr.bf16.mxu0 0
  %148 = vmatpush1.bf16.msra.mxu0 0
  %149 = vmatprep.subr.bf16.mxu0 0
  %150 = vmatpush1.bf16.msra.mxu0 0
  %151 = vmatprep.subr.bf16.mxu0 0
  %152 = vmatpush1.bf16.msra.mxu0 0
  %153 = vmatprep.subr.bf16.mxu0 0
  %154 = vmatpush1.bf16.msra.mxu0 0
  %155 = vmatprep.subr.bf16.mxu0 0
  %156 = vmatpush1.bf16.msra.mxu0 0
  %157 = vmatprep.subr.bf16.mxu0 0
  %158 = vmatpush1.bf16.msra.mxu0 0
  %159 = vmatprep.subr.bf16.mxu0 0
  %160 = vmatpush1.bf16.msra.mxu0 0
  %161 = vmatprep.mubr.bf16.mxu0 0
  %162 = vmatmul.mubr.bf16.gmra.mrb[0].mxu0 %v49
  %v163 = vpop.f32.mrb[0].mxu0
  %v164 = vadd.f32 0.0, %v163
  %v165 = vpop.f32.mrb[0].mxu0
  %v166 = vpop.f32.mrb[0].mxu0
  %v167 = vadd.f32 0.0, %v166
  %v168 = vpop.f32.mrb[0].mxu0
  %169 = vmatprep.mubr.bf16.mxu0 0
  %170 = vmatmul.mubr.bf16.gmra.mrb[0].mxu0 %v50
  %v171 = vpop.f32.mrb[0].mxu0
  %v172 = vadd.f32 0.0, %v171
  %v173 = vpop.f32.mrb[0].mxu0
  %v174 = vpop.f32.mrb[0].mxu0
  %v175 = vadd.f32 0.0, %v174
  %v176 = vpop.f32.mrb[0].mxu0
  %177 = vmatprep.mubr.bf16.mxu0 0
  %178 = vmatmul.mubr.bf16.gmra.mrb[0].mxu0 %v51
  %v179 = vpop.f32.mrb[0].mxu0
  %v180 = vadd.f32 0.0, %v179
  %v181 = vpop.f32.mrb[0].mxu0
  %v182 = vpop.f32.mrb[0].mxu0
  %v183 = vadd.f32 0.0, %v182
  %v184 = vpop.f32.mrb[0].mxu0
  %185 = vmatprep.mubr.bf16.mxu0 0
  %186 = vmatmul.mubr.bf16.gmra.mrb[0].mxu0 %v52
  %v187 = vpop.f32.mrb[0].mxu0
  %v188 = vadd.f32 0.0, %v187
  %v189 = vpop.f32.mrb[0].mxu0
  %v190 = vpop.f32.mrb[0].mxu0
  %v191 = vadd.f32 0.0, %v190
  %v192 = vpop.f32.mrb[0].mxu0
  %193 = vmatprep.mubr.bf16.mxu0 0
  %194 = vmatmul.mubr.bf16.gmra.mrb[0].mxu0 %v53
  %v195 = vpop.f32.mrb[0].mxu0
  %v196 = vadd.f32 0.0, %v195
  %v197 = vpop.f32.mrb[0].mxu0
  %v198 = vpop.f32.mrb[0].mxu0
  %v199 = vadd.f32 0.0, %v198
  %v200 = vpop.f32.mrb[0].mxu0
  %201 = vmatprep.mubr.bf16.mxu0 0
  %202 = vmatmul.mubr.bf16.gmra.mrb[0].mxu0 %v54
  %v203 = vpop.f32.mrb[0].mxu0
  %v204 = vadd.f32 0.0, %v203
  %v205 = vpop.f32.mrb[0].mxu0
  %v206 = vpop.f32.mrb[0].mxu0
  %v207 = vadd.f32 0.0, %v206
  %v208 = vpop.f32.mrb[0].mxu0
  %209 = vmatprep.mubr.bf16.mxu0 0
  %210 = vmatmul.mubr.bf16.gmra.mrb[0].mxu0 %v55
  %v211 = vpop.f32.mrb[0].mxu0
  %v212 = vadd.f32 0.0, %v211
  %v213 = vpop.f32.mrb[0].mxu0
  %v214 = vpop.f32.mrb[0].mxu0
  %v215 = vadd.f32 0.0, %v214
  %v216 = vpop.f32.mrb[0].mxu0
  %217 = vmatprep.mubr.bf16.mxu0 0
  %218 = vmatmul.mubr.bf16.gmra.mrb[0].mxu0 %v56
  %v219 = vpop.f32.mrb[0].mxu0
  %v220 = vadd.f32 0.0, %v219
  %v221 = vpop.f32.mrb[0].mxu0
  %v222 = vpop.f32.mrb[0].mxu0
  %v223 = vadd.f32 0.0, %v222
  %v224 = vpop.f32.mrb[0].mxu0
  %225 = vmatprep.mubr.bf16.mxu0 0
  %226 = vmatmul.mubr.bf16.gmra.mrb[0].mxu0 %v57
  %v227 = vpop.f32.mrb[0].mxu0
  %v228 = vadd.f32 0.0, %v227
  %v229 = vpop.f32.mrb[0].mxu0
  %v230 = vpop.f32.mrb[0].mxu0
  %v231 = vadd.f32 0.0, %v230
  %v232 = vpop.f32.mrb[0].mxu0
  %233 = vmatprep.mubr.bf16.mxu0 0
  %234 = vmatmul.mubr.bf16.gmra.mrb[0].mxu0 %v58
  %v235 = vpop.f32.mrb[0].mxu0
  %v236 = vadd.f32 0.0, %v235
  %v237 = vpop.f32.mrb[0].mxu0
  %v238 = vpop.f32.mrb[0].mxu0
  %v239 = vadd.f32 0.0, %v238
  %v240 = vpop.f32.mrb[0].mxu0
  %241 = vmatprep.mubr.bf16.mxu0 0
  %242 = vmatmul.mubr.bf16.gmra.mrb[0].mxu0 %v59
  %v243 = vpop.f32.mrb[0].mxu0
  %v244 = vadd.f32 0.0, %v243
  %v245 = vpop.f32.mrb[0].mxu0
  %v246 = vpop.f32.mrb[0].mxu0
  %v247 = vadd.f32 0.0, %v246
  %v248 = vpop.f32.mrb[0].mxu0
  %249 = vmatprep.mubr.bf16.mxu0 0
  %250 = vmatmul.mubr.bf16.gmra.mrb[0].mxu0 %v60
  %v251 = vpop.f32.mrb[0].mxu0
  %v252 = vadd.f32 0.0, %v251
  %v253 = vpop.f32.mrb[0].mxu0
  %v254 = vpop.f32.mrb[0].mxu0
  %v255 = vadd.f32 0.0, %v254
  %v256 = vpop.f32.mrb[0].mxu0
  %257 = vmatprep.mubr.bf16.mxu0 0
  %258 = vmatmul.mubr.bf16.gmra.mrb[0].mxu0 %v61
  %v259 = vpop.f32.mrb[0].mxu0
  %v260 = vadd.f32 0.0, %v259
  %v261 = vpop.f32.mrb[0].mxu0
  %v262 = vpop.f32.mrb[0].mxu0
  %v263 = vadd.f32 0.0, %v262
  %v264 = vpop.f32.mrb[0].mxu0
  %265 = vmatprep.mubr.bf16.mxu0 0
  %266 = vmatmul.mubr.bf16.gmra.mrb[0].mxu0 %v62
  %v267 = vpop.f32.mrb[0].mxu0
  %v268 = vadd.f32 0.0, %v267
  %v269 = vpop.f32.mrb[0].mxu0
  %v270 = vpop.f32.mrb[0].mxu0
  %v271 = vadd.f32 0.0, %v270
  %v272 = vpop.f32.mrb[0].mxu0
  %273 = vmatprep.mubr.bf16.mxu0 0
  %274 = vmatmul.mubr.bf16.gmra.mrb[0].mxu0 %v63
  %v275 = vpop.f32.mrb[0].mxu0
  %v276 = vadd.f32 0.0, %v275
  %v277 = vpop.f32.mrb[0].mxu0
  %v278 = vpop.f32.mrb[0].mxu0
  %v279 = vadd.f32 0.0, %v278
  %v280 = vpop.f32.mrb[0].mxu0
  %281 = vmatprep.mubr.bf16.mxu0 0
  %282 = vmatmul.mubr.bf16.gmra.mrb[0].mxu0 %v64
  %v283 = vpop.f32.mrb[0].mxu0
  %v284 = vadd.f32 0.0, %v283
  %v285 = vpop.f32.mrb[0].mxu0
  %v286 = vpop.f32.mrb[0].mxu0
  %v287 = vadd.f32 0.0, %v286
  %v288 = vpop.f32.mrb[0].mxu0
  %289 = vdwg.mxu0
  %v290 = vpack.c.bf16 %v167, %v164
  %v291 = vpack.c.bf16 %v175, %v172
  %v292 = vpack.c.bf16 %v183, %v180
  %v293 = vpack.c.bf16 %v191, %v188
  %v294 = vpack.c.bf16 %v199, %v196
  %v295 = vpack.c.bf16 %v207, %v204
  %v296 = vpack.c.bf16 %v215, %v212
  %v297 = vpack.c.bf16 %v223, %v220
  %v298 = vpack.c.bf16 %v231, %v228
  %v299 = vpack.c.bf16 %v239, %v236
  %v300 = vpack.c.bf16 %v247, %v244
  %v301 = vpack.c.bf16 %v255, %v252
  %v302 = vpack.c.bf16 %v263, %v260
  %v303 = vpack.c.bf16 %v271, %v268
  %v304 = vpack.c.bf16 %v279, %v276
  %v305 = vpack.c.bf16 %v287, %v284
  %v322 = vunpack.c.l.b16 %v290
  %v323 = vunpack.c.h.b16 %v290
  %v324 = vunpack.c.l.b16 %v291
  %v325 = vunpack.c.h.b16 %v291
  %v326 = vunpack.c.l.b16 %v292
  %v327 = vunpack.c.h.b16 %v292
  %v328 = vunpack.c.l.b16 %v293
  %v329 = vunpack.c.h.b16 %v293
  %v330 = vunpack.c.l.b16 %v294
  %v331 = vunpack.c.h.b16 %v294
  %v332 = vunpack.c.l.b16 %v295
  %v333 = vunpack.c.h.b16 %v295
  %v334 = vunpack.c.l.b16 %v296
  %v335 = vunpack.c.h.b16 %v296
  %v336 = vunpack.c.l.b16 %v297
  %v337 = vunpack.c.h.b16 %v297
  %v338 = vunpack.c.l.b16 %v298
  %v339 = vunpack.c.h.b16 %v298
  %v340 = vunpack.c.l.b16 %v299
  %v341 = vunpack.c.h.b16 %v299
  %v342 = vunpack.c.l.b16 %v300
  %v343 = vunpack.c.h.b16 %v300
  %v344 = vunpack.c.l.b16 %v301
  %v345 = vunpack.c.h.b16 %v301
  %v346 = vunpack.c.l.b16 %v302
  %v347 = vunpack.c.h.b16 %v302
  %v348 = vunpack.c.l.b16 %v303
  %v349 = vunpack.c.h.b16 %v303
  %v350 = vunpack.c.l.b16 %v304
  %v351 = vunpack.c.h.b16 %v304
  %v352 = vunpack.c.l.b16 %v305
  %v353 = vunpack.c.h.b16 %v305
  %v354 = vpack.c.b16 %v322, %v322
  %v355 = vpack.c.b16 %v323, %v323
  %v356 = vpack.c.b16 %v324, %v324
  %v357 = vpack.c.b16 %v325, %v325
  %v358 = vpack.c.b16 %v326, %v326
  %v359 = vpack.c.b16 %v327, %v327
  %v360 = vpack.c.b16 %v328, %v328
  %v361 = vpack.c.b16 %v329, %v329
  %v362 = vpack.c.b16 %v330, %v330
  %v363 = vpack.c.b16 %v331, %v331
  %v364 = vpack.c.b16 %v332, %v332
  %v365 = vpack.c.b16 %v333, %v333
  %v366 = vpack.c.b16 %v334, %v334
  %v367 = vpack.c.b16 %v335, %v335
  %v368 = vpack.c.b16 %v336, %v336
  %v369 = vpack.c.b16 %v337, %v337
  %v370 = vpack.c.b16 %v338, %v338
  %v371 = vpack.c.b16 %v339, %v339
  %v372 = vpack.c.b16 %v340, %v340
  %v373 = vpack.c.b16 %v341, %v341
  %v374 = vpack.c.b16 %v342, %v342
  %v375 = vpack.c.b16 %v343, %v343
  %v376 = vpack.c.b16 %v344, %v344
  %v377 = vpack.c.b16 %v345, %v345
  %v378 = vpack.c.b16 %v346, %v346
  %v379 = vpack.c.b16 %v347, %v347
  %v380 = vpack.c.b16 %v348, %v348
  %v381 = vpack.c.b16 %v349, %v349
  %v382 = vpack.c.b16 %v350, %v350
  %v383 = vpack.c.b16 %v351, %v351
  %v384 = vpack.c.b16 %v352, %v352
  %v385 = vpack.c.b16 %v353, %v353
  %418 = vst [vmem:[%s3] sm:$0xf] %v354
  %419 = vst [vmem:[%s3 + $0x4] sm:$0xf] %v355
  %420 = vst [vmem:[%s3 + $0x8] sm:$0xf] %v356
  %421 = vst [vmem:[%s3 + $0xc] sm:$0xf] %v357
  %422 = vst [vmem:[%s3 + $0x10] sm:$0xf] %v358
  %423 = vst [vmem:[%s3 + $0x14] sm:$0xf] %v359
  %424 = vst [vmem:[%s3 + $0x18] sm:$0xf] %v360
  %425 = vst [vmem:[%s3 + $0x1c] sm:$0xf] %v361
  %426 = vst [vmem:[%s3 + $0x20] sm:$0xf] %v362
  %427 = vst [vmem:[%s3 + $0x24] sm:$0xf] %v363
  %428 = vst [vmem:[%s3 + $0x28] sm:$0xf] %v364
  %429 = vst [vmem:[%s3 + $0x2c] sm:$0xf] %v365
  %430 = vst [vmem:[%s3 + $0x30] sm:$0xf] %v366
  %431 = vst [vmem:[%s3 + $0x34] sm:$0xf] %v367
  %432 = vst [vmem:[%s3 + $0x38] sm:$0xf] %v368
  %433 = vst [vmem:[%s3 + $0x3c] sm:$0xf] %v369
  %434 = vst [vmem:[%s3 + $0x40] sm:$0xf] %v370
  %435 = vst [vmem:[%s3 + $0x44] sm:$0xf] %v371
  %436 = vst [vmem:[%s3 + $0x48] sm:$0xf] %v372
  %437 = vst [vmem:[%s3 + $0x4c] sm:$0xf] %v373
  %438 = vst [vmem:[%s3 + $0x50] sm:$0xf] %v374
  %439 = vst [vmem:[%s3 + $0x54] sm:$0xf] %v375
  %440 = vst [vmem:[%s3 + $0x58] sm:$0xf] %v376
  %441 = vst [vmem:[%s3 + $0x5c] sm:$0xf] %v377
  %442 = vst [vmem:[%s3 + $0x60] sm:$0xf] %v378
  %443 = vst [vmem:[%s3 + $0x64] sm:$0xf] %v379
  %444 = vst [vmem:[%s3 + $0x68] sm:$0xf] %v380
  %445 = vst [vmem:[%s3 + $0x6c] sm:$0xf] %v381
  %446 = vst [vmem:[%s3 + $0x70] sm:$0xf] %v382
  %447 = vst [vmem:[%s3 + $0x74] sm:$0xf] %v383
  %448 = vst [vmem:[%s3 + $0x78] sm:$0xf] %v384
  %449 = vst [vmem:[%s3 + $0x7c] sm:$0xf] %v385
  %v450 = vld [vmem:[%s2] sm:$0xf]
  %v451 = vld [vmem:[%s2 + $0x4] sm:$0xf]
  %v452 = vld [vmem:[%s2 + $0x8] sm:$0xf]
  %v453 = vld [vmem:[%s2 + $0xc] sm:$0xf]
  %v454 = vld [vmem:[%s2 + $0x10] sm:$0xf]
  %v455 = vld [vmem:[%s2 + $0x14] sm:$0xf]
  %v456 = vld [vmem:[%s2 + $0x18] sm:$0xf]
  %v457 = vld [vmem:[%s2 + $0x1c] sm:$0xf]
  %v458 = vld [vmem:[%s2 + $0x20] sm:$0xf]
  %v459 = vld [vmem:[%s2 + $0x24] sm:$0xf]
  %v460 = vld [vmem:[%s2 + $0x28] sm:$0xf]
  %v461 = vld [vmem:[%s2 + $0x2c] sm:$0xf]
  %v462 = vld [vmem:[%s2 + $0x30] sm:$0xf]
  %v463 = vld [vmem:[%s2 + $0x34] sm:$0xf]
  %v464 = vld [vmem:[%s2 + $0x38] sm:$0xf]
  %v465 = vld [vmem:[%s2 + $0x3c] sm:$0xf]
  %v482 = vunpack.c.l.b16 %v450
  %v483 = vunpack.c.l.b16 %v451
  %v484 = vunpack.c.l.b16 %v452
  %v485 = vunpack.c.l.b16 %v453
  %v486 = vunpack.c.l.b16 %v454
  %v487 = vunpack.c.l.b16 %v455
  %v488 = vunpack.c.l.b16 %v456
  %v489 = vunpack.c.l.b16 %v457
  %v490 = vunpack.c.l.b16 %v458
  %v491 = vunpack.c.l.b16 %v459
  %v492 = vunpack.c.l.b16 %v460
  %v493 = vunpack.c.l.b16 %v461
  %v494 = vunpack.c.l.b16 %v462
  %v495 = vunpack.c.l.b16 %v463
  %v496 = vunpack.c.l.b16 %v464
  %v497 = vunpack.c.l.b16 %v465
  %v498 = vpack.c.b16 %v483, %v482
  %v499 = vpack.c.b16 %v485, %v484
  %v500 = vpack.c.b16 %v487, %v486
  %v501 = vpack.c.b16 %v489, %v488
  %v502 = vpack.c.b16 %v491, %v490
  %v503 = vpack.c.b16 %v493, %v492
  %v504 = vpack.c.b16 %v495, %v494
  %v505 = vpack.c.b16 %v497, %v496
  %514 = vmatprep.subr.bf16.mxu0 0
  %515 = vmatpush1.bf16.msra.mxu0 %v498
  %516 = vmatprep.subr.bf16.mxu0 0
  %517 = vmatpush1.bf16.msra.mxu0 %v499
  %518 = vmatprep.subr.bf16.mxu0 0
  %519 = vmatpush1.bf16.msra.mxu0 %v500
  %520 = vmatprep.subr.bf16.mxu0 0
  %521 = vmatpush1.bf16.msra.mxu0 %v501
  %522 = vmatprep.subr.bf16.mxu0 0
  %523 = vmatpush1.bf16.msra.mxu0 %v502
  %524 = vmatprep.subr.bf16.mxu0 0
  %525 = vmatpush1.bf16.msra.mxu0 %v503
  %526 = vmatprep.subr.bf16.mxu0 0
  %527 = vmatpush1.bf16.msra.mxu0 %v504
  %528 = vmatprep.subr.bf16.mxu0 0
  %529 = vmatpush1.bf16.msra.mxu0 %v505
  %530 = vmatprep.subr.bf16.mxu0 0
  %531 = vmatpush1.bf16.msra.mxu0 0
  %532 = vmatprep.subr.bf16.mxu0 0
  %533 = vmatpush1.bf16.msra.mxu0 0
  %534 = vmatprep.subr.bf16.mxu0 0
  %535 = vmatpush1.bf16.msra.mxu0 0
  %536 = vmatprep.subr.bf16.mxu0 0
  %537 = vmatpush1.bf16.msra.mxu0 0
  %538 = vmatprep.subr.bf16.mxu0 0
  %539 = vmatpush1.bf16.msra.mxu0 0
  %540 = vmatprep.subr.bf16.mxu0 0
  %541 = vmatpush1.bf16.msra.mxu0 0
  %542 = vmatprep.subr.bf16.mxu0 0
  %543 = vmatpush1.bf16.msra.mxu0 0
  %544 = vmatprep.subr.bf16.mxu0 0
  %545 = vmatpush1.bf16.msra.mxu0 0
  %546 = vmatprep.mubr.bf16.mxu0 0
  %547 = vmatmul.mubr.bf16.gmra.mrb[0].mxu0 %v290
  %v548 = vpop.f32.mrb[0].mxu0
  %v549 = vadd.f32 0.0, %v548
  %v550 = vpop.f32.mrb[0].mxu0
  %v551 = vpop.f32.mrb[0].mxu0
  %v552 = vadd.f32 0.0, %v551
  %v553 = vpop.f32.mrb[0].mxu0
  %554 = vmatprep.mubr.bf16.mxu0 0
  %555 = vmatmul.mubr.bf16.gmra.mrb[0].mxu0 %v291
  %v556 = vpop.f32.mrb[0].mxu0
  %v557 = vadd.f32 0.0, %v556
  %v558 = vpop.f32.mrb[0].mxu0
  %v559 = vpop.f32.mrb[0].mxu0
  %v560 = vadd.f32 0.0, %v559
  %v561 = vpop.f32.mrb[0].mxu0
  %562 = vmatprep.mubr.bf16.mxu0 0
  %563 = vmatmul.mubr.bf16.gmra.mrb[0].mxu0 %v292
  %v564 = vpop.f32.mrb[0].mxu0
  %v565 = vadd.f32 0.0, %v564
  %v566 = vpop.f32.mrb[0].mxu0
  %v567 = vpop.f32.mrb[0].mxu0
  %v568 = vadd.f32 0.0, %v567
  %v569 = vpop.f32.mrb[0].mxu0
  %570 = vmatprep.mubr.bf16.mxu0 0
  %571 = vmatmul.mubr.bf16.gmra.mrb[0].mxu0 %v293
  %v572 = vpop.f32.mrb[0].mxu0
  %v573 = vadd.f32 0.0, %v572
  %v574 = vpop.f32.mrb[0].mxu0
  %v575 = vpop.f32.mrb[0].mxu0
  %v576 = vadd.f32 0.0, %v575
  %v577 = vpop.f32.mrb[0].mxu0
  %578 = vmatprep.mubr.bf16.mxu0 0
  %579 = vmatmul.mubr.bf16.gmra.mrb[0].mxu0 %v294
  %v580 = vpop.f32.mrb[0].mxu0
  %v581 = vadd.f32 0.0, %v580
  %v582 = vpop.f32.mrb[0].mxu0
  %v583 = vpop.f32.mrb[0].mxu0
  %v584 = vadd.f32 0.0, %v583
  %v585 = vpop.f32.mrb[0].mxu0
  %586 = vmatprep.mubr.bf16.mxu0 0
  %587 = vmatmul.mubr.bf16.gmra.mrb[0].mxu0 %v295
  %v588 = vpop.f32.mrb[0].mxu0
  %v589 = vadd.f32 0.0, %v588
  %v590 = vpop.f32.mrb[0].mxu0
  %v591 = vpop.f32.mrb[0].mxu0
  %v592 = vadd.f32 0.0, %v591
  %v593 = vpop.f32.mrb[0].mxu0
  %594 = vmatprep.mubr.bf16.mxu0 0
  %595 = vmatmul.mubr.bf16.gmra.mrb[0].mxu0 %v296
  %v596 = vpop.f32.mrb[0].mxu0
  %v597 = vadd.f32 0.0, %v596
  %v598 = vpop.f32.mrb[0].mxu0
  %v599 = vpop.f32.mrb[0].mxu0
  %v600 = vadd.f32 0.0, %v599
  %v601 = vpop.f32.mrb[0].mxu0
  %602 = vmatprep.mubr.bf16.mxu0 0
  %603 = vmatmul.mubr.bf16.gmra.mrb[0].mxu0 %v297
  %v604 = vpop.f32.mrb[0].mxu0
  %v605 = vadd.f32 0.0, %v604
  %v606 = vpop.f32.mrb[0].mxu0
  %v607 = vpop.f32.mrb[0].mxu0
  %v608 = vadd.f32 0.0, %v607
  %v609 = vpop.f32.mrb[0].mxu0
  %610 = vmatprep.mubr.bf16.mxu0 0
  %611 = vmatmul.mubr.bf16.gmra.mrb[0].mxu0 %v298
  %v612 = vpop.f32.mrb[0].mxu0
  %v613 = vadd.f32 0.0, %v612
  %v614 = vpop.f32.mrb[0].mxu0
  %v615 = vpop.f32.mrb[0].mxu0
  %v616 = vadd.f32 0.0, %v615
  %v617 = vpop.f32.mrb[0].mxu0
  %618 = vmatprep.mubr.bf16.mxu0 0
  %619 = vmatmul.mubr.bf16.gmra.mrb[0].mxu0 %v299
  %v620 = vpop.f32.mrb[0].mxu0
  %v621 = vadd.f32 0.0, %v620
  %v622 = vpop.f32.mrb[0].mxu0
  %v623 = vpop.f32.mrb[0].mxu0
  %v624 = vadd.f32 0.0, %v623
  %v625 = vpop.f32.mrb[0].mxu0
  %626 = vmatprep.mubr.bf16.mxu0 0
  %627 = vmatmul.mubr.bf16.gmra.mrb[0].mxu0 %v300
  %v628 = vpop.f32.mrb[0].mxu0
  %v629 = vadd.f32 0.0, %v628
  %v630 = vpop.f32.mrb[0].mxu0
  %v631 = vpop.f32.mrb[0].mxu0
  %v632 = vadd.f32 0.0, %v631
  %v633 = vpop.f32.mrb[0].mxu0
  %634 = vmatprep.mubr.bf16.mxu0 0
  %635 = vmatmul.mubr.bf16.gmra.mrb[0].mxu0 %v301
  %v636 = vpop.f32.mrb[0].mxu0
  %v637 = vadd.f32 0.0, %v636
  %v638 = vpop.f32.mrb[0].mxu0
  %v639 = vpop.f32.mrb[0].mxu0
  %v640 = vadd.f32 0.0, %v639
  %v641 = vpop.f32.mrb[0].mxu0
  %642 = vmatprep.mubr.bf16.mxu0 0
  %643 = vmatmul.mubr.bf16.gmra.mrb[0].mxu0 %v302
  %v644 = vpop.f32.mrb[0].mxu0
  %v645 = vadd.f32 0.0, %v644
  %v646 = vpop.f32.mrb[0].mxu0
  %v647 = vpop.f32.mrb[0].mxu0
  %v648 = vadd.f32 0.0, %v647
  %v649 = vpop.f32.mrb[0].mxu0
  %650 = vmatprep.mubr.bf16.mxu0 0
  %651 = vmatmul.mubr.bf16.gmra.mrb[0].mxu0 %v303
  %v652 = vpop.f32.mrb[0].mxu0
  %v653 = vadd.f32 0.0, %v652
  %v654 = vpop.f32.mrb[0].mxu0
  %v655 = vpop.f32.mrb[0].mxu0
  %v656 = vadd.f32 0.0, %v655
  %v657 = vpop.f32.mrb[0].mxu0
  %658 = vmatprep.mubr.bf16.mxu0 0
  %659 = vmatmul.mubr.bf16.gmra.mrb[0].mxu0 %v304
  %v660 = vpop.f32.mrb[0].mxu0
  %v661 = vadd.f32 0.0, %v660
  %v662 = vpop.f32.mrb[0].mxu0
  %v663 = vpop.f32.mrb[0].mxu0
  %v664 = vadd.f32 0.0, %v663
  %v665 = vpop.f32.mrb[0].mxu0
  %666 = vmatprep.mubr.bf16.mxu0 0
  %667 = vmatmul.mubr.bf16.gmra.mrb[0].mxu0 %v305
  %v668 = vpop.f32.mrb[0].mxu0
  %v669 = vadd.f32 0.0, %v668
  %v670 = vpop.f32.mrb[0].mxu0
  %v671 = vpop.f32.mrb[0].mxu0
  %v672 = vadd.f32 0.0, %v671
  %v673 = vpop.f32.mrb[0].mxu0
  %674 = vdwg.mxu0
  %vm675 = vcmask 15360
  %676 = vst.msk [vmem:[%s4] sm:$0xff] %vm675, %v549
  %677 = vst.msk [vmem:[%s4 + $0x8] sm:$0xff] %vm675, %v552
  %678 = vst.msk [vmem:[%s4 + $0x10] sm:$0xff] %vm675, %v557
  %679 = vst.msk [vmem:[%s4 + $0x18] sm:$0xff] %vm675, %v560
  %680 = vst.msk [vmem:[%s4 + $0x20] sm:$0xff] %vm675, %v565
  %681 = vst.msk [vmem:[%s4 + $0x28] sm:$0xff] %vm675, %v568
  %682 = vst.msk [vmem:[%s4 + $0x30] sm:$0xff] %vm675, %v573
  %683 = vst.msk [vmem:[%s4 + $0x38] sm:$0xff] %vm675, %v576
  %684 = vst.msk [vmem:[%s4 + $0x40] sm:$0xff] %vm675, %v581
  %685 = vst.msk [vmem:[%s4 + $0x48] sm:$0xff] %vm675, %v584
  %686 = vst.msk [vmem:[%s4 + $0x50] sm:$0xff] %vm675, %v589
  %687 = vst.msk [vmem:[%s4 + $0x58] sm:$0xff] %vm675, %v592
  %688 = vst.msk [vmem:[%s4 + $0x60] sm:$0xff] %vm675, %v597
  %689 = vst.msk [vmem:[%s4 + $0x68] sm:$0xff] %vm675, %v600
  %690 = vst.msk [vmem:[%s4 + $0x70] sm:$0xff] %vm675, %v605
  %691 = vst.msk [vmem:[%s4 + $0x78] sm:$0xff] %vm675, %v608
  %692 = vst.msk [vmem:[%s4 + $0x80] sm:$0xff] %vm675, %v613
  %693 = vst.msk [vmem:[%s4 + $0x88] sm:$0xff] %vm675, %v616
  %694 = vst.msk [vmem:[%s4 + $0x90] sm:$0xff] %vm675, %v621
  %695 = vst.msk [vmem:[%s4 + $0x98] sm:$0xff] %vm675, %v624
  %696 = vst.msk [vmem:[%s4 + $0xa0] sm:$0xff] %vm675, %v629
  %697 = vst.msk [vmem:[%s4 + $0xa8] sm:$0xff] %vm675, %v632
  %698 = vst.msk [vmem:[%s4 + $0xb0] sm:$0xff] %vm675, %v637
  %699 = vst.msk [vmem:[%s4 + $0xb8] sm:$0xff] %vm675, %v640
  %700 = vst.msk [vmem:[%s4 + $0xc0] sm:$0xff] %vm675, %v645
  %701 = vst.msk [vmem:[%s4 + $0xc8] sm:$0xff] %vm675, %v648
  %702 = vst.msk [vmem:[%s4 + $0xd0] sm:$0xff] %vm675, %v653
  %703 = vst.msk [vmem:[%s4 + $0xd8] sm:$0xff] %vm675, %v656
  %704 = vst.msk [vmem:[%s4 + $0xe0] sm:$0xff] %vm675, %v661
  %705 = vst.msk [vmem:[%s4 + $0xe8] sm:$0xff] %vm675, %v664
  %706 = vst.msk [vmem:[%s4 + $0xf0] sm:$0xff] %vm675, %v669
  %707 = vst.msk [vmem:[%s4 + $0xf8] sm:$0xff] %vm675, %v672
  // Predicated region
  $region14: #{gnn_encoder_forward.7} parent=0 // pred_check
    _
  $region15: #{gnn_encoder_forward.7} parent=0 // pred_check_branch
    %709 = sbr.rel (0) target = $region17
  $region16: #{gnn_encoder_forward.7} parent=0 // pred_region
    _
  $region17: #{gnn_encoder_forward.7} parent=0 // pred_fallthru
    _
  // Predicated region
  $region18: #{gnn_encoder_forward.7} parent=0 // pred_check
    _
  $region19: #{gnn_encoder_forward.7} parent=0 // pred_check_branch
    %711 = sbr.rel (0) target = $region21
  $region20: #{gnn_encoder_forward.7} parent=0 // pred_region
    _
  $region21: #{gnn_encoder_forward.7} parent=0 // pred_fallthru
    _
  // Predicated region
  $region22: #{gnn_encoder_forward.7} parent=0 // pred_check
    _
  $region23: #{gnn_encoder_forward.7} parent=0 // pred_check_branch
    %713 = sbr.rel (0) target = $region25
  $region24: #{gnn_encoder_forward.7} parent=0 // pred_region
    _
  $region25: #{gnn_encoder_forward.7} parent=0 // pred_fallthru
    _
  // Predicated region
  $region26: #{gnn_encoder_forward.7} parent=0 // pred_check
    _
  $region27: #{gnn_encoder_forward.7} parent=0 // pred_check_branch
    %715 = sbr.rel (0) target = $region29
  $region28: #{gnn_encoder_forward.7} parent=0 // pred_region
    _
  $region29: #{gnn_encoder_forward.7} parent=0 // pred_fallthru
    _

// kernel: gnn_encoder_forward.5
$region0: #{gnn_encoder_forward.5}
  #allocation0 [shape = 'u32[]', space=smem, size = 0x4, offset = 0x4, fixed_abs, tag = 'smem constant byte address 0x4 - core index']
  #allocation1 [shape = 'u32[144,128]{1,0:T(1,128)}', space=vmem, size = 0x12000, scoped, tag = 'internal scratch']
  %s0 = inlined_call_operand.hbm [shape: f32[256,128], index: 0, kind: input, shape index: {}]
  %s1 = inlined_call_operand.vmem [shape: bf16[128,128], index: 1, kind: input, shape index: {}]
  %s2 = inlined_call_operand.vmem [shape: f32[1,128], index: 2, kind: input, shape index: {}]
  %s3 = inlined_call_operand.hbm [shape: bf16[128,128], index: 3, kind: input, shape index: {}]
  %s4 = inlined_call_operand.vmem [shape: bf16[128,2], index: 4, kind: input, shape index: {}]
  %s5 = inlined_call_operand.vmem [shape: bf16[256,128], index: 5, kind: output, shape index: {0}]
  %s6 = inlined_call_operand.vmem [shape: f32[256,2], index: 6, kind: output, shape index: {1}]
  %7 = xla_tuple %s5, %s6
  %s8 = sld [smem:[#allocation0]]
  $region46: #{gnn_encoder_forward.5} parent=0
    _
  %s10 = ssub.s32 1, %s8
  %s11 = scalar_select 0, %s10, %s8
  $region1: #{gnn_encoder_forward.5} parent=0
    #allocation2 [shape = 'u8[131072]{0}', space=vmem, size = 0x20000, scoped, tag = 'input window, operand 0, single buffered']
    #allocation3 [shape = 's32[1]{0}', space=sflag, size = 0x4, scoped, tag = 'scoped memory for gnn_encoder_forward.5']
    #allocation4 [shape = 'u8[32768]{0}', space=vmem, size = 0x8000, scoped, tag = 'input window, operand 3, single buffered']
    #allocation5 [shape = 's32[1]{0}', space=sflag, size = 0x4, scoped, tag = 'scoped memory for gnn_encoder_forward.5']
    %12 = vsyncpa [#allocation3], 0
    %13 = vsyncpa [#allocation5], 0
    // Predicated region
    $region2: #{gnn_encoder_forward.5} parent=1 // pred_check
      _
    $region3: #{gnn_encoder_forward.5} parent=1 // pred_check_branch
      %15 = sbr.rel (0) target = $region5
    $region4: #{gnn_encoder_forward.5} parent=1 // pred_region
      %s17 = ssub.s32 4096, 4096
      %18 = vsyncadd [#allocation3], %s17
      %s19 = sshll.u32 [#allocation2], 4
      %s20 = int_to_ptr.vmem [resolvable:$true] %s19
      %25 = dma.hbm_to_vmem [thread:$0]  %s0, 4096, %s20, [#allocation3], 128, 128, 8
    $region5: #{gnn_encoder_forward.5} parent=1 // pred_fallthru
      _
    // Predicated region
    $region6: #{gnn_encoder_forward.5} parent=1 // pred_check
      _
    $region7: #{gnn_encoder_forward.5} parent=1 // pred_check_branch
      %27 = sbr.rel (0) target = $region9
    $region8: #{gnn_encoder_forward.5} parent=1 // pred_region
      _
    $region9: #{gnn_encoder_forward.5} parent=1 // pred_fallthru
      _
    // Predicated region
    $region10: #{gnn_encoder_forward.5} parent=1 // pred_check
      _
    $region11: #{gnn_encoder_forward.5} parent=1 // pred_check_branch
      %29 = sbr.rel (0) target = $region13
    $region12: #{gnn_encoder_forward.5} parent=1 // pred_region
      _
    $region13: #{gnn_encoder_forward.5} parent=1 // pred_fallthru
      _
    // Predicated region
    $region14: #{gnn_encoder_forward.5} parent=1 // pred_check
      _
    $region15: #{gnn_encoder_forward.5} parent=1 // pred_check_branch
      %31 = sbr.rel (0) target = $region17
    $region16: #{gnn_encoder_forward.5} parent=1 // pred_region
      %s33 = ssub.s32 1024, 1024
      %34 = vsyncadd [#allocation5], %s33
      %s35 = sshll.u32 [#allocation4], 4
      %s36 = int_to_ptr.vmem [resolvable:$true] %s35
      %41 = dma.hbm_to_vmem [thread:$0]  %s3, 1024, %s36, [#allocation5], 64, 64, 4
    $region17: #{gnn_encoder_forward.5} parent=1 // pred_fallthru
      _
    // Predicated region
    $region18: #{gnn_encoder_forward.5} parent=1 // pred_check
      _
    $region19: #{gnn_encoder_forward.5} parent=1 // pred_check_branch
      %43 = sbr.rel (0) target = $region21
    $region20: #{gnn_encoder_forward.5} parent=1 // pred_region
      _
    $region21: #{gnn_encoder_forward.5} parent=1 // pred_fallthru
      _
    // Predicated region
    $region22: #{gnn_encoder_forward.5} parent=1 // pred_check
      _
    $region23: #{gnn_encoder_forward.5} parent=1 // pred_check_branch
      %45 = sbr.rel (0) target = $region25
    $region24: #{gnn_encoder_forward.5} parent=1 // pred_region
      %46 = dma.done [#allocation3], 4096
    $region25: #{gnn_encoder_forward.5} parent=1 // pred_fallthru
      _
    // Predicated region
    $region26: #{gnn_encoder_forward.5} parent=1 // pred_check
      _
    $region27: #{gnn_encoder_forward.5} parent=1 // pred_check_branch
      %48 = sbr.rel (0) target = $region29
    $region28: #{gnn_encoder_forward.5} parent=1 // pred_region
      %49 = dma.done [#allocation5], 1024
    $region29: #{gnn_encoder_forward.5} parent=1 // pred_fallthru
      _
    %v51 = vld [vmem:[#allocation2] sm:$0xff]
    %v52 = vld [vmem:[#allocation2 + $0x8] sm:$0xff]
    %v53 = vld [vmem:[#allocation2 + $0x10] sm:$0xff]
    %v54 = vld [vmem:[#allocation2 + $0x18] sm:$0xff]
    %v55 = vld [vmem:[#allocation2 + $0x20] sm:$0xff]
    %v56 = vld [vmem:[#allocation2 + $0x28] sm:$0xff]
    %v57 = vld [vmem:[#allocation2 + $0x30] sm:$0xff]
    %v58 = vld [vmem:[#allocation2 + $0x38] sm:$0xff]
    %v59 = vld [vmem:[#allocation2 + $0x40] sm:$0xff]
    %v60 = vld [vmem:[#allocation2 + $0x48] sm:$0xff]
    %v61 = vld [vmem:[#allocation2 + $0x50] sm:$0xff]
    %v62 = vld [vmem:[#allocation2 + $0x58] sm:$0xff]
    %v63 = vld [vmem:[#allocation2 + $0x60] sm:$0xff]
    %v64 = vld [vmem:[#allocation2 + $0x68] sm:$0xff]
    %v65 = vld [vmem:[#allocation2 + $0x70] sm:$0xff]
    %v66 = vld [vmem:[#allocation2 + $0x78] sm:$0xff]
    %v67 = vld [vmem:[#allocation2 + $0x80] sm:$0xff]
    %v68 = vld [vmem:[#allocation2 + $0x88] sm:$0xff]
    %v69 = vld [vmem:[#allocation2 + $0x90] sm:$0xff]
    %v70 = vld [vmem:[#allocation2 + $0x98] sm:$0xff]
    %v71 = vld [vmem:[#allocation2 + $0xa0] sm:$0xff]
    %v72 = vld [vmem:[#allocation2 + $0xa8] sm:$0xff]
    %v73 = vld [vmem:[#allocation2 + $0xb0] sm:$0xff]
    %v74 = vld [vmem:[#allocation2 + $0xb8] sm:$0xff]
    %v75 = vld [vmem:[#allocation2 + $0xc0] sm:$0xff]
    %v76 = vld [vmem:[#allocation2 + $0xc8] sm:$0xff]
    %v77 = vld [vmem:[#allocation2 + $0xd0] sm:$0xff]
    %v78 = vld [vmem:[#allocation2 + $0xd8] sm:$0xff]
    %v79 = vld [vmem:[#allocation2 + $0xe0] sm:$0xff]
    %v80 = vld [vmem:[#allocation2 + $0xe8] sm:$0xff]
    %v81 = vld [vmem:[#allocation2 + $0xf0] sm:$0xff]
    %v82 = vld [vmem:[#allocation2 + $0xf8] sm:$0xff]
    %v83 = vpack.c.bf16 %v52, %v51
    %v84 = vpack.c.bf16 %v54, %v53
    %v85 = vpack.c.bf16 %v56, %v55
    %v86 = vpack.c.bf16 %v58, %v57
    %v87 = vpack.c.bf16 %v60, %v59
    %v88 = vpack.c.bf16 %v62, %v61
    %v89 = vpack.c.bf16 %v64, %v63
    %v90 = vpack.c.bf16 %v66, %v65
    %v91 = vpack.c.bf16 %v68, %v67
    %v92 = vpack.c.bf16 %v70, %v69
    %v93 = vpack.c.bf16 %v72, %v71
    %v94 = vpack.c.bf16 %v74, %v73
    %v95 = vpack.c.bf16 %v76, %v75
    %v96 = vpack.c.bf16 %v78, %v77
    %v97 = vpack.c.bf16 %v80, %v79
    %v98 = vpack.c.bf16 %v82, %v81
    %v99 = vld [vmem:[%s1] sm:$0xf]
    %v100 = vld [vmem:[%s1 + $0x4] sm:$0xf]
    %v101 = vld [vmem:[%s1 + $0x8] sm:$0xf]
    %v102 = vld [vmem:[%s1 + $0xc] sm:$0xf]
    %v103 = vld [vmem:[%s1 + $0x10] sm:$0xf]
    %v104 = vld [vmem:[%s1 + $0x14] sm:$0xf]
    %v105 = vld [vmem:[%s1 + $0x18] sm:$0xf]
    %v106 = vld [vmem:[%s1 + $0x1c] sm:$0xf]
    %v107 = vld [vmem:[%s1 + $0x20] sm:$0xf]
    %v108 = vld [vmem:[%s1 + $0x24] sm:$0xf]
    %v109 = vld [vmem:[%s1 + $0x28] sm:$0xf]
    %v110 = vld [vmem:[%s1 + $0x2c] sm:$0xf]
    %v111 = vld [vmem:[%s1 + $0x30] sm:$0xf]
    %v112 = vld [vmem:[%s1 + $0x34] sm:$0xf]
    %v113 = vld [vmem:[%s1 + $0x38] sm:$0xf]
    %v114 = vld [vmem:[%s1 + $0x3c] sm:$0xf]
    %v115 = vld [vmem:[%s2] sm:$0x1]
    %v117 = vlaneseq
    %v118 = vshrl.u32 %v117, 7
    %v119 = vsub.s32 0, %v118
    %v120 = vrot.slane %v115, %v119
    %v138 = vunpack.c.l.b16 %v99
    %v139 = vunpack.c.l.b16 %v100
    %v140 = vunpack.c.l.b16 %v101
    %v141 = vunpack.c.l.b16 %v102
    %v142 = vunpack.c.l.b16 %v103
    %v143 = vunpack.c.l.b16 %v104
    %v144 = vunpack.c.l.b16 %v105
    %v145 = vunpack.c.l.b16 %v106
    %v146 = vunpack.c.l.b16 %v107
    %v147 = vunpack.c.l.b16 %v108
    %v148 = vunpack.c.l.b16 %v109
    %v149 = vunpack.c.l.b16 %v110
    %v150 = vunpack.c.l.b16 %v111
    %v151 = vunpack.c.l.b16 %v112
    %v152 = vunpack.c.l.b16 %v113
    %v153 = vunpack.c.l.b16 %v114
    %v154 = vpack.c.b16 %v139, %v138
    %v155 = vpack.c.b16 %v141, %v140
    %v156 = vpack.c.b16 %v143, %v142
    %v157 = vpack.c.b16 %v145, %v144
    %v158 = vpack.c.b16 %v147, %v146
    %v159 = vpack.c.b16 %v149, %v148
    %v160 = vpack.c.b16 %v151, %v150
    %v161 = vpack.c.b16 %v153, %v152
    %170 = vmatprep.subr.bf16.mxu0 0
    %171 = vmatpush1.bf16.msra.mxu0 %v154
    %172 = vmatprep.subr.bf16.mxu0 0
    %173 = vmatpush1.bf16.msra.mxu0 %v155
    %174 = vmatprep.subr.bf16.mxu0 0
    %175 = vmatpush1.bf16.msra.mxu0 %v156
    %176 = vmatprep.subr.bf16.mxu0 0
    %177 = vmatpush1.bf16.msra.mxu0 %v157
    %178 = vmatprep.subr.bf16.mxu0 0
    %179 = vmatpush1.bf16.msra.mxu0 %v158
    %180 = vmatprep.subr.bf16.mxu0 0
    %181 = vmatpush1.bf16.msra.mxu0 %v159
    %182 = vmatprep.subr.bf16.mxu0 0
    %183 = vmatpush1.bf16.msra.mxu0 %v160
    %184 = vmatprep.subr.bf16.mxu0 0
    %185 = vmatpush1.bf16.msra.mxu0 %v161
    %186 = vmatprep.subr.bf16.mxu0 0
    %187 = vmatpush1.bf16.msra.mxu0 0
    %188 = vmatprep.subr.bf16.mxu0 0
    %189 = vmatpush1.bf16.msra.mxu0 0
    %190 = vmatprep.subr.bf16.mxu0 0
    %191 = vmatpush1.bf16.msra.mxu0 0
    %192 = vmatprep.subr.bf16.mxu0 0
    %193 = vmatpush1.bf16.msra.mxu0 0
    %194 = vmatprep.subr.bf16.mxu0 0
    %195 = vmatpush1.bf16.msra.mxu0 0
    %196 = vmatprep.subr.bf16.mxu0 0
    %197 = vmatpush1.bf16.msra.mxu0 0
    %198 = vmatprep.subr.bf16.mxu0 0
    %199 = vmatpush1.bf16.msra.mxu0 0
    %200 = vmatprep.subr.bf16.mxu0 0
    %201 = vmatpush1.bf16.msra.mxu0 0
    %202 = vmatprep.mubr.bf16.mxu0 0
    %203 = vmatmul.mubr.bf16.gmra.mrb[0].mxu0 %v83
    %v204 = vpop.f32.mrb[0].mxu0
    %v205 = vadd.f32 %v120, %v204
    %v206 = vpop.f32.mrb[0].mxu0
    %v207 = vpop.f32.mrb[0].mxu0
    %v208 = vadd.f32 %v120, %v207
    %v209 = vpop.f32.mrb[0].mxu0
    %210 = vmatprep.mubr.bf16.mxu0 0
    %211 = vmatmul.mubr.bf16.gmra.mrb[0].mxu0 %v84
    %v212 = vpop.f32.mrb[0].mxu0
    %v213 = vadd.f32 %v120, %v212
    %v214 = vpop.f32.mrb[0].mxu0
    %v215 = vpop.f32.mrb[0].mxu0
    %v216 = vadd.f32 %v120, %v215
    %v217 = vpop.f32.mrb[0].mxu0
    %218 = vmatprep.mubr.bf16.mxu0 0
    %219 = vmatmul.mubr.bf16.gmra.mrb[0].mxu0 %v85
    %v220 = vpop.f32.mrb[0].mxu0
    %v221 = vadd.f32 %v120, %v220
    %v222 = vpop.f32.mrb[0].mxu0
    %v223 = vpop.f32.mrb[0].mxu0
    %v224 = vadd.f32 %v120, %v223
    %v225 = vpop.f32.mrb[0].mxu0
    %226 = vmatprep.mubr.bf16.mxu0 0
    %227 = vmatmul.mubr.bf16.gmra.mrb[0].mxu0 %v86
    %v228 = vpop.f32.mrb[0].mxu0
    %v229 = vadd.f32 %v120, %v228
    %v230 = vpop.f32.mrb[0].mxu0
    %v231 = vpop.f32.mrb[0].mxu0
    %v232 = vadd.f32 %v120, %v231
    %v233 = vpop.f32.mrb[0].mxu0
    %234 = vmatprep.mubr.bf16.mxu0 0
    %235 = vmatmul.mubr.bf16.gmra.mrb[0].mxu0 %v87
    %v236 = vpop.f32.mrb[0].mxu0
    %v237 = vadd.f32 %v120, %v236
    %v238 = vpop.f32.mrb[0].mxu0
    %v239 = vpop.f32.mrb[0].mxu0
    %v240 = vadd.f32 %v120, %v239
    %v241 = vpop.f32.mrb[0].mxu0
    %242 = vmatprep.mubr.bf16.mxu0 0
    %243 = vmatmul.mubr.bf16.gmra.mrb[0].mxu0 %v88
    %v244 = vpop.f32.mrb[0].mxu0
    %v245 = vadd.f32 %v120, %v244
    %v246 = vpop.f32.mrb[0].mxu0
    %v247 = vpop.f32.mrb[0].mxu0
    %v248 = vadd.f32 %v120, %v247
    %v249 = vpop.f32.mrb[0].mxu0
    %250 = vmatprep.mubr.bf16.mxu0 0
    %251 = vmatmul.mubr.bf16.gmra.mrb[0].mxu0 %v89
    %v252 = vpop.f32.mrb[0].mxu0
    %v253 = vadd.f32 %v120, %v252
    %v254 = vpop.f32.mrb[0].mxu0
    %v255 = vpop.f32.mrb[0].mxu0
    %v256 = vadd.f32 %v120, %v255
    %v257 = vpop.f32.mrb[0].mxu0
    %258 = vmatprep.mubr.bf16.mxu0 0
    %259 = vmatmul.mubr.bf16.gmra.mrb[0].mxu0 %v90
    %v260 = vpop.f32.mrb[0].mxu0
    %v261 = vadd.f32 %v120, %v260
    %v262 = vpop.f32.mrb[0].mxu0
    %v263 = vpop.f32.mrb[0].mxu0
    %v264 = vadd.f32 %v120, %v263
    %v265 = vpop.f32.mrb[0].mxu0
    %266 = vmatprep.mubr.bf16.mxu0 0
    %267 = vmatmul.mubr.bf16.gmra.mrb[0].mxu0 %v91
    %v268 = vpop.f32.mrb[0].mxu0
    %v269 = vadd.f32 %v120, %v268
    %v270 = vpop.f32.mrb[0].mxu0
    %v271 = vpop.f32.mrb[0].mxu0
    %v272 = vadd.f32 %v120, %v271
    %v273 = vpop.f32.mrb[0].mxu0
    %274 = vmatprep.mubr.bf16.mxu0 0
    %275 = vmatmul.mubr.bf16.gmra.mrb[0].mxu0 %v92
    %v276 = vpop.f32.mrb[0].mxu0
    %v277 = vadd.f32 %v120, %v276
    %v278 = vpop.f32.mrb[0].mxu0
    %v279 = vpop.f32.mrb[0].mxu0
    %v280 = vadd.f32 %v120, %v279
    %v281 = vpop.f32.mrb[0].mxu0
    %282 = vmatprep.mubr.bf16.mxu0 0
    %283 = vmatmul.mubr.bf16.gmra.mrb[0].mxu0 %v93
    %v284 = vpop.f32.mrb[0].mxu0
    %v285 = vadd.f32 %v120, %v284
    %v286 = vpop.f32.mrb[0].mxu0
    %v287 = vpop.f32.mrb[0].mxu0
    %v288 = vadd.f32 %v120, %v287
    %v289 = vpop.f32.mrb[0].mxu0
    %290 = vmatprep.mubr.bf16.mxu0 0
    %291 = vmatmul.mubr.bf16.gmra.mrb[0].mxu0 %v94
    %v292 = vpop.f32.mrb[0].mxu0
    %v293 = vadd.f32 %v120, %v292
    %v294 = vpop.f32.mrb[0].mxu0
    %v295 = vpop.f32.mrb[0].mxu0
    %v296 = vadd.f32 %v120, %v295
    %v297 = vpop.f32.mrb[0].mxu0
    %298 = vmatprep.mubr.bf16.mxu0 0
    %299 = vmatmul.mubr.bf16.gmra.mrb[0].mxu0 %v95
    %v300 = vpop.f32.mrb[0].mxu0
    %v301 = vadd.f32 %v120, %v300
    %v302 = vpop.f32.mrb[0].mxu0
    %v303 = vpop.f32.mrb[0].mxu0
    %v304 = vadd.f32 %v120, %v303
    %v305 = vpop.f32.mrb[0].mxu0
    %306 = vmatprep.mubr.bf16.mxu0 0
    %307 = vmatmul.mubr.bf16.gmra.mrb[0].mxu0 %v96
    %v308 = vpop.f32.mrb[0].mxu0
    %v309 = vadd.f32 %v120, %v308
    %v310 = vpop.f32.mrb[0].mxu0
    %v311 = vpop.f32.mrb[0].mxu0
    %v312 = vadd.f32 %v120, %v311
    %v313 = vpop.f32.mrb[0].mxu0
    %314 = vmatprep.mubr.bf16.mxu0 0
    %315 = vmatmul.mubr.bf16.gmra.mrb[0].mxu0 %v97
    %v316 = vpop.f32.mrb[0].mxu0
    %v317 = vadd.f32 %v120, %v316
    %v318 = vpop.f32.mrb[0].mxu0
    %v319 = vpop.f32.mrb[0].mxu0
    %v320 = vadd.f32 %v120, %v319
    %v321 = vpop.f32.mrb[0].mxu0
    %322 = vmatprep.mubr.bf16.mxu0 0
    %323 = vmatmul.mubr.bf16.gmra.mrb[0].mxu0 %v98
    %v324 = vpop.f32.mrb[0].mxu0
    %v325 = vadd.f32 %v120, %v324
    %v326 = vpop.f32.mrb[0].mxu0
    %v327 = vpop.f32.mrb[0].mxu0
    %v328 = vadd.f32 %v120, %v327
    %v329 = vpop.f32.mrb[0].mxu0
    %330 = vdwg.mxu0
    %v331 = vmax.f32 %v205, 0.0
    %v332 = vmax.f32 %v208, 0.0
    %v333 = vmax.f32 %v213, 0.0
    %v334 = vmax.f32 %v216, 0.0
    %v335 = vmax.f32 %v221, 0.0
    %v336 = vmax.f32 %v224, 0.0
    %v337 = vmax.f32 %v229, 0.0
    %v338 = vmax.f32 %v232, 0.0
    %v339 = vmax.f32 %v237, 0.0
    %v340 = vmax.f32 %v240, 0.0
    %v341 = vmax.f32 %v245, 0.0
    %v342 = vmax.f32 %v248, 0.0
    %v343 = vmax.f32 %v253, 0.0
    %v344 = vmax.f32 %v256, 0.0
    %v345 = vmax.f32 %v261, 0.0
    %v346 = vmax.f32 %v264, 0.0
    %v347 = vmax.f32 %v269, 0.0
    %v348 = vmax.f32 %v272, 0.0
    %v349 = vmax.f32 %v277, 0.0
    %v350 = vmax.f32 %v280, 0.0
    %v351 = vmax.f32 %v285, 0.0
    %v352 = vmax.f32 %v288, 0.0
    %v353 = vmax.f32 %v293, 0.0
    %v354 = vmax.f32 %v296, 0.0
    %v355 = vmax.f32 %v301, 0.0
    %v356 = vmax.f32 %v304, 0.0
    %v357 = vmax.f32 %v309, 0.0
    %v358 = vmax.f32 %v312, 0.0
    %v359 = vmax.f32 %v317, 0.0
    %v360 = vmax.f32 %v320, 0.0
    %v361 = vmax.f32 %v325, 0.0
    %v362 = vmax.f32 %v328, 0.0
    %v363 = vpack.c.bf16 %v332, %v331
    %v364 = vpack.c.bf16 %v334, %v333
    %v365 = vpack.c.bf16 %v336, %v335
    %v366 = vpack.c.bf16 %v338, %v337
    %v367 = vpack.c.bf16 %v340, %v339
    %v368 = vpack.c.bf16 %v342, %v341
    %v369 = vpack.c.bf16 %v344, %v343
    %v370 = vpack.c.bf16 %v346, %v345
    %v371 = vpack.c.bf16 %v348, %v347
    %v372 = vpack.c.bf16 %v350, %v349
    %v373 = vpack.c.bf16 %v352, %v351
    %v374 = vpack.c.bf16 %v354, %v353
    %v375 = vpack.c.bf16 %v356, %v355
    %v376 = vpack.c.bf16 %v358, %v357
    %v377 = vpack.c.bf16 %v360, %v359
    %v378 = vpack.c.bf16 %v362, %v361
    %v379 = vld [vmem:[#allocation4] sm:$0xf]
    %v380 = vld [vmem:[#allocation4 + $0x4] sm:$0xf]
    %v381 = vld [vmem:[#allocation4 + $0x8] sm:$0xf]
    %v382 = vld [vmem:[#allocation4 + $0xc] sm:$0xf]
    %v383 = vld [vmem:[#allocation4 + $0x10] sm:$0xf]
    %v384 = vld [vmem:[#allocation4 + $0x14] sm:$0xf]
    %v385 = vld [vmem:[#allocation4 + $0x18] sm:$0xf]
    %v386 = vld [vmem:[#allocation4 + $0x1c] sm:$0xf]
    %v387 = vld [vmem:[#allocation4 + $0x20] sm:$0xf]
    %v388 = vld [vmem:[#allocation4 + $0x24] sm:$0xf]
    %v389 = vld [vmem:[#allocation4 + $0x28] sm:$0xf]
    %v390 = vld [vmem:[#allocation4 + $0x2c] sm:$0xf]
    %v391 = vld [vmem:[#allocation4 + $0x30] sm:$0xf]
    %v392 = vld [vmem:[#allocation4 + $0x34] sm:$0xf]
    %v393 = vld [vmem:[#allocation4 + $0x38] sm:$0xf]
    %v394 = vld [vmem:[#allocation4 + $0x3c] sm:$0xf]
    %v411 = vunpack.c.l.b16 %v379
    %v412 = vunpack.c.l.b16 %v380
    %v413 = vunpack.c.l.b16 %v381
    %v414 = vunpack.c.l.b16 %v382
    %v415 = vunpack.c.l.b16 %v383
    %v416 = vunpack.c.l.b16 %v384
    %v417 = vunpack.c.l.b16 %v385
    %v418 = vunpack.c.l.b16 %v386
    %v419 = vunpack.c.l.b16 %v387
    %v420 = vunpack.c.l.b16 %v388
    %v421 = vunpack.c.l.b16 %v389
    %v422 = vunpack.c.l.b16 %v390
    %v423 = vunpack.c.l.b16 %v391
    %v424 = vunpack.c.l.b16 %v392
    %v425 = vunpack.c.l.b16 %v393
    %v426 = vunpack.c.l.b16 %v394
    %v427 = vpack.c.b16 %v412, %v411
    %v428 = vpack.c.b16 %v414, %v413
    %v429 = vpack.c.b16 %v416, %v415
    %v430 = vpack.c.b16 %v418, %v417
    %v431 = vpack.c.b16 %v420, %v419
    %v432 = vpack.c.b16 %v422, %v421
    %v433 = vpack.c.b16 %v424, %v423
    %v434 = vpack.c.b16 %v426, %v425
    %443 = vmatprep.subr.bf16.mxu0 0
    %444 = vmatpush1.bf16.msra.mxu0 %v427
    %445 = vmatprep.subr.bf16.mxu0 0
    %446 = vmatpush1.bf16.msra.mxu0 %v428
    %447 = vmatprep.subr.bf16.mxu0 0
    %448 = vmatpush1.bf16.msra.mxu0 %v429
    %449 = vmatprep.subr.bf16.mxu0 0
    %450 = vmatpush1.bf16.msra.mxu0 %v430
    %451 = vmatprep.subr.bf16.mxu0 0
    %452 = vmatpush1.bf16.msra.mxu0 %v431
    %453 = vmatprep.subr.bf16.mxu0 0
    %454 = vmatpush1.bf16.msra.mxu0 %v432
    %455 = vmatprep.subr.bf16.mxu0 0
    %456 = vmatpush1.bf16.msra.mxu0 %v433
    %457 = vmatprep.subr.bf16.mxu0 0
    %458 = vmatpush1.bf16.msra.mxu0 %v434
    %459 = vmatprep.subr.bf16.mxu0 0
    %460 = vmatpush1.bf16.msra.mxu0 0
    %461 = vmatprep.subr.bf16.mxu0 0
    %462 = vmatpush1.bf16.msra.mxu0 0
    %463 = vmatprep.subr.bf16.mxu0 0
    %464 = vmatpush1.bf16.msra.mxu0 0
    %465 = vmatprep.subr.bf16.mxu0 0
    %466 = vmatpush1.bf16.msra.mxu0 0
    %467 = vmatprep.subr.bf16.mxu0 0
    %468 = vmatpush1.bf16.msra.mxu0 0
    %469 = vmatprep.subr.bf16.mxu0 0
    %470 = vmatpush1.bf16.msra.mxu0 0
    %471 = vmatprep.subr.bf16.mxu0 0
    %472 = vmatpush1.bf16.msra.mxu0 0
    %473 = vmatprep.subr.bf16.mxu0 0
    %474 = vmatpush1.bf16.msra.mxu0 0
    %475 = vmatprep.mubr.bf16.mxu0 0
    %476 = vmatmul.mubr.bf16.gmra.mrb[0].mxu0 %v363
    %v477 = vpop.f32.mrb[0].mxu0
    %v478 = vadd.f32 0.0, %v477
    %v479 = vpop.f32.mrb[0].mxu0
    %v480 = vpop.f32.mrb[0].mxu0
    %v481 = vadd.f32 0.0, %v480
    %v482 = vpop.f32.mrb[0].mxu0
    %483 = vmatprep.mubr.bf16.mxu0 0
    %484 = vmatmul.mubr.bf16.gmra.mrb[0].mxu0 %v364
    %v485 = vpop.f32.mrb[0].mxu0
    %v486 = vadd.f32 0.0, %v485
    %v487 = vpop.f32.mrb[0].mxu0
    %v488 = vpop.f32.mrb[0].mxu0
    %v489 = vadd.f32 0.0, %v488
    %v490 = vpop.f32.mrb[0].mxu0
    %491 = vmatprep.mubr.bf16.mxu0 0
    %492 = vmatmul.mubr.bf16.gmra.mrb[0].mxu0 %v365
    %v493 = vpop.f32.mrb[0].mxu0
    %v494 = vadd.f32 0.0, %v493
    %v495 = vpop.f32.mrb[0].mxu0
    %v496 = vpop.f32.mrb[0].mxu0
    %v497 = vadd.f32 0.0, %v496
    %v498 = vpop.f32.mrb[0].mxu0
    %499 = vmatprep.mubr.bf16.mxu0 0
    %500 = vmatmul.mubr.bf16.gmra.mrb[0].mxu0 %v366
    %v501 = vpop.f32.mrb[0].mxu0
    %v502 = vadd.f32 0.0, %v501
    %v503 = vpop.f32.mrb[0].mxu0
    %v504 = vpop.f32.mrb[0].mxu0
    %v505 = vadd.f32 0.0, %v504
    %v506 = vpop.f32.mrb[0].mxu0
    %507 = vmatprep.mubr.bf16.mxu0 0
    %508 = vmatmul.mubr.bf16.gmra.mrb[0].mxu0 %v367
    %v509 = vpop.f32.mrb[0].mxu0
    %v510 = vadd.f32 0.0, %v509
    %v511 = vpop.f32.mrb[0].mxu0
    %v512 = vpop.f32.mrb[0].mxu0
    %v513 = vadd.f32 0.0, %v512
    %v514 = vpop.f32.mrb[0].mxu0
    %515 = vmatprep.mubr.bf16.mxu0 0
    %516 = vmatmul.mubr.bf16.gmra.mrb[0].mxu0 %v368
    %v517 = vpop.f32.mrb[0].mxu0
    %v518 = vadd.f32 0.0, %v517
    %v519 = vpop.f32.mrb[0].mxu0
    %v520 = vpop.f32.mrb[0].mxu0
    %v521 = vadd.f32 0.0, %v520
    %v522 = vpop.f32.mrb[0].mxu0
    %523 = vmatprep.mubr.bf16.mxu0 0
    %524 = vmatmul.mubr.bf16.gmra.mrb[0].mxu0 %v369
    %v525 = vpop.f32.mrb[0].mxu0
    %v526 = vadd.f32 0.0, %v525
    %v527 = vpop.f32.mrb[0].mxu0
    %v528 = vpop.f32.mrb[0].mxu0
    %v529 = vadd.f32 0.0, %v528
    %v530 = vpop.f32.mrb[0].mxu0
    %531 = vmatprep.mubr.bf16.mxu0 0
    %532 = vmatmul.mubr.bf16.gmra.mrb[0].mxu0 %v370
    %v533 = vpop.f32.mrb[0].mxu0
    %v534 = vadd.f32 0.0, %v533
    %v535 = vpop.f32.mrb[0].mxu0
    %v536 = vpop.f32.mrb[0].mxu0
    %v537 = vadd.f32 0.0, %v536
    %v538 = vpop.f32.mrb[0].mxu0
    %539 = vmatprep.mubr.bf16.mxu0 0
    %540 = vmatmul.mubr.bf16.gmra.mrb[0].mxu0 %v371
    %v541 = vpop.f32.mrb[0].mxu0
    %v542 = vadd.f32 0.0, %v541
    %v543 = vpop.f32.mrb[0].mxu0
    %v544 = vpop.f32.mrb[0].mxu0
    %v545 = vadd.f32 0.0, %v544
    %v546 = vpop.f32.mrb[0].mxu0
    %547 = vmatprep.mubr.bf16.mxu0 0
    %548 = vmatmul.mubr.bf16.gmra.mrb[0].mxu0 %v372
    %v549 = vpop.f32.mrb[0].mxu0
    %v550 = vadd.f32 0.0, %v549
    %v551 = vpop.f32.mrb[0].mxu0
    %v552 = vpop.f32.mrb[0].mxu0
    %v553 = vadd.f32 0.0, %v552
    %v554 = vpop.f32.mrb[0].mxu0
    %555 = vmatprep.mubr.bf16.mxu0 0
    %556 = vmatmul.mubr.bf16.gmra.mrb[0].mxu0 %v373
    %v557 = vpop.f32.mrb[0].mxu0
    %v558 = vadd.f32 0.0, %v557
    %v559 = vpop.f32.mrb[0].mxu0
    %v560 = vpop.f32.mrb[0].mxu0
    %v561 = vadd.f32 0.0, %v560
    %v562 = vpop.f32.mrb[0].mxu0
    %563 = vmatprep.mubr.bf16.mxu0 0
    %564 = vmatmul.mubr.bf16.gmra.mrb[0].mxu0 %v374
    %v565 = vpop.f32.mrb[0].mxu0
    %v566 = vadd.f32 0.0, %v565
    %v567 = vpop.f32.mrb[0].mxu0
    %v568 = vpop.f32.mrb[0].mxu0
    %v569 = vadd.f32 0.0, %v568
    %v570 = vpop.f32.mrb[0].mxu0
    %571 = vmatprep.mubr.bf16.mxu0 0
    %572 = vmatmul.mubr.bf16.gmra.mrb[0].mxu0 %v375
    %v573 = vpop.f32.mrb[0].mxu0
    %v574 = vadd.f32 0.0, %v573
    %v575 = vpop.f32.mrb[0].mxu0
    %v576 = vpop.f32.mrb[0].mxu0
    %v577 = vadd.f32 0.0, %v576
    %v578 = vpop.f32.mrb[0].mxu0
    %579 = vmatprep.mubr.bf16.mxu0 0
    %580 = vmatmul.mubr.bf16.gmra.mrb[0].mxu0 %v376
    %v581 = vpop.f32.mrb[0].mxu0
    %v582 = vadd.f32 0.0, %v581
    %v583 = vpop.f32.mrb[0].mxu0
    %v584 = vpop.f32.mrb[0].mxu0
    %v585 = vadd.f32 0.0, %v584
    %v586 = vpop.f32.mrb[0].mxu0
    %587 = vmatprep.mubr.bf16.mxu0 0
    %588 = vmatmul.mubr.bf16.gmra.mrb[0].mxu0 %v377
    %v589 = vpop.f32.mrb[0].mxu0
    %v590 = vadd.f32 0.0, %v589
    %v591 = vpop.f32.mrb[0].mxu0
    %v592 = vpop.f32.mrb[0].mxu0
    %v593 = vadd.f32 0.0, %v592
    %v594 = vpop.f32.mrb[0].mxu0
    %595 = vmatprep.mubr.bf16.mxu0 0
    %596 = vmatmul.mubr.bf16.gmra.mrb[0].mxu0 %v378
    %v597 = vpop.f32.mrb[0].mxu0
    %v598 = vadd.f32 0.0, %v597
    %v599 = vpop.f32.mrb[0].mxu0
    %v600 = vpop.f32.mrb[0].mxu0
    %v601 = vadd.f32 0.0, %v600
    %v602 = vpop.f32.mrb[0].mxu0
    %603 = vdwg.mxu0
    %v604 = vpack.c.bf16 %v481, %v478
    %v605 = vpack.c.bf16 %v489, %v486
    %v606 = vpack.c.bf16 %v497, %v494
    %v607 = vpack.c.bf16 %v505, %v502
    %v608 = vpack.c.bf16 %v513, %v510
    %v609 = vpack.c.bf16 %v521, %v518
    %v610 = vpack.c.bf16 %v529, %v526
    %v611 = vpack.c.bf16 %v537, %v534
    %v612 = vpack.c.bf16 %v545, %v542
    %v613 = vpack.c.bf16 %v553, %v550
    %v614 = vpack.c.bf16 %v561, %v558
    %v615 = vpack.c.bf16 %v569, %v566
    %v616 = vpack.c.bf16 %v577, %v574
    %v617 = vpack.c.bf16 %v585, %v582
    %v618 = vpack.c.bf16 %v593, %v590
    %v619 = vpack.c.bf16 %v601, %v598
    %v636 = vunpack.c.l.b16 %v604
    %v637 = vunpack.c.h.b16 %v604
    %v638 = vunpack.c.l.b16 %v605
    %v639 = vunpack.c.h.b16 %v605
    %v640 = vunpack.c.l.b16 %v606
    %v641 = vunpack.c.h.b16 %v606
    %v642 = vunpack.c.l.b16 %v607
    %v643 = vunpack.c.h.b16 %v607
    %v644 = vunpack.c.l.b16 %v608
    %v645 = vunpack.c.h.b16 %v608
    %v646 = vunpack.c.l.b16 %v609
    %v647 = vunpack.c.h.b16 %v609
    %v648 = vunpack.c.l.b16 %v610
    %v649 = vunpack.c.h.b16 %v610
    %v650 = vunpack.c.l.b16 %v611
    %v651 = vunpack.c.h.b16 %v611
    %v652 = vunpack.c.l.b16 %v612
    %v653 = vunpack.c.h.b16 %v612
    %v654 = vunpack.c.l.b16 %v613
    %v655 = vunpack.c.h.b16 %v613
    %v656 = vunpack.c.l.b16 %v614
    %v657 = vunpack.c.h.b16 %v614
    %v658 = vunpack.c.l.b16 %v615
    %v659 = vunpack.c.h.b16 %v615
    %v660 = vunpack.c.l.b16 %v616
    %v661 = vunpack.c.h.b16 %v616
    %v662 = vunpack.c.l.b16 %v617
    %v663 = vunpack.c.h.b16 %v617
    %v664 = vunpack.c.l.b16 %v618
    %v665 = vunpack.c.h.b16 %v618
    %v666 = vunpack.c.l.b16 %v619
    %v667 = vunpack.c.h.b16 %v619
    %v668 = vpack.c.b16 %v636, %v636
    %v669 = vpack.c.b16 %v637, %v637
    %v670 = vpack.c.b16 %v638, %v638
    %v671 = vpack.c.b16 %v639, %v639
    %v672 = vpack.c.b16 %v640, %v640
    %v673 = vpack.c.b16 %v641, %v641
    %v674 = vpack.c.b16 %v642, %v642
    %v675 = vpack.c.b16 %v643, %v643
    %v676 = vpack.c.b16 %v644, %v644
    %v677 = vpack.c.b16 %v645, %v645
    %v678 = vpack.c.b16 %v646, %v646
    %v679 = vpack.c.b16 %v647, %v647
    %v680 = vpack.c.b16 %v648, %v648
    %v681 = vpack.c.b16 %v649, %v649
    %v682 = vpack.c.b16 %v650, %v650
    %v683 = vpack.c.b16 %v651, %v651
    %v684 = vpack.c.b16 %v652, %v652
    %v685 = vpack.c.b16 %v653, %v653
    %v686 = vpack.c.b16 %v654, %v654
    %v687 = vpack.c.b16 %v655, %v655
    %v688 = vpack.c.b16 %v656, %v656
    %v689 = vpack.c.b16 %v657, %v657
    %v690 = vpack.c.b16 %v658, %v658
    %v691 = vpack.c.b16 %v659, %v659
    %v692 = vpack.c.b16 %v660, %v660
    %v693 = vpack.c.b16 %v661, %v661
    %v694 = vpack.c.b16 %v662, %v662
    %v695 = vpack.c.b16 %v663, %v663
    %v696 = vpack.c.b16 %v664, %v664
    %v697 = vpack.c.b16 %v665, %v665
    %v698 = vpack.c.b16 %v666, %v666
    %v699 = vpack.c.b16 %v667, %v667
    %732 = vst [vmem:[%s5] sm:$0xf] %v668
    %733 = vst [vmem:[%s5 + $0x4] sm:$0xf] %v669
    %734 = vst [vmem:[%s5 + $0x8] sm:$0xf] %v670
    %735 = vst [vmem:[%s5 + $0xc] sm:$0xf] %v671
    %736 = vst [vmem:[%s5 + $0x10] sm:$0xf] %v672
    %737 = vst [vmem:[%s5 + $0x14] sm:$0xf] %v673
    %738 = vst [vmem:[%s5 + $0x18] sm:$0xf] %v674
    %739 = vst [vmem:[%s5 + $0x1c] sm:$0xf] %v675
    %740 = vst [vmem:[%s5 + $0x20] sm:$0xf] %v676
    %741 = vst [vmem:[%s5 + $0x24] sm:$0xf] %v677
    %742 = vst [vmem:[%s5 + $0x28] sm:$0xf] %v678
    %743 = vst [vmem:[%s5 + $0x2c] sm:$0xf] %v679
    %744 = vst [vmem:[%s5 + $0x30] sm:$0xf] %v680
    %745 = vst [vmem:[%s5 + $0x34] sm:$0xf] %v681
    %746 = vst [vmem:[%s5 + $0x38] sm:$0xf] %v682
    %747 = vst [vmem:[%s5 + $0x3c] sm:$0xf] %v683
    %748 = vst [vmem:[%s5 + $0x40] sm:$0xf] %v684
    %749 = vst [vmem:[%s5 + $0x44] sm:$0xf] %v685
    %750 = vst [vmem:[%s5 + $0x48] sm:$0xf] %v686
    %751 = vst [vmem:[%s5 + $0x4c] sm:$0xf] %v687
    %752 = vst [vmem:[%s5 + $0x50] sm:$0xf] %v688
    %753 = vst [vmem:[%s5 + $0x54] sm:$0xf] %v689
    %754 = vst [vmem:[%s5 + $0x58] sm:$0xf] %v690
    %755 = vst [vmem:[%s5 + $0x5c] sm:$0xf] %v691
    %756 = vst [vmem:[%s5 + $0x60] sm:$0xf] %v692
    %757 = vst [vmem:[%s5 + $0x64] sm:$0xf] %v693
    %758 = vst [vmem:[%s5 + $0x68] sm:$0xf] %v694
    %759 = vst [vmem:[%s5 + $0x6c] sm:$0xf] %v695
    %760 = vst [vmem:[%s5 + $0x70] sm:$0xf] %v696
    %761 = vst [vmem:[%s5 + $0x74] sm:$0xf] %v697
    %762 = vst [vmem:[%s5 + $0x78] sm:$0xf] %v698
    %763 = vst [vmem:[%s5 + $0x7c] sm:$0xf] %v699
    %v764 = vld [vmem:[%s4] sm:$0xf]
    %v765 = vld [vmem:[%s4 + $0x4] sm:$0xf]
    %v766 = vld [vmem:[%s4 + $0x8] sm:$0xf]
    %v767 = vld [vmem:[%s4 + $0xc] sm:$0xf]
    %v768 = vld [vmem:[%s4 + $0x10] sm:$0xf]
    %v769 = vld [vmem:[%s4 + $0x14] sm:$0xf]
    %v770 = vld [vmem:[%s4 + $0x18] sm:$0xf]
    %v771 = vld [vmem:[%s4 + $0x1c] sm:$0xf]
    %v772 = vld [vmem:[%s4 + $0x20] sm:$0xf]
    %v773 = vld [vmem:[%s4 + $0x24] sm:$0xf]
    %v774 = vld [vmem:[%s4 + $0x28] sm:$0xf]
    %v775 = vld [vmem:[%s4 + $0x2c] sm:$0xf]
    %v776 = vld [vmem:[%s4 + $0x30] sm:$0xf]
    %v777 = vld [vmem:[%s4 + $0x34] sm:$0xf]
    %v778 = vld [vmem:[%s4 + $0x38] sm:$0xf]
    %v779 = vld [vmem:[%s4 + $0x3c] sm:$0xf]
    %v796 = vunpack.c.l.b16 %v764
    %v797 = vunpack.c.l.b16 %v765
    %v798 = vunpack.c.l.b16 %v766
    %v799 = vunpack.c.l.b16 %v767
    %v800 = vunpack.c.l.b16 %v768
    %v801 = vunpack.c.l.b16 %v769
    %v802 = vunpack.c.l.b16 %v770
    %v803 = vunpack.c.l.b16 %v771
    %v804 = vunpack.c.l.b16 %v772
    %v805 = vunpack.c.l.b16 %v773
    %v806 = vunpack.c.l.b16 %v774
    %v807 = vunpack.c.l.b16 %v775
    %v808 = vunpack.c.l.b16 %v776
    %v809 = vunpack.c.l.b16 %v777
    %v810 = vunpack.c.l.b16 %v778
    %v811 = vunpack.c.l.b16 %v779
    %v812 = vpack.c.b16 %v797, %v796
    %v813 = vpack.c.b16 %v799, %v798
    %v814 = vpack.c.b16 %v801, %v800
    %v815 = vpack.c.b16 %v803, %v802
    %v816 = vpack.c.b16 %v805, %v804
    %v817 = vpack.c.b16 %v807, %v806
    %v818 = vpack.c.b16 %v809, %v808
    %v819 = vpack.c.b16 %v811, %v810
    %828 = vmatprep.subr.bf16.mxu0 0
    %829 = vmatpush1.bf16.msra.mxu0 %v812
    %830 = vmatprep.subr.bf16.mxu0 0
    %831 = vmatpush1.bf16.msra.mxu0 %v813
    %832 = vmatprep.subr.bf16.mxu0 0
    %833 = vmatpush1.bf16.msra.mxu0 %v814
    %834 = vmatprep.subr.bf16.mxu0 0
    %835 = vmatpush1.bf16.msra.mxu0 %v815
    %836 = vmatprep.subr.bf16.mxu0 0
    %837 = vmatpush1.bf16.msra.mxu0 %v816
    %838 = vmatprep.subr.bf16.mxu0 0
    %839 = vmatpush1.bf16.msra.mxu0 %v817
    %840 = vmatprep.subr.bf16.mxu0 0
    %841 = vmatpush1.bf16.msra.mxu0 %v818
    %842 = vmatprep.subr.bf16.mxu0 0
    %843 = vmatpush1.bf16.msra.mxu0 %v819
    %844 = vmatprep.subr.bf16.mxu0 0
    %845 = vmatpush1.bf16.msra.mxu0 0
    %846 = vmatprep.subr.bf16.mxu0 0
    %847 = vmatpush1.bf16.msra.mxu0 0
    %848 = vmatprep.subr.bf16.mxu0 0
    %849 = vmatpush1.bf16.msra.mxu0 0
    %850 = vmatprep.subr.bf16.mxu0 0
    %851 = vmatpush1.bf16.msra.mxu0 0
    %852 = vmatprep.subr.bf16.mxu0 0
    %853 = vmatpush1.bf16.msra.mxu0 0
    %854 = vmatprep.subr.bf16.mxu0 0
    %855 = vmatpush1.bf16.msra.mxu0 0
    %856 = vmatprep.subr.bf16.mxu0 0
    %857 = vmatpush1.bf16.msra.mxu0 0
    %858 = vmatprep.subr.bf16.mxu0 0
    %859 = vmatpush1.bf16.msra.mxu0 0
    %860 = vmatprep.mubr.bf16.mxu0 0
    %861 = vmatmul.mubr.bf16.gmra.mrb[0].mxu0 %v604
    %v862 = vpop.f32.mrb[0].mxu0
    %v863 = vadd.f32 0.0, %v862
    %v864 = vpop.f32.mrb[0].mxu0
    %v865 = vpop.f32.mrb[0].mxu0
    %v866 = vadd.f32 0.0, %v865
    %v867 = vpop.f32.mrb[0].mxu0
    %868 = vmatprep.mubr.bf16.mxu0 0
    %869 = vmatmul.mubr.bf16.gmra.mrb[0].mxu0 %v605
    %v870 = vpop.f32.mrb[0].mxu0
    %v871 = vadd.f32 0.0, %v870
    %v872 = vpop.f32.mrb[0].mxu0
    %v873 = vpop.f32.mrb[0].mxu0
    %v874 = vadd.f32 0.0, %v873
    %v875 = vpop.f32.mrb[0].mxu0
    %876 = vmatprep.mubr.bf16.mxu0 0
    %877 = vmatmul.mubr.bf16.gmra.mrb[0].mxu0 %v606
    %v878 = vpop.f32.mrb[0].mxu0
    %v879 = vadd.f32 0.0, %v878
    %v880 = vpop.f32.mrb[0].mxu0
    %v881 = vpop.f32.mrb[0].mxu0
    %v882 = vadd.f32 0.0, %v881
    %v883 = vpop.f32.mrb[0].mxu0
    %884 = vmatprep.mubr.bf16.mxu0 0
    %885 = vmatmul.mubr.bf16.gmra.mrb[0].mxu0 %v607
    %v886 = vpop.f32.mrb[0].mxu0
    %v887 = vadd.f32 0.0, %v886
    %v888 = vpop.f32.mrb[0].mxu0
    %v889 = vpop.f32.mrb[0].mxu0
    %v890 = vadd.f32 0.0, %v889
    %v891 = vpop.f32.mrb[0].mxu0
    %892 = vmatprep.mubr.bf16.mxu0 0
    %893 = vmatmul.mubr.bf16.gmra.mrb[0].mxu0 %v608
    %v894 = vpop.f32.mrb[0].mxu0
    %v895 = vadd.f32 0.0, %v894
    %v896 = vpop.f32.mrb[0].mxu0
    %v897 = vpop.f32.mrb[0].mxu0
    %v898 = vadd.f32 0.0, %v897
    %v899 = vpop.f32.mrb[0].mxu0
    %900 = vmatprep.mubr.bf16.mxu0 0
    %901 = vmatmul.mubr.bf16.gmra.mrb[0].mxu0 %v609
    %v902 = vpop.f32.mrb[0].mxu0
    %v903 = vadd.f32 0.0, %v902
    %v904 = vpop.f32.mrb[0].mxu0
    %v905 = vpop.f32.mrb[0].mxu0
    %v906 = vadd.f32 0.0, %v905
    %v907 = vpop.f32.mrb[0].mxu0
    %908 = vmatprep.mubr.bf16.mxu0 0
    %909 = vmatmul.mubr.bf16.gmra.mrb[0].mxu0 %v610
    %v910 = vpop.f32.mrb[0].mxu0
    %v911 = vadd.f32 0.0, %v910
    %v912 = vpop.f32.mrb[0].mxu0
    %v913 = vpop.f32.mrb[0].mxu0
    %v914 = vadd.f32 0.0, %v913
    %v915 = vpop.f32.mrb[0].mxu0
    %916 = vmatprep.mubr.bf16.mxu0 0
    %917 = vmatmul.mubr.bf16.gmra.mrb[0].mxu0 %v611
    %v918 = vpop.f32.mrb[0].mxu0
    %v919 = vadd.f32 0.0, %v918
    %v920 = vpop.f32.mrb[0].mxu0
    %v921 = vpop.f32.mrb[0].mxu0
    %v922 = vadd.f32 0.0, %v921
    %v923 = vpop.f32.mrb[0].mxu0
    %924 = vmatprep.mubr.bf16.mxu0 0
    %925 = vmatmul.mubr.bf16.gmra.mrb[0].mxu0 %v612
    %v926 = vpop.f32.mrb[0].mxu0
    %v927 = vadd.f32 0.0, %v926
    %v928 = vpop.f32.mrb[0].mxu0
    %v929 = vpop.f32.mrb[0].mxu0
    %v930 = vadd.f32 0.0, %v929
    %v931 = vpop.f32.mrb[0].mxu0
    %932 = vmatprep.mubr.bf16.mxu0 0
    %933 = vmatmul.mubr.bf16.gmra.mrb[0].mxu0 %v613
    %v934 = vpop.f32.mrb[0].mxu0
    %v935 = vadd.f32 0.0, %v934
    %v936 = vpop.f32.mrb[0].mxu0
    %v937 = vpop.f32.mrb[0].mxu0
    %v938 = vadd.f32 0.0, %v937
    %v939 = vpop.f32.mrb[0].mxu0
    %940 = vmatprep.mubr.bf16.mxu0 0
    %941 = vmatmul.mubr.bf16.gmra.mrb[0].mxu0 %v614
    %v942 = vpop.f32.mrb[0].mxu0
    %v943 = vadd.f32 0.0, %v942
    %v944 = vpop.f32.mrb[0].mxu0
    %v945 = vpop.f32.mrb[0].mxu0
    %v946 = vadd.f32 0.0, %v945
    %v947 = vpop.f32.mrb[0].mxu0
    %948 = vmatprep.mubr.bf16.mxu0 0
    %949 = vmatmul.mubr.bf16.gmra.mrb[0].mxu0 %v615
    %v950 = vpop.f32.mrb[0].mxu0
    %v951 = vadd.f32 0.0, %v950
    %v952 = vpop.f32.mrb[0].mxu0
    %v953 = vpop.f32.mrb[0].mxu0
    %v954 = vadd.f32 0.0, %v953
    %v955 = vpop.f32.mrb[0].mxu0
    %956 = vmatprep.mubr.bf16.mxu0 0
    %957 = vmatmul.mubr.bf16.gmra.mrb[0].mxu0 %v616
    %v958 = vpop.f32.mrb[0].mxu0
    %v959 = vadd.f32 0.0, %v958
    %v960 = vpop.f32.mrb[0].mxu0
    %v961 = vpop.f32.mrb[0].mxu0
    %v962 = vadd.f32 0.0, %v961
    %v963 = vpop.f32.mrb[0].mxu0
    %964 = vmatprep.mubr.bf16.mxu0 0
    %965 = vmatmul.mubr.bf16.gmra.mrb[0].mxu0 %v617
    %v966 = vpop.f32.mrb[0].mxu0
    %v967 = vadd.f32 0.0, %v966
    %v968 = vpop.f32.mrb[0].mxu0
    %v969 = vpop.f32.mrb[0].mxu0
    %v970 = vadd.f32 0.0, %v969
    %v971 = vpop.f32.mrb[0].mxu0
    %972 = vmatprep.mubr.bf16.mxu0 0
    %973 = vmatmul.mubr.bf16.gmra.mrb[0].mxu0 %v618
    %v974 = vpop.f32.mrb[0].mxu0
    %v975 = vadd.f32 0.0, %v974
    %v976 = vpop.f32.mrb[0].mxu0
    %v977 = vpop.f32.mrb[0].mxu0
    %v978 = vadd.f32 0.0, %v977
    %v979 = vpop.f32.mrb[0].mxu0
    %980 = vmatprep.mubr.bf16.mxu0 0
    %981 = vmatmul.mubr.bf16.gmra.mrb[0].mxu0 %v619
    %v982 = vpop.f32.mrb[0].mxu0
    %v983 = vadd.f32 0.0, %v982
    %v984 = vpop.f32.mrb[0].mxu0
    %v985 = vpop.f32.mrb[0].mxu0
    %v986 = vadd.f32 0.0, %v985
    %v987 = vpop.f32.mrb[0].mxu0
    %988 = vdwg.mxu0
    %vm989 = vcmask 15360
    %990 = vst.msk [vmem:[%s6] sm:$0xff] %vm989, %v863
    %991 = vst.msk [vmem:[%s6 + $0x8] sm:$0xff] %vm989, %v866
    %992 = vst.msk [vmem:[%s6 + $0x10] sm:$0xff] %vm989, %v871
    %993 = vst.msk [vmem:[%s6 + $0x18] sm:$0xff] %vm989, %v874
    %994 = vst.msk [vmem:[%s6 + $0x20] sm:$0xff] %vm989, %v879
    %995 = vst.msk [vmem:[%s6 + $0x28] sm:$0xff] %vm989, %v882
    %996 = vst.msk [vmem:[%s6 + $0x30] sm:$0xff] %vm989, %v887
    %997 = vst.msk [vmem:[%s6 + $0x38] sm:$0xff] %vm989, %v890
    %998 = vst.msk [vmem:[%s6 + $0x40] sm:$0xff] %vm989, %v895
    %999 = vst.msk [vmem:[%s6 + $0x48] sm:$0xff] %vm989, %v898
    %1000 = vst.msk [vmem:[%s6 + $0x50] sm:$0xff] %vm989, %v903
    %1001 = vst.msk [vmem:[%s6 + $0x58] sm:$0xff] %vm989, %v906
    %1002 = vst.msk [vmem:[%s6 + $0x60] sm:$0xff] %vm989, %v911
    %1003 = vst.msk [vmem:[%s6 + $0x68] sm:$0xff] %vm989, %v914
    %1004 = vst.msk [vmem:[%s6 + $0x70] sm:$0xff] %vm989, %v919
    %1005 = vst.msk [vmem:[%s6 + $0x78] sm:$0xff] %vm989, %v922
    %1006 = vst.msk [vmem:[%s6 + $0x80] sm:$0xff] %vm989, %v927
    %1007 = vst.msk [vmem:[%s6 + $0x88] sm:$0xff] %vm989, %v930
    %1008 = vst.msk [vmem:[%s6 + $0x90] sm:$0xff] %vm989, %v935
    %1009 = vst.msk [vmem:[%s6 + $0x98] sm:$0xff] %vm989, %v938
    %1010 = vst.msk [vmem:[%s6 + $0xa0] sm:$0xff] %vm989, %v943
    %1011 = vst.msk [vmem:[%s6 + $0xa8] sm:$0xff] %vm989, %v946
    %1012 = vst.msk [vmem:[%s6 + $0xb0] sm:$0xff] %vm989, %v951
    %1013 = vst.msk [vmem:[%s6 + $0xb8] sm:$0xff] %vm989, %v954
    %1014 = vst.msk [vmem:[%s6 + $0xc0] sm:$0xff] %vm989, %v959
    %1015 = vst.msk [vmem:[%s6 + $0xc8] sm:$0xff] %vm989, %v962
    %1016 = vst.msk [vmem:[%s6 + $0xd0] sm:$0xff] %vm989, %v967
    %1017 = vst.msk [vmem:[%s6 + $0xd8] sm:$0xff] %vm989, %v970
    %1018 = vst.msk [vmem:[%s6 + $0xe0] sm:$0xff] %vm989, %v975
    %1019 = vst.msk [vmem:[%s6 + $0xe8] sm:$0xff] %vm989, %v978
    %1020 = vst.msk [vmem:[%s6 + $0xf0] sm:$0xff] %vm989, %v983
    %1021 = vst.msk [vmem:[%s6 + $0xf8] sm:$0xff] %vm989, %v986
    // Predicated region
    $region30: #{gnn_encoder_forward.5} parent=1 // pred_check
      _
    $region31: #{gnn_encoder_forward.5} parent=1 // pred_check_branch
      %1023 = sbr.rel (0) target = $region33
    $region32: #{gnn_encoder_forward.5} parent=1 // pred_region
      _
    $region33: #{gnn_encoder_forward.5} parent=1 // pred_fallthru
      _
    // Predicated region
    $region34: #{gnn_encoder_forward.5} parent=1 // pred_check
      _
    $region35: #{gnn_encoder_forward.5} parent=1 // pred_check_branch
      %1025 = sbr.rel (0) target = $region37
    $region36: #{gnn_encoder_forward.5} parent=1 // pred_region
      _
    $region37: #{gnn_encoder_forward.5} parent=1 // pred_fallthru
      _
    // Predicated region
    $region38: #{gnn_encoder_forward.5} parent=1 // pred_check
      _
    $region39: #{gnn_encoder_forward.5} parent=1 // pred_check_branch
      %1027 = sbr.rel (0) target = $region41
    $region40: #{gnn_encoder_forward.5} parent=1 // pred_region
      _
    $region41: #{gnn_encoder_forward.5} parent=1 // pred_fallthru
      _
    // Predicated region
    $region42: #{gnn_encoder_forward.5} parent=1 // pred_check
      _
    $region43: #{gnn_encoder_forward.5} parent=1 // pred_check_branch
      %1029 = sbr.rel (0) target = $region45
    $region44: #{gnn_encoder_forward.5} parent=1 // pred_region
      _
    $region45: #{gnn_encoder_forward.5} parent=1 // pred_fallthru
      _
    %1030 = vsyncpa [#allocation3], 1
    %1031 = vsyncpa [#allocation5], 1

// kernel: gnn_encoder_forward.6
$region0: #{gnn_encoder_forward.6}
  #allocation0 [shape = 'u32[]', space=smem, size = 0x4, offset = 0x4, fixed_abs, tag = 'smem constant byte address 0x4 - core index']
  #allocation1 [shape = 'u32[144,128]{1,0:T(1,128)}', space=vmem, size = 0x12000, scoped, tag = 'internal scratch']
  #allocation2 [shape = 'f32[256,1]{1,0:T(8,128)}', space=vmem, size = 0x20000, scoped, tag = 'scratch operand']
  #allocation3 [shape = 'f32[256,1]{1,0:T(8,128)}', space=vmem, size = 0x20000, scoped, tag = 'scratch operand']
  #allocation4 [shape = 'f32[256,128]{1,0:T(8,128)}', space=vmem, size = 0x20000, scoped, tag = 'scratch operand']
  %s0 = inlined_call_operand.vmem [shape: f32[256,1], index: 0, kind: input, shape index: {}]
  %s1 = inlined_call_operand.vmem [shape: f32[1,256], index: 1, kind: input, shape index: {}]
  %s2 = inlined_call_operand.vmem [shape: s8[256,256], index: 2, kind: input, shape index: {}]
  %s3 = inlined_call_operand.vmem [shape: bf16[256,128], index: 3, kind: input, shape index: {}]
  %s4 = inlined_call_operand.vmem [shape: f32[1,128], index: 4, kind: input, shape index: {}]
  %s5 = inlined_call_operand.vmem [shape: f32[256,128], index: 5, kind: output, shape index: {}]
  %s6 = sld [smem:[#allocation0]]
  $region38: #{gnn_encoder_forward.6} parent=0
    _
  %s8 = ssub.s32 1, %s6
  %s9 = scalar_select 0, %s8, %s6
  // Predicated region
  $region2: #{gnn_encoder_forward.6} parent=0 // pred_check
    _
  $region3: #{gnn_encoder_forward.6} parent=0 // pred_check_branch
    %11 = sbr.rel (0) target = $region5
  $region4: #{gnn_encoder_forward.6} parent=0 // pred_region
    _
  $region5: #{gnn_encoder_forward.6} parent=0 // pred_fallthru
    _
  // Predicated region
  $region6: #{gnn_encoder_forward.6} parent=0 // pred_check
    _
  $region7: #{gnn_encoder_forward.6} parent=0 // pred_check_branch
    %13 = sbr.rel (0) target = $region9
  $region8: #{gnn_encoder_forward.6} parent=0 // pred_region
    _
  $region9: #{gnn_encoder_forward.6} parent=0 // pred_fallthru
    _
  // Predicated region
  $region10: #{gnn_encoder_forward.6} parent=0 // pred_check
    _
  $region11: #{gnn_encoder_forward.6} parent=0 // pred_check_branch
    %15 = sbr.rel (0) target = $region13
  $region12: #{gnn_encoder_forward.6} parent=0 // pred_region
    _
  $region13: #{gnn_encoder_forward.6} parent=0 // pred_fallthru
    _
  // Predicated region
  $region14: #{gnn_encoder_forward.6} parent=0 // pred_check
    _
  $region15: #{gnn_encoder_forward.6} parent=0 // pred_check_branch
    %17 = sbr.rel (0) target = $region17
  $region16: #{gnn_encoder_forward.6} parent=0 // pred_region
    _
  $region17: #{gnn_encoder_forward.6} parent=0 // pred_fallthru
    _
  // Predicated region
  $region18: #{gnn_encoder_forward.6} parent=0 // pred_check
    _
  $region19: #{gnn_encoder_forward.6} parent=0 // pred_check_branch
    %19 = sbr.rel (0) target = $region21
  $region20: #{gnn_encoder_forward.6} parent=0 // pred_region
    _
  $region21: #{gnn_encoder_forward.6} parent=0 // pred_fallthru
    _
  %p21 = scmp.eq.s32.totalorder 0, 0
  // Predicated region
  $region22: #{gnn_encoder_forward.6} parent=0 // pred_check
    %p22 = pneg %p21
  $region23: #{gnn_encoder_forward.6} parent=0 // pred_check_branch
    %24 = sbr.rel (%p22) target = $region25
  $region24: #{gnn_encoder_forward.6} parent=0 // pred_region
    %vm25 = vcmask 7168
    %26 = vst.msk [vmem:[#allocation2] sm:$0xff] %vm25, -inf
    %27 = vst.msk [vmem:[#allocation2 + $0x8] sm:$0xff] %vm25, -inf
    %28 = vst.msk [vmem:[#allocation2 + $0x10] sm:$0xff] %vm25, -inf
    %29 = vst.msk [vmem:[#allocation2 + $0x18] sm:$0xff] %vm25, -inf
    %30 = vst.msk [vmem:[#allocation2 + $0x20] sm:$0xff] %vm25, -inf
    %31 = vst.msk [vmem:[#allocation2 + $0x28] sm:$0xff] %vm25, -inf
    %32 = vst.msk [vmem:[#allocation2 + $0x30] sm:$0xff] %vm25, -inf
    %33 = vst.msk [vmem:[#allocation2 + $0x38] sm:$0xff] %vm25, -inf
    %34 = vst.msk [vmem:[#allocation2 + $0x40] sm:$0xff] %vm25, -inf
    %35 = vst.msk [vmem:[#allocation2 + $0x48] sm:$0xff] %vm25, -inf
    %36 = vst.msk [vmem:[#allocation2 + $0x50] sm:$0xff] %vm25, -inf
    %37 = vst.msk [vmem:[#allocation2 + $0x58] sm:$0xff] %vm25, -inf
    %38 = vst.msk [vmem:[#allocation2 + $0x60] sm:$0xff] %vm25, -inf
    %39 = vst.msk [vmem:[#allocation2 + $0x68] sm:$0xff] %vm25, -inf
    %40 = vst.msk [vmem:[#allocation2 + $0x70] sm:$0xff] %vm25, -inf
    %41 = vst.msk [vmem:[#allocation2 + $0x78] sm:$0xff] %vm25, -inf
    %42 = vst.msk [vmem:[#allocation2 + $0x80] sm:$0xff] %vm25, -inf
    %43 = vst.msk [vmem:[#allocation2 + $0x88] sm:$0xff] %vm25, -inf
    %44 = vst.msk [vmem:[#allocation2 + $0x90] sm:$0xff] %vm25, -inf
    %45 = vst.msk [vmem:[#allocation2 + $0x98] sm:$0xff] %vm25, -inf
    %46 = vst.msk [vmem:[#allocation2 + $0xa0] sm:$0xff] %vm25, -inf
    %47 = vst.msk [vmem:[#allocation2 + $0xa8] sm:$0xff] %vm25, -inf
    %48 = vst.msk [vmem:[#allocation2 + $0xb0] sm:$0xff] %vm25, -inf
    %49 = vst.msk [vmem:[#allocation2 + $0xb8] sm:$0xff] %vm25, -inf
    %50 = vst.msk [vmem:[#allocation2 + $0xc0] sm:$0xff] %vm25, -inf
    %51 = vst.msk [vmem:[#allocation2 + $0xc8] sm:$0xff] %vm25, -inf
    %52 = vst.msk [vmem:[#allocation2 + $0xd0] sm:$0xff] %vm25, -inf
    %53 = vst.msk [vmem:[#allocation2 + $0xd8] sm:$0xff] %vm25, -inf
    %54 = vst.msk [vmem:[#allocation2 + $0xe0] sm:$0xff] %vm25, -inf
    %55 = vst.msk [vmem:[#allocation2 + $0xe8] sm:$0xff] %vm25, -inf
    %56 = vst.msk [vmem:[#allocation2 + $0xf0] sm:$0xff] %vm25, -inf
    %57 = vst.msk [vmem:[#allocation2 + $0xf8] sm:$0xff] %vm25, -inf
    %58 = vst.msk [vmem:[#allocation3] sm:$0xff] %vm25, 0.0
    %59 = vst.msk [vmem:[#allocation3 + $0x8] sm:$0xff] %vm25, 0.0
    %60 = vst.msk [vmem:[#allocation3 + $0x10] sm:$0xff] %vm25, 0.0
    %61 = vst.msk [vmem:[#allocation3 + $0x18] sm:$0xff] %vm25, 0.0
    %62 = vst.msk [vmem:[#allocation3 + $0x20] sm:$0xff] %vm25, 0.0
    %63 = vst.msk [vmem:[#allocation3 + $0x28] sm:$0xff] %vm25, 0.0
    %64 = vst.msk [vmem:[#allocation3 + $0x30] sm:$0xff] %vm25, 0.0
    %65 = vst.msk [vmem:[#allocation3 + $0x38] sm:$0xff] %vm25, 0.0
    %66 = vst.msk [vmem:[#allocation3 + $0x40] sm:$0xff] %vm25, 0.0
    %67 = vst.msk [vmem:[#allocation3 + $0x48] sm:$0xff] %vm25, 0.0
    %68 = vst.msk [vmem:[#allocation3 + $0x50] sm:$0xff] %vm25, 0.0
    %69 = vst.msk [vmem:[#allocation3 + $0x58] sm:$0xff] %vm25, 0.0
    %70 = vst.msk [vmem:[#allocation3 + $0x60] sm:$0xff] %vm25, 0.0
    %71 = vst.msk [vmem:[#allocation3 + $0x68] sm:$0xff] %vm25, 0.0
    %72 = vst.msk [vmem:[#allocation3 + $0x70] sm:$0xff] %vm25, 0.0
    %73 = vst.msk [vmem:[#allocation3 + $0x78] sm:$0xff] %vm25, 0.0
    %74 = vst.msk [vmem:[#allocation3 + $0x80] sm:$0xff] %vm25, 0.0
    %75 = vst.msk [vmem:[#allocation3 + $0x88] sm:$0xff] %vm25, 0.0
    %76 = vst.msk [vmem:[#allocation3 + $0x90] sm:$0xff] %vm25, 0.0
    %77 = vst.msk [vmem:[#allocation3 + $0x98] sm:$0xff] %vm25, 0.0
    %78 = vst.msk [vmem:[#allocation3 + $0xa0] sm:$0xff] %vm25, 0.0
    %79 = vst.msk [vmem:[#allocation3 + $0xa8] sm:$0xff] %vm25, 0.0
    %80 = vst.msk [vmem:[#allocation3 + $0xb0] sm:$0xff] %vm25, 0.0
    %81 = vst.msk [vmem:[#allocation3 + $0xb8] sm:$0xff] %vm25, 0.0
    %82 = vst.msk [vmem:[#allocation3 + $0xc0] sm:$0xff] %vm25, 0.0
    %83 = vst.msk [vmem:[#allocation3 + $0xc8] sm:$0xff] %vm25, 0.0
    %84 = vst.msk [vmem:[#allocation3 + $0xd0] sm:$0xff] %vm25, 0.0
    %85 = vst.msk [vmem:[#allocation3 + $0xd8] sm:$0xff] %vm25, 0.0
    %86 = vst.msk [vmem:[#allocation3 + $0xe0] sm:$0xff] %vm25, 0.0
    %87 = vst.msk [vmem:[#allocation3 + $0xe8] sm:$0xff] %vm25, 0.0
    %88 = vst.msk [vmem:[#allocation3 + $0xf0] sm:$0xff] %vm25, 0.0
    %89 = vst.msk [vmem:[#allocation3 + $0xf8] sm:$0xff] %vm25, 0.0
    %90 = vst [vmem:[#allocation4] sm:$0xff] 0.0
    %91 = vst [vmem:[#allocation4 + $0x8] sm:$0xff] 0.0
    %92 = vst [vmem:[#allocation4 + $0x10] sm:$0xff] 0.0
    %93 = vst [vmem:[#allocation4 + $0x18] sm:$0xff] 0.0
    %94 = vst [vmem:[#allocation4 + $0x20] sm:$0xff] 0.0
    %95 = vst [vmem:[#allocation4 + $0x28] sm:$0xff] 0.0
    %96 = vst [vmem:[#allocation4 + $0x30] sm:$0xff] 0.0
    %97 = vst [vmem:[#allocation4 + $0x38] sm:$0xff] 0.0
    %98 = vst [vmem:[#allocation4 + $0x40] sm:$0xff] 0.0
    %99 = vst [vmem:[#allocation4 + $0x48] sm:$0xff] 0.0
    %100 = vst [vmem:[#allocation4 + $0x50] sm:$0xff] 0.0
    %101 = vst [vmem:[#allocation4 + $0x58] sm:$0xff] 0.0
    %102 = vst [vmem:[#allocation4 + $0x60] sm:$0xff] 0.0
    %103 = vst [vmem:[#allocation4 + $0x68] sm:$0xff] 0.0
    %104 = vst [vmem:[#allocation4 + $0x70] sm:$0xff] 0.0
    %105 = vst [vmem:[#allocation4 + $0x78] sm:$0xff] 0.0
    %106 = vst [vmem:[#allocation4 + $0x80] sm:$0xff] 0.0
    %107 = vst [vmem:[#allocation4 + $0x88] sm:$0xff] 0.0
    %108 = vst [vmem:[#allocation4 + $0x90] sm:$0xff] 0.0
    %109 = vst [vmem:[#allocation4 + $0x98] sm:$0xff] 0.0
    %110 = vst [vmem:[#allocation4 + $0xa0] sm:$0xff] 0.0
    %111 = vst [vmem:[#allocation4 + $0xa8] sm:$0xff] 0.0
    %112 = vst [vmem:[#allocation4 + $0xb0] sm:$0xff] 0.0
    %113 = vst [vmem:[#allocation4 + $0xb8] sm:$0xff] 0.0
    %114 = vst [vmem:[#allocation4 + $0xc0] sm:$0xff] 0.0
    %115 = vst [vmem:[#allocation4 + $0xc8] sm:$0xff] 0.0
    %116 = vst [vmem:[#allocation4 + $0xd0] sm:$0xff] 0.0
    %117 = vst [vmem:[#allocation4 + $0xd8] sm:$0xff] 0.0
    %118 = vst [vmem:[#allocation4 + $0xe0] sm:$0xff] 0.0
    %119 = vst [vmem:[#allocation4 + $0xe8] sm:$0xff] 0.0
    %120 = vst [vmem:[#allocation4 + $0xf0] sm:$0xff] 0.0
    %121 = vst [vmem:[#allocation4 + $0xf8] sm:$0xff] 0.0
  $region25: #{gnn_encoder_forward.6} parent=0 // pred_fallthru
    _
  %v122 = vld [vmem:[%s0] sm:$0xff]
  %v123 = vld [vmem:[%s0 + $0x8] sm:$0xff]
  %v124 = vld [vmem:[%s0 + $0x10] sm:$0xff]
  %v125 = vld [vmem:[%s0 + $0x18] sm:$0xff]
  %v126 = vld [vmem:[%s0 + $0x20] sm:$0xff]
  %v127 = vld [vmem:[%s0 + $0x28] sm:$0xff]
  %v128 = vld [vmem:[%s0 + $0x30] sm:$0xff]
  %v129 = vld [vmem:[%s0 + $0x38] sm:$0xff]
  %v130 = vld [vmem:[%s0 + $0x40] sm:$0xff]
  %v131 = vld [vmem:[%s0 + $0x48] sm:$0xff]
  %v132 = vld [vmem:[%s0 + $0x50] sm:$0xff]
  %v133 = vld [vmem:[%s0 + $0x58] sm:$0xff]
  %v134 = vld [vmem:[%s0 + $0x60] sm:$0xff]
  %v135 = vld [vmem:[%s0 + $0x68] sm:$0xff]
  %v136 = vld [vmem:[%s0 + $0x70] sm:$0xff]
  %v137 = vld [vmem:[%s0 + $0x78] sm:$0xff]
  %v138 = vld [vmem:[%s0 + $0x80] sm:$0xff]
  %v139 = vld [vmem:[%s0 + $0x88] sm:$0xff]
  %v140 = vld [vmem:[%s0 + $0x90] sm:$0xff]
  %v141 = vld [vmem:[%s0 + $0x98] sm:$0xff]
  %v142 = vld [vmem:[%s0 + $0xa0] sm:$0xff]
  %v143 = vld [vmem:[%s0 + $0xa8] sm:$0xff]
  %v144 = vld [vmem:[%s0 + $0xb0] sm:$0xff]
  %v145 = vld [vmem:[%s0 + $0xb8] sm:$0xff]
  %v146 = vld [vmem:[%s0 + $0xc0] sm:$0xff]
  %v147 = vld [vmem:[%s0 + $0xc8] sm:$0xff]
  %v148 = vld [vmem:[%s0 + $0xd0] sm:$0xff]
  %v149 = vld [vmem:[%s0 + $0xd8] sm:$0xff]
  %v150 = vld [vmem:[%s0 + $0xe0] sm:$0xff]
  %v151 = vld [vmem:[%s0 + $0xe8] sm:$0xff]
  %v152 = vld [vmem:[%s0 + $0xf0] sm:$0xff]
  %v153 = vld [vmem:[%s0 + $0xf8] sm:$0xff]
  %v154 = vld [vmem:[%s1] sm:$0x3]
  %156 = vset.pattern.permute.xlu0 0
  %157 = vperm.xlu0 %156, %v122
  %v158 = vpop.permute.xlu0 %157
  %161 = vset.pattern.permute.xlu0 0
  %162 = vperm.xlu0 %161, %v123
  %v163 = vpop.permute.xlu0 %162
  %166 = vset.pattern.permute.xlu0 0
  %167 = vperm.xlu0 %166, %v124
  %v168 = vpop.permute.xlu0 %167
  %171 = vset.pattern.permute.xlu0 0
  %172 = vperm.xlu0 %171, %v125
  %v173 = vpop.permute.xlu0 %172
  %176 = vset.pattern.permute.xlu0 0
  %177 = vperm.xlu0 %176, %v126
  %v178 = vpop.permute.xlu0 %177
  %181 = vset.pattern.permute.xlu0 0
  %182 = vperm.xlu0 %181, %v127
  %v183 = vpop.permute.xlu0 %182
  %186 = vset.pattern.permute.xlu0 0
  %187 = vperm.xlu0 %186, %v128
  %v188 = vpop.permute.xlu0 %187
  %191 = vset.pattern.permute.xlu0 0
  %192 = vperm.xlu0 %191, %v129
  %v193 = vpop.permute.xlu0 %192
  %196 = vset.pattern.permute.xlu0 0
  %197 = vperm.xlu0 %196, %v130
  %v198 = vpop.permute.xlu0 %197
  %201 = vset.pattern.permute.xlu0 0
  %202 = vperm.xlu0 %201, %v131
  %v203 = vpop.permute.xlu0 %202
  %206 = vset.pattern.permute.xlu0 0
  %207 = vperm.xlu0 %206, %v132
  %v208 = vpop.permute.xlu0 %207
  %211 = vset.pattern.permute.xlu0 0
  %212 = vperm.xlu0 %211, %v133
  %v213 = vpop.permute.xlu0 %212
  %216 = vset.pattern.permute.xlu0 0
  %217 = vperm.xlu0 %216, %v134
  %v218 = vpop.permute.xlu0 %217
  %221 = vset.pattern.permute.xlu0 0
  %222 = vperm.xlu0 %221, %v135
  %v223 = vpop.permute.xlu0 %222
  %226 = vset.pattern.permute.xlu0 0
  %227 = vperm.xlu0 %226, %v136
  %v228 = vpop.permute.xlu0 %227
  %231 = vset.pattern.permute.xlu0 0
  %232 = vperm.xlu0 %231, %v137
  %v233 = vpop.permute.xlu0 %232
  %236 = vset.pattern.permute.xlu0 0
  %237 = vperm.xlu0 %236, %v138
  %v238 = vpop.permute.xlu0 %237
  %241 = vset.pattern.permute.xlu0 0
  %242 = vperm.xlu0 %241, %v139
  %v243 = vpop.permute.xlu0 %242
  %246 = vset.pattern.permute.xlu0 0
  %247 = vperm.xlu0 %246, %v140
  %v248 = vpop.permute.xlu0 %247
  %251 = vset.pattern.permute.xlu0 0
  %252 = vperm.xlu0 %251, %v141
  %v253 = vpop.permute.xlu0 %252
  %256 = vset.pattern.permute.xlu0 0
  %257 = vperm.xlu0 %256, %v142
  %v258 = vpop.permute.xlu0 %257
  %261 = vset.pattern.permute.xlu0 0
  %262 = vperm.xlu0 %261, %v143
  %v263 = vpop.permute.xlu0 %262
  %266 = vset.pattern.permute.xlu0 0
  %267 = vperm.xlu0 %266, %v144
  %v268 = vpop.permute.xlu0 %267
  %271 = vset.pattern.permute.xlu0 0
  %272 = vperm.xlu0 %271, %v145
  %v273 = vpop.permute.xlu0 %272
  %276 = vset.pattern.permute.xlu0 0
  %277 = vperm.xlu0 %276, %v146
  %v278 = vpop.permute.xlu0 %277
  %281 = vset.pattern.permute.xlu0 0
  %282 = vperm.xlu0 %281, %v147
  %v283 = vpop.permute.xlu0 %282
  %286 = vset.pattern.permute.xlu0 0
  %287 = vperm.xlu0 %286, %v148
  %v288 = vpop.permute.xlu0 %287
  %291 = vset.pattern.permute.xlu0 0
  %292 = vperm.xlu0 %291, %v149
  %v293 = vpop.permute.xlu0 %292
  %296 = vset.pattern.permute.xlu0 0
  %297 = vperm.xlu0 %296, %v150
  %v298 = vpop.permute.xlu0 %297
  %301 = vset.pattern.permute.xlu0 0
  %302 = vperm.xlu0 %301, %v151
  %v303 = vpop.permute.xlu0 %302
  %306 = vset.pattern.permute.xlu0 0
  %307 = vperm.xlu0 %306, %v152
  %v308 = vpop.permute.xlu0 %307
  %311 = vset.pattern.permute.xlu0 0
  %312 = vperm.xlu0 %311, %v153
  %v313 = vpop.permute.xlu0 %312
  %v316 = vlaneseq
  %v317 = vshrl.u32 %v316, 7
  %v318 = vsub.s32 0, %v317
  %v319 = vrot.slane %v154, %v318
  %v320 = vlaneseq
  %v321 = vshrl.u32 %v320, 7
  %v322 = vsub.s32 1, %v321
  %v323 = vrot.slane %v154, %v322
  %v326 = vadd.f32 %v158, %v319
  %v327 = vadd.f32 %v158, %v323
  %v328 = vadd.f32 %v163, %v319
  %v329 = vadd.f32 %v163, %v323
  %v330 = vadd.f32 %v168, %v319
  %v331 = vadd.f32 %v168, %v323
  %v332 = vadd.f32 %v173, %v319
  %v333 = vadd.f32 %v173, %v323
  %v334 = vadd.f32 %v178, %v319
  %v335 = vadd.f32 %v178, %v323
  %v336 = vadd.f32 %v183, %v319
  %v337 = vadd.f32 %v183, %v323
  %v338 = vadd.f32 %v188, %v319
  %v339 = vadd.f32 %v188, %v323
  %v340 = vadd.f32 %v193, %v319
  %v341 = vadd.f32 %v193, %v323
  %v342 = vadd.f32 %v198, %v319
  %v343 = vadd.f32 %v198, %v323
  %v344 = vadd.f32 %v203, %v319
  %v345 = vadd.f32 %v203, %v323
  %v346 = vadd.f32 %v208, %v319
  %v347 = vadd.f32 %v208, %v323
  %v348 = vadd.f32 %v213, %v319
  %v349 = vadd.f32 %v213, %v323
  %v350 = vadd.f32 %v218, %v319
  %v351 = vadd.f32 %v218, %v323
  %v352 = vadd.f32 %v223, %v319
  %v353 = vadd.f32 %v223, %v323
  %v354 = vadd.f32 %v228, %v319
  %v355 = vadd.f32 %v228, %v323
  %v356 = vadd.f32 %v233, %v319
  %v357 = vadd.f32 %v233, %v323
  %v358 = vadd.f32 %v238, %v319
  %v359 = vadd.f32 %v238, %v323
  %v360 = vadd.f32 %v243, %v319
  %v361 = vadd.f32 %v243, %v323
  %v362 = vadd.f32 %v248, %v319
  %v363 = vadd.f32 %v248, %v323
  %v364 = vadd.f32 %v253, %v319
  %v365 = vadd.f32 %v253, %v323
  %v366 = vadd.f32 %v258, %v319
  %v367 = vadd.f32 %v258, %v323
  %v368 = vadd.f32 %v263, %v319
  %v369 = vadd.f32 %v263, %v323
  %v370 = vadd.f32 %v268, %v319
  %v371 = vadd.f32 %v268, %v323
  %v372 = vadd.f32 %v273, %v319
  %v373 = vadd.f32 %v273, %v323
  %v374 = vadd.f32 %v278, %v319
  %v375 = vadd.f32 %v278, %v323
  %v376 = vadd.f32 %v283, %v319
  %v377 = vadd.f32 %v283, %v323
  %v378 = vadd.f32 %v288, %v319
  %v379 = vadd.f32 %v288, %v323
  %v380 = vadd.f32 %v293, %v319
  %v381 = vadd.f32 %v293, %v323
  %v382 = vadd.f32 %v298, %v319
  %v383 = vadd.f32 %v298, %v323
  %v384 = vadd.f32 %v303, %v319
  %v385 = vadd.f32 %v303, %v323
  %v386 = vadd.f32 %v308, %v319
  %v387 = vadd.f32 %v308, %v323
  %v388 = vadd.f32 %v313, %v319
  %v389 = vadd.f32 %v313, %v323
  %vm390 = vcmp.gt.f32.partialorder %v326, 0.0
  %vm391 = vcmp.gt.f32.partialorder %v327, 0.0
  %vm392 = vcmp.gt.f32.partialorder %v328, 0.0
  %vm393 = vcmp.gt.f32.partialorder %v329, 0.0
  %vm394 = vcmp.gt.f32.partialorder %v330, 0.0
  %vm395 = vcmp.gt.f32.partialorder %v331, 0.0
  %vm396 = vcmp.gt.f32.partialorder %v332, 0.0
  %vm397 = vcmp.gt.f32.partialorder %v333, 0.0
  %vm398 = vcmp.gt.f32.partialorder %v334, 0.0
  %vm399 = vcmp.gt.f32.partialorder %v335, 0.0
  %vm400 = vcmp.gt.f32.partialorder %v336, 0.0
  %vm401 = vcmp.gt.f32.partialorder %v337, 0.0
  %vm402 = vcmp.gt.f32.partialorder %v338, 0.0
  %vm403 = vcmp.gt.f32.partialorder %v339, 0.0
  %vm404 = vcmp.gt.f32.partialorder %v340, 0.0
  %vm405 = vcmp.gt.f32.partialorder %v341, 0.0
  %vm406 = vcmp.gt.f32.partialorder %v342, 0.0
  %vm407 = vcmp.gt.f32.partialorder %v343, 0.0
  %vm408 = vcmp.gt.f32.partialorder %v344, 0.0
  %vm409 = vcmp.gt.f32.partialorder %v345, 0.0
  %vm410 = vcmp.gt.f32.partialorder %v346, 0.0
  %vm411 = vcmp.gt.f32.partialorder %v347, 0.0
  %vm412 = vcmp.gt.f32.partialorder %v348, 0.0
  %vm413 = vcmp.gt.f32.partialorder %v349, 0.0
  %vm414 = vcmp.gt.f32.partialorder %v350, 0.0
  %vm415 = vcmp.gt.f32.partialorder %v351, 0.0
  %vm416 = vcmp.gt.f32.partialorder %v352, 0.0
  %vm417 = vcmp.gt.f32.partialorder %v353, 0.0
  %vm418 = vcmp.gt.f32.partialorder %v354, 0.0
  %vm419 = vcmp.gt.f32.partialorder %v355, 0.0
  %vm420 = vcmp.gt.f32.partialorder %v356, 0.0
  %vm421 = vcmp.gt.f32.partialorder %v357, 0.0
  %vm422 = vcmp.gt.f32.partialorder %v358, 0.0
  %vm423 = vcmp.gt.f32.partialorder %v359, 0.0
  %vm424 = vcmp.gt.f32.partialorder %v360, 0.0
  %vm425 = vcmp.gt.f32.partialorder %v361, 0.0
  %vm426 = vcmp.gt.f32.partialorder %v362, 0.0
  %vm427 = vcmp.gt.f32.partialorder %v363, 0.0
  %vm428 = vcmp.gt.f32.partialorder %v364, 0.0
  %vm429 = vcmp.gt.f32.partialorder %v365, 0.0
  %vm430 = vcmp.gt.f32.partialorder %v366, 0.0
  %vm431 = vcmp.gt.f32.partialorder %v367, 0.0
  %vm432 = vcmp.gt.f32.partialorder %v368, 0.0
  %vm433 = vcmp.gt.f32.partialorder %v369, 0.0
  %vm434 = vcmp.gt.f32.partialorder %v370, 0.0
  %vm435 = vcmp.gt.f32.partialorder %v371, 0.0
  %vm436 = vcmp.gt.f32.partialorder %v372, 0.0
  %vm437 = vcmp.gt.f32.partialorder %v373, 0.0
  %vm438 = vcmp.gt.f32.partialorder %v374, 0.0
  %vm439 = vcmp.gt.f32.partialorder %v375, 0.0
  %vm440 = vcmp.gt.f32.partialorder %v376, 0.0
  %vm441 = vcmp.gt.f32.partialorder %v377, 0.0
  %vm442 = vcmp.gt.f32.partialorder %v378, 0.0
  %vm443 = vcmp.gt.f32.partialorder %v379, 0.0
  %vm444 = vcmp.gt.f32.partialorder %v380, 0.0
  %vm445 = vcmp.gt.f32.partialorder %v381, 0.0
  %vm446 = vcmp.gt.f32.partialorder %v382, 0.0
  %vm447 = vcmp.gt.f32.partialorder %v383, 0.0
  %vm448 = vcmp.gt.f32.partialorder %v384, 0.0
  %vm449 = vcmp.gt.f32.partialorder %v385, 0.0
  %vm450 = vcmp.gt.f32.partialorder %v386, 0.0
  %vm451 = vcmp.gt.f32.partialorder %v387, 0.0
  %vm452 = vcmp.gt.f32.partialorder %v388, 0.0
  %vm453 = vcmp.gt.f32.partialorder %v389, 0.0
  %v454 = vmul.f32 %v326, 0.2
  %v455 = vmul.f32 %v327, 0.2
  %v456 = vmul.f32 %v328, 0.2
  %v457 = vmul.f32 %v329, 0.2
  %v458 = vmul.f32 %v330, 0.2
  %v459 = vmul.f32 %v331, 0.2
  %v460 = vmul.f32 %v332, 0.2
  %v461 = vmul.f32 %v333, 0.2
  %v462 = vmul.f32 %v334, 0.2
  %v463 = vmul.f32 %v335, 0.2
  %v464 = vmul.f32 %v336, 0.2
  %v465 = vmul.f32 %v337, 0.2
  %v466 = vmul.f32 %v338, 0.2
  %v467 = vmul.f32 %v339, 0.2
  %v468 = vmul.f32 %v340, 0.2
  %v469 = vmul.f32 %v341, 0.2
  %v470 = vmul.f32 %v342, 0.2
  %v471 = vmul.f32 %v343, 0.2
  %v472 = vmul.f32 %v344, 0.2
  %v473 = vmul.f32 %v345, 0.2
  %v474 = vmul.f32 %v346, 0.2
  %v475 = vmul.f32 %v347, 0.2
  %v476 = vmul.f32 %v348, 0.2
  %v477 = vmul.f32 %v349, 0.2
  %v478 = vmul.f32 %v350, 0.2
  %v479 = vmul.f32 %v351, 0.2
  %v480 = vmul.f32 %v352, 0.2
  %v481 = vmul.f32 %v353, 0.2
  %v482 = vmul.f32 %v354, 0.2
  %v483 = vmul.f32 %v355, 0.2
  %v484 = vmul.f32 %v356, 0.2
  %v485 = vmul.f32 %v357, 0.2
  %v486 = vmul.f32 %v358, 0.2
  %v487 = vmul.f32 %v359, 0.2
  %v488 = vmul.f32 %v360, 0.2
  %v489 = vmul.f32 %v361, 0.2
  %v490 = vmul.f32 %v362, 0.2
  %v491 = vmul.f32 %v363, 0.2
  %v492 = vmul.f32 %v364, 0.2
  %v493 = vmul.f32 %v365, 0.2
  %v494 = vmul.f32 %v366, 0.2
  %v495 = vmul.f32 %v367, 0.2
  %v496 = vmul.f32 %v368, 0.2
  %v497 = vmul.f32 %v369, 0.2
  %v498 = vmul.f32 %v370, 0.2
  %v499 = vmul.f32 %v371, 0.2
  %v500 = vmul.f32 %v372, 0.2
  %v501 = vmul.f32 %v373, 0.2
  %v502 = vmul.f32 %v374, 0.2
  %v503 = vmul.f32 %v375, 0.2
  %v504 = vmul.f32 %v376, 0.2
  %v505 = vmul.f32 %v377, 0.2
  %v506 = vmul.f32 %v378, 0.2
  %v507 = vmul.f32 %v379, 0.2
  %v508 = vmul.f32 %v380, 0.2
  %v509 = vmul.f32 %v381, 0.2
  %v510 = vmul.f32 %v382, 0.2
  %v511 = vmul.f32 %v383, 0.2
  %v512 = vmul.f32 %v384, 0.2
  %v513 = vmul.f32 %v385, 0.2
  %v514 = vmul.f32 %v386, 0.2
  %v515 = vmul.f32 %v387, 0.2
  %v516 = vmul.f32 %v388, 0.2
  %v517 = vmul.f32 %v389, 0.2
  %v518 = vsel %vm390, %v326, %v454
  %v519 = vsel %vm391, %v327, %v455
  %v520 = vsel %vm392, %v328, %v456
  %v521 = vsel %vm393, %v329, %v457
  %v522 = vsel %vm394, %v330, %v458
  %v523 = vsel %vm395, %v331, %v459
  %v524 = vsel %vm396, %v332, %v460
  %v525 = vsel %vm397, %v333, %v461
  %v526 = vsel %vm398, %v334, %v462
  %v527 = vsel %vm399, %v335, %v463
  %v528 = vsel %vm400, %v336, %v464
  %v529 = vsel %vm401, %v337, %v465
  %v530 = vsel %vm402, %v338, %v466
  %v531 = vsel %vm403, %v339, %v467
  %v532 = vsel %vm404, %v340, %v468
  %v533 = vsel %vm405, %v341, %v469
  %v534 = vsel %vm406, %v342, %v470
  %v535 = vsel %vm407, %v343, %v471
  %v536 = vsel %vm408, %v344, %v472
  %v537 = vsel %vm409, %v345, %v473
  %v538 = vsel %vm410, %v346, %v474
  %v539 = vsel %vm411, %v347, %v475
  %v540 = vsel %vm412, %v348, %v476
  %v541 = vsel %vm413, %v349, %v477
  %v542 = vsel %vm414, %v350, %v478
  %v543 = vsel %vm415, %v351, %v479
  %v544 = vsel %vm416, %v352, %v480
  %v545 = vsel %vm417, %v353, %v481
  %v546 = vsel %vm418, %v354, %v482
  %v547 = vsel %vm419, %v355, %v483
  %v548 = vsel %vm420, %v356, %v484
  %v549 = vsel %vm421, %v357, %v485
  %v550 = vsel %vm422, %v358, %v486
  %v551 = vsel %vm423, %v359, %v487
  %v552 = vsel %vm424, %v360, %v488
  %v553 = vsel %vm425, %v361, %v489
  %v554 = vsel %vm426, %v362, %v490
  %v555 = vsel %vm427, %v363, %v491
  %v556 = vsel %vm428, %v364, %v492
  %v557 = vsel %vm429, %v365, %v493
  %v558 = vsel %vm430, %v366, %v494
  %v559 = vsel %vm431, %v367, %v495
  %v560 = vsel %vm432, %v368, %v496
  %v561 = vsel %vm433, %v369, %v497
  %v562 = vsel %vm434, %v370, %v498
  %v563 = vsel %vm435, %v371, %v499
  %v564 = vsel %vm436, %v372, %v500
  %v565 = vsel %vm437, %v373, %v501
  %v566 = vsel %vm438, %v374, %v502
  %v567 = vsel %vm439, %v375, %v503
  %v568 = vsel %vm440, %v376, %v504
  %v569 = vsel %vm441, %v377, %v505
  %v570 = vsel %vm442, %v378, %v506
  %v571 = vsel %vm443, %v379, %v507
  %v572 = vsel %vm444, %v380, %v508
  %v573 = vsel %vm445, %v381, %v509
  %v574 = vsel %vm446, %v382, %v510
  %v575 = vsel %vm447, %v383, %v511
  %v576 = vsel %vm448, %v384, %v512
  %v577 = vsel %vm449, %v385, %v513
  %v578 = vsel %vm450, %v386, %v514
  %v579 = vsel %vm451, %v387, %v515
  %v580 = vsel %vm452, %v388, %v516
  %v581 = vsel %vm453, %v389, %v517
  %v582 = vld [vmem:[%s2] sm:$0xff]
  %v583 = vld [vmem:[%s2 + $0x8] sm:$0xff]
  %v584 = vld [vmem:[%s2 + $0x10] sm:$0xff]
  %v585 = vld [vmem:[%s2 + $0x18] sm:$0xff]
  %v586 = vld [vmem:[%s2 + $0x20] sm:$0xff]
  %v587 = vld [vmem:[%s2 + $0x28] sm:$0xff]
  %v588 = vld [vmem:[%s2 + $0x30] sm:$0xff]
  %v589 = vld [vmem:[%s2 + $0x38] sm:$0xff]
  %v590 = vld [vmem:[%s2 + $0x40] sm:$0xff]
  %v591 = vld [vmem:[%s2 + $0x48] sm:$0xff]
  %v592 = vld [vmem:[%s2 + $0x50] sm:$0xff]
  %v593 = vld [vmem:[%s2 + $0x58] sm:$0xff]
  %v594 = vld [vmem:[%s2 + $0x60] sm:$0xff]
  %v595 = vld [vmem:[%s2 + $0x68] sm:$0xff]
  %v596 = vld [vmem:[%s2 + $0x70] sm:$0xff]
  %v597 = vld [vmem:[%s2 + $0x78] sm:$0xff]
  %v598 = vunpack.c.0.s8 %v582
  %v599 = vunpack.c.0.s8 %v583
  %v600 = vunpack.c.1.s8 %v582
  %v601 = vunpack.c.1.s8 %v583
  %v602 = vunpack.c.2.s8 %v582
  %v603 = vunpack.c.2.s8 %v583
  %v604 = vunpack.c.3.s8 %v582
  %v605 = vunpack.c.3.s8 %v583
  %v606 = vunpack.c.0.s8 %v584
  %v607 = vunpack.c.0.s8 %v585
  %v608 = vunpack.c.1.s8 %v584
  %v609 = vunpack.c.1.s8 %v585
  %v610 = vunpack.c.2.s8 %v584
  %v611 = vunpack.c.2.s8 %v585
  %v612 = vunpack.c.3.s8 %v584
  %v613 = vunpack.c.3.s8 %v585
  %v614 = vunpack.c.0.s8 %v586
  %v615 = vunpack.c.0.s8 %v587
  %v616 = vunpack.c.1.s8 %v586
  %v617 = vunpack.c.1.s8 %v587
  %v618 = vunpack.c.2.s8 %v586
  %v619 = vunpack.c.2.s8 %v587
  %v620 = vunpack.c.3.s8 %v586
  %v621 = vunpack.c.3.s8 %v587
  %v622 = vunpack.c.0.s8 %v588
  %v623 = vunpack.c.0.s8 %v589
  %v624 = vunpack.c.1.s8 %v588
  %v625 = vunpack.c.1.s8 %v589
  %v626 = vunpack.c.2.s8 %v588
  %v627 = vunpack.c.2.s8 %v589
  %v628 = vunpack.c.3.s8 %v588
  %v629 = vunpack.c.3.s8 %v589
  %v630 = vunpack.c.0.s8 %v590
  %v631 = vunpack.c.0.s8 %v591
  %v632 = vunpack.c.1.s8 %v590
  %v633 = vunpack.c.1.s8 %v591
  %v634 = vunpack.c.2.s8 %v590
  %v635 = vunpack.c.2.s8 %v591
  %v636 = vunpack.c.3.s8 %v590
  %v637 = vunpack.c.3.s8 %v591
  %v638 = vunpack.c.0.s8 %v592
  %v639 = vunpack.c.0.s8 %v593
  %v640 = vunpack.c.1.s8 %v592
  %v641 = vunpack.c.1.s8 %v593
  %v642 = vunpack.c.2.s8 %v592
  %v643 = vunpack.c.2.s8 %v593
  %v644 = vunpack.c.3.s8 %v592
  %v645 = vunpack.c.3.s8 %v593
  %v646 = vunpack.c.0.s8 %v594
  %v647 = vunpack.c.0.s8 %v595
  %v648 = vunpack.c.1.s8 %v594
  %v649 = vunpack.c.1.s8 %v595
  %v650 = vunpack.c.2.s8 %v594
  %v651 = vunpack.c.2.s8 %v595
  %v652 = vunpack.c.3.s8 %v594
  %v653 = vunpack.c.3.s8 %v595
  %v654 = vunpack.c.0.s8 %v596
  %v655 = vunpack.c.0.s8 %v597
  %v656 = vunpack.c.1.s8 %v596
  %v657 = vunpack.c.1.s8 %v597
  %v658 = vunpack.c.2.s8 %v596
  %v659 = vunpack.c.2.s8 %v597
  %v660 = vunpack.c.3.s8 %v596
  %v661 = vunpack.c.3.s8 %v597
  %v662 = vcvt.s32.f32 %v598
  %v663 = vcvt.s32.f32 %v599
  %v664 = vcvt.s32.f32 %v600
  %v665 = vcvt.s32.f32 %v601
  %v666 = vcvt.s32.f32 %v602
  %v667 = vcvt.s32.f32 %v603
  %v668 = vcvt.s32.f32 %v604
  %v669 = vcvt.s32.f32 %v605
  %v670 = vcvt.s32.f32 %v606
  %v671 = vcvt.s32.f32 %v607
  %v672 = vcvt.s32.f32 %v608
  %v673 = vcvt.s32.f32 %v609
  %v674 = vcvt.s32.f32 %v610
  %v675 = vcvt.s32.f32 %v611
  %v676 = vcvt.s32.f32 %v612
  %v677 = vcvt.s32.f32 %v613
  %v678 = vcvt.s32.f32 %v614
  %v679 = vcvt.s32.f32 %v615
  %v680 = vcvt.s32.f32 %v616
  %v681 = vcvt.s32.f32 %v617
  %v682 = vcvt.s32.f32 %v618
  %v683 = vcvt.s32.f32 %v619
  %v684 = vcvt.s32.f32 %v620
  %v685 = vcvt.s32.f32 %v621
  %v686 = vcvt.s32.f32 %v622
  %v687 = vcvt.s32.f32 %v623
  %v688 = vcvt.s32.f32 %v624
  %v689 = vcvt.s32.f32 %v625
  %v690 = vcvt.s32.f32 %v626
  %v691 = vcvt.s32.f32 %v627
  %v692 = vcvt.s32.f32 %v628
  %v693 = vcvt.s32.f32 %v629
  %v694 = vcvt.s32.f32 %v630
  %v695 = vcvt.s32.f32 %v631
  %v696 = vcvt.s32.f32 %v632
  %v697 = vcvt.s32.f32 %v633
  %v698 = vcvt.s32.f32 %v634
  %v699 = vcvt.s32.f32 %v635
  %v700 = vcvt.s32.f32 %v636
  %v701 = vcvt.s32.f32 %v637
  %v702 = vcvt.s32.f32 %v638
  %v703 = vcvt.s32.f32 %v639
  %v704 = vcvt.s32.f32 %v640
  %v705 = vcvt.s32.f32 %v641
  %v706 = vcvt.s32.f32 %v642
  %v707 = vcvt.s32.f32 %v643
  %v708 = vcvt.s32.f32 %v644
  %v709 = vcvt.s32.f32 %v645
  %v710 = vcvt.s32.f32 %v646
  %v711 = vcvt.s32.f32 %v647
  %v712 = vcvt.s32.f32 %v648
  %v713 = vcvt.s32.f32 %v649
  %v714 = vcvt.s32.f32 %v650
  %v715 = vcvt.s32.f32 %v651
  %v716 = vcvt.s32.f32 %v652
  %v717 = vcvt.s32.f32 %v653
  %v718 = vcvt.s32.f32 %v654
  %v719 = vcvt.s32.f32 %v655
  %v720 = vcvt.s32.f32 %v656
  %v721 = vcvt.s32.f32 %v657
  %v722 = vcvt.s32.f32 %v658
  %v723 = vcvt.s32.f32 %v659
  %v724 = vcvt.s32.f32 %v660
  %v725 = vcvt.s32.f32 %v661
  %vm726 = vcmp.gt.f32.partialorder %v662, 0.0
  %vm727 = vcmp.gt.f32.partialorder %v663, 0.0
  %vm728 = vcmp.gt.f32.partialorder %v664, 0.0
  %vm729 = vcmp.gt.f32.partialorder %v665, 0.0
  %vm730 = vcmp.gt.f32.partialorder %v666, 0.0
  %vm731 = vcmp.gt.f32.partialorder %v667, 0.0
  %vm732 = vcmp.gt.f32.partialorder %v668, 0.0
  %vm733 = vcmp.gt.f32.partialorder %v669, 0.0
  %vm734 = vcmp.gt.f32.partialorder %v670, 0.0
  %vm735 = vcmp.gt.f32.partialorder %v671, 0.0
  %vm736 = vcmp.gt.f32.partialorder %v672, 0.0
  %vm737 = vcmp.gt.f32.partialorder %v673, 0.0
  %vm738 = vcmp.gt.f32.partialorder %v674, 0.0
  %vm739 = vcmp.gt.f32.partialorder %v675, 0.0
  %vm740 = vcmp.gt.f32.partialorder %v676, 0.0
  %vm741 = vcmp.gt.f32.partialorder %v677, 0.0
  %vm742 = vcmp.gt.f32.partialorder %v678, 0.0
  %vm743 = vcmp.gt.f32.partialorder %v679, 0.0
  %vm744 = vcmp.gt.f32.partialorder %v680, 0.0
  %vm745 = vcmp.gt.f32.partialorder %v681, 0.0
  %vm746 = vcmp.gt.f32.partialorder %v682, 0.0
  %vm747 = vcmp.gt.f32.partialorder %v683, 0.0
  %vm748 = vcmp.gt.f32.partialorder %v684, 0.0
  %vm749 = vcmp.gt.f32.partialorder %v685, 0.0
  %vm750 = vcmp.gt.f32.partialorder %v686, 0.0
  %vm751 = vcmp.gt.f32.partialorder %v687, 0.0
  %vm752 = vcmp.gt.f32.partialorder %v688, 0.0
  %vm753 = vcmp.gt.f32.partialorder %v689, 0.0
  %vm754 = vcmp.gt.f32.partialorder %v690, 0.0
  %vm755 = vcmp.gt.f32.partialorder %v691, 0.0
  %vm756 = vcmp.gt.f32.partialorder %v692, 0.0
  %vm757 = vcmp.gt.f32.partialorder %v693, 0.0
  %vm758 = vcmp.gt.f32.partialorder %v694, 0.0
  %vm759 = vcmp.gt.f32.partialorder %v695, 0.0
  %vm760 = vcmp.gt.f32.partialorder %v696, 0.0
  %vm761 = vcmp.gt.f32.partialorder %v697, 0.0
  %vm762 = vcmp.gt.f32.partialorder %v698, 0.0
  %vm763 = vcmp.gt.f32.partialorder %v699, 0.0
  %vm764 = vcmp.gt.f32.partialorder %v700, 0.0
  %vm765 = vcmp.gt.f32.partialorder %v701, 0.0
  %vm766 = vcmp.gt.f32.partialorder %v702, 0.0
  %vm767 = vcmp.gt.f32.partialorder %v703, 0.0
  %vm768 = vcmp.gt.f32.partialorder %v704, 0.0
  %vm769 = vcmp.gt.f32.partialorder %v705, 0.0
  %vm770 = vcmp.gt.f32.partialorder %v706, 0.0
  %vm771 = vcmp.gt.f32.partialorder %v707, 0.0
  %vm772 = vcmp.gt.f32.partialorder %v708, 0.0
  %vm773 = vcmp.gt.f32.partialorder %v709, 0.0
  %vm774 = vcmp.gt.f32.partialorder %v710, 0.0
  %vm775 = vcmp.gt.f32.partialorder %v711, 0.0
  %vm776 = vcmp.gt.f32.partialorder %v712, 0.0
  %vm777 = vcmp.gt.f32.partialorder %v713, 0.0
  %vm778 = vcmp.gt.f32.partialorder %v714, 0.0
  %vm779 = vcmp.gt.f32.partialorder %v715, 0.0
  %vm780 = vcmp.gt.f32.partialorder %v716, 0.0
  %vm781 = vcmp.gt.f32.partialorder %v717, 0.0
  %vm782 = vcmp.gt.f32.partialorder %v718, 0.0
  %vm783 = vcmp.gt.f32.partialorder %v719, 0.0
  %vm784 = vcmp.gt.f32.partialorder %v720, 0.0
  %vm785 = vcmp.gt.f32.partialorder %v721, 0.0
  %vm786 = vcmp.gt.f32.partialorder %v722, 0.0
  %vm787 = vcmp.gt.f32.partialorder %v723, 0.0
  %vm788 = vcmp.gt.f32.partialorder %v724, 0.0
  %vm789 = vcmp.gt.f32.partialorder %v725, 0.0
  %v790 = vsel %vm726, %v518, -1e+30
  %v791 = vsel %vm727, %v519, -1e+30
  %v792 = vsel %vm728, %v520, -1e+30
  %v793 = vsel %vm729, %v521, -1e+30
  %v794 = vsel %vm730, %v522, -1e+30
  %v795 = vsel %vm731, %v523, -1e+30
  %v796 = vsel %vm732, %v524, -1e+30
  %v797 = vsel %vm733, %v525, -1e+30
  %v798 = vsel %vm734, %v526, -1e+30
  %v799 = vsel %vm735, %v527, -1e+30
  %v800 = vsel %vm736, %v528, -1e+30
  %v801 = vsel %vm737, %v529, -1e+30
  %v802 = vsel %vm738, %v530, -1e+30
  %v803 = vsel %vm739, %v531, -1e+30
  %v804 = vsel %vm740, %v532, -1e+30
  %v805 = vsel %vm741, %v533, -1e+30
  %v806 = vsel %vm742, %v534, -1e+30
  %v807 = vsel %vm743, %v535, -1e+30
  %v808 = vsel %vm744, %v536, -1e+30
  %v809 = vsel %vm745, %v537, -1e+30
  %v810 = vsel %vm746, %v538, -1e+30
  %v811 = vsel %vm747, %v539, -1e+30
  %v812 = vsel %vm748, %v540, -1e+30
  %v813 = vsel %vm749, %v541, -1e+30
  %v814 = vsel %vm750, %v542, -1e+30
  %v815 = vsel %vm751, %v543, -1e+30
  %v816 = vsel %vm752, %v544, -1e+30
  %v817 = vsel %vm753, %v545, -1e+30
  %v818 = vsel %vm754, %v546, -1e+30
  %v819 = vsel %vm755, %v547, -1e+30
  %v820 = vsel %vm756, %v548, -1e+30
  %v821 = vsel %vm757, %v549, -1e+30
  %v822 = vsel %vm758, %v550, -1e+30
  %v823 = vsel %vm759, %v551, -1e+30
  %v824 = vsel %vm760, %v552, -1e+30
  %v825 = vsel %vm761, %v553, -1e+30
  %v826 = vsel %vm762, %v554, -1e+30
  %v827 = vsel %vm763, %v555, -1e+30
  %v828 = vsel %vm764, %v556, -1e+30
  %v829 = vsel %vm765, %v557, -1e+30
  %v830 = vsel %vm766, %v558, -1e+30
  %v831 = vsel %vm767, %v559, -1e+30
  %v832 = vsel %vm768, %v560, -1e+30
  %v833 = vsel %vm769, %v561, -1e+30
  %v834 = vsel %vm770, %v562, -1e+30
  %v835 = vsel %vm771, %v563, -1e+30
  %v836 = vsel %vm772, %v564, -1e+30
  %v837 = vsel %vm773, %v565, -1e+30
  %v838 = vsel %vm774, %v566, -1e+30
  %v839 = vsel %vm775, %v567, -1e+30
  %v840 = vsel %vm776, %v568, -1e+30
  %v841 = vsel %vm777, %v569, -1e+30
  %v842 = vsel %vm778, %v570, -1e+30
  %v843 = vsel %vm779, %v571, -1e+30
  %v844 = vsel %vm780, %v572, -1e+30
  %v845 = vsel %vm781, %v573, -1e+30
  %v846 = vsel %vm782, %v574, -1e+30
  %v847 = vsel %vm783, %v575, -1e+30
  %v848 = vsel %vm784, %v576, -1e+30
  %v849 = vsel %vm785, %v577, -1e+30
  %v850 = vsel %vm786, %v578, -1e+30
  %v851 = vsel %vm787, %v579, -1e+30
  %v852 = vsel %vm788, %v580, -1e+30
  %v853 = vsel %vm789, %v581, -1e+30
  %v854 = vld [vmem:[#allocation2] sm:$0xff]
  %v855 = vld [vmem:[#allocation2 + $0x8] sm:$0xff]
  %v856 = vld [vmem:[#allocation2 + $0x10] sm:$0xff]
  %v857 = vld [vmem:[#allocation2 + $0x18] sm:$0xff]
  %v858 = vld [vmem:[#allocation2 + $0x20] sm:$0xff]
  %v859 = vld [vmem:[#allocation2 + $0x28] sm:$0xff]
  %v860 = vld [vmem:[#allocation2 + $0x30] sm:$0xff]
  %v861 = vld [vmem:[#allocation2 + $0x38] sm:$0xff]
  %v862 = vld [vmem:[#allocation2 + $0x40] sm:$0xff]
  %v863 = vld [vmem:[#allocation2 + $0x48] sm:$0xff]
  %v864 = vld [vmem:[#allocation2 + $0x50] sm:$0xff]
  %v865 = vld [vmem:[#allocation2 + $0x58] sm:$0xff]
  %v866 = vld [vmem:[#allocation2 + $0x60] sm:$0xff]
  %v867 = vld [vmem:[#allocation2 + $0x68] sm:$0xff]
  %v868 = vld [vmem:[#allocation2 + $0x70] sm:$0xff]
  %v869 = vld [vmem:[#allocation2 + $0x78] sm:$0xff]
  %v870 = vld [vmem:[#allocation2 + $0x80] sm:$0xff]
  %v871 = vld [vmem:[#allocation2 + $0x88] sm:$0xff]
  %v872 = vld [vmem:[#allocation2 + $0x90] sm:$0xff]
  %v873 = vld [vmem:[#allocation2 + $0x98] sm:$0xff]
  %v874 = vld [vmem:[#allocation2 + $0xa0] sm:$0xff]
  %v875 = vld [vmem:[#allocation2 + $0xa8] sm:$0xff]
  %v876 = vld [vmem:[#allocation2 + $0xb0] sm:$0xff]
  %v877 = vld [vmem:[#allocation2 + $0xb8] sm:$0xff]
  %v878 = vld [vmem:[#allocation2 + $0xc0] sm:$0xff]
  %v879 = vld [vmem:[#allocation2 + $0xc8] sm:$0xff]
  %v880 = vld [vmem:[#allocation2 + $0xd0] sm:$0xff]
  %v881 = vld [vmem:[#allocation2 + $0xd8] sm:$0xff]
  %v882 = vld [vmem:[#allocation2 + $0xe0] sm:$0xff]
  %v883 = vld [vmem:[#allocation2 + $0xe8] sm:$0xff]
  %v884 = vld [vmem:[#allocation2 + $0xf0] sm:$0xff]
  %v885 = vld [vmem:[#allocation2 + $0xf8] sm:$0xff]
  %v886 = vmax.f32 %v790, %v791
  %887 = vmax.xlane.f32.xlu0 %v886
  %v888 = vpop.xlane.xlu0 %887
  %v889 = vmax.f32 %v792, %v793
  %890 = vmax.xlane.f32.xlu0 %v889
  %v891 = vpop.xlane.xlu0 %890
  %v892 = vmax.f32 %v794, %v795
  %893 = vmax.xlane.f32.xlu0 %v892
  %v894 = vpop.xlane.xlu0 %893
  %v895 = vmax.f32 %v796, %v797
  %896 = vmax.xlane.f32.xlu0 %v895
  %v897 = vpop.xlane.xlu0 %896
  %v898 = vmax.f32 %v798, %v799
  %899 = vmax.xlane.f32.xlu0 %v898
  %v900 = vpop.xlane.xlu0 %899
  %v901 = vmax.f32 %v800, %v801
  %902 = vmax.xlane.f32.xlu0 %v901
  %v903 = vpop.xlane.xlu0 %902
  %v904 = vmax.f32 %v802, %v803
  %905 = vmax.xlane.f32.xlu0 %v904
  %v906 = vpop.xlane.xlu0 %905
  %v907 = vmax.f32 %v804, %v805
  %908 = vmax.xlane.f32.xlu0 %v907
  %v909 = vpop.xlane.xlu0 %908
  %v910 = vmax.f32 %v806, %v807
  %911 = vmax.xlane.f32.xlu0 %v910
  %v912 = vpop.xlane.xlu0 %911
  %v913 = vmax.f32 %v808, %v809
  %914 = vmax.xlane.f32.xlu0 %v913
  %v915 = vpop.xlane.xlu0 %914
  %v916 = vmax.f32 %v810, %v811
  %917 = vmax.xlane.f32.xlu0 %v916
  %v918 = vpop.xlane.xlu0 %917
  %v919 = vmax.f32 %v812, %v813
  %920 = vmax.xlane.f32.xlu0 %v919
  %v921 = vpop.xlane.xlu0 %920
  %v922 = vmax.f32 %v814, %v815
  %923 = vmax.xlane.f32.xlu0 %v922
  %v924 = vpop.xlane.xlu0 %923
  %v925 = vmax.f32 %v816, %v817
  %926 = vmax.xlane.f32.xlu0 %v925
  %v927 = vpop.xlane.xlu0 %926
  %v928 = vmax.f32 %v818, %v819
  %929 = vmax.xlane.f32.xlu0 %v928
  %v930 = vpop.xlane.xlu0 %929
  %v931 = vmax.f32 %v820, %v821
  %932 = vmax.xlane.f32.xlu0 %v931
  %v933 = vpop.xlane.xlu0 %932
  %v934 = vmax.f32 %v822, %v823
  %935 = vmax.xlane.f32.xlu0 %v934
  %v936 = vpop.xlane.xlu0 %935
  %v937 = vmax.f32 %v824, %v825
  %938 = vmax.xlane.f32.xlu0 %v937
  %v939 = vpop.xlane.xlu0 %938
  %v940 = vmax.f32 %v826, %v827
  %941 = vmax.xlane.f32.xlu0 %v940
  %v942 = vpop.xlane.xlu0 %941
  %v943 = vmax.f32 %v828, %v829
  %944 = vmax.xlane.f32.xlu0 %v943
  %v945 = vpop.xlane.xlu0 %944
  %v946 = vmax.f32 %v830, %v831
  %947 = vmax.xlane.f32.xlu0 %v946
  %v948 = vpop.xlane.xlu0 %947
  %v949 = vmax.f32 %v832, %v833
  %950 = vmax.xlane.f32.xlu0 %v949
  %v951 = vpop.xlane.xlu0 %950
  %v952 = vmax.f32 %v834, %v835
  %953 = vmax.xlane.f32.xlu0 %v952
  %v954 = vpop.xlane.xlu0 %953
  %v955 = vmax.f32 %v836, %v837
  %956 = vmax.xlane.f32.xlu0 %v955
  %v957 = vpop.xlane.xlu0 %956
  %v958 = vmax.f32 %v838, %v839
  %959 = vmax.xlane.f32.xlu0 %v958
  %v960 = vpop.xlane.xlu0 %959
  %v961 = vmax.f32 %v840, %v841
  %962 = vmax.xlane.f32.xlu0 %v961
  %v963 = vpop.xlane.xlu0 %962
  %v964 = vmax.f32 %v842, %v843
  %965 = vmax.xlane.f32.xlu0 %v964
  %v966 = vpop.xlane.xlu0 %965
  %v967 = vmax.f32 %v844, %v845
  %968 = vmax.xlane.f32.xlu0 %v967
  %v969 = vpop.xlane.xlu0 %968
  %v970 = vmax.f32 %v846, %v847
  %971 = vmax.xlane.f32.xlu0 %v970
  %v972 = vpop.xlane.xlu0 %971
  %v973 = vmax.f32 %v848, %v849
  %974 = vmax.xlane.f32.xlu0 %v973
  %v975 = vpop.xlane.xlu0 %974
  %v976 = vmax.f32 %v850, %v851
  %977 = vmax.xlane.f32.xlu0 %v976
  %v978 = vpop.xlane.xlu0 %977
  %v979 = vmax.f32 %v852, %v853
  %980 = vmax.xlane.f32.xlu0 %v979
  %v981 = vpop.xlane.xlu0 %980
  %v982 = vmax.f32 %v854, %v888
  %v983 = vmax.f32 %v855, %v891
  %v984 = vmax.f32 %v856, %v894
  %v985 = vmax.f32 %v857, %v897
  %v986 = vmax.f32 %v858, %v900
  %v987 = vmax.f32 %v859, %v903
  %v988 = vmax.f32 %v860, %v906
  %v989 = vmax.f32 %v861, %v909
  %v990 = vmax.f32 %v862, %v912
  %v991 = vmax.f32 %v863, %v915
  %v992 = vmax.f32 %v864, %v918
  %v993 = vmax.f32 %v865, %v921
  %v994 = vmax.f32 %v866, %v924
  %v995 = vmax.f32 %v867, %v927
  %v996 = vmax.f32 %v868, %v930
  %v997 = vmax.f32 %v869, %v933
  %v998 = vmax.f32 %v870, %v936
  %v999 = vmax.f32 %v871, %v939
  %v1000 = vmax.f32 %v872, %v942
  %v1001 = vmax.f32 %v873, %v945
  %v1002 = vmax.f32 %v874, %v948
  %v1003 = vmax.f32 %v875, %v951
  %v1004 = vmax.f32 %v876, %v954
  %v1005 = vmax.f32 %v877, %v957
  %v1006 = vmax.f32 %v878, %v960
  %v1007 = vmax.f32 %v879, %v963
  %v1008 = vmax.f32 %v880, %v966
  %v1009 = vmax.f32 %v881, %v969
  %v1010 = vmax.f32 %v882, %v972
  %v1011 = vmax.f32 %v883, %v975
  %v1012 = vmax.f32 %v884, %v978
  %v1013 = vmax.f32 %v885, %v981
  %v1014 = vsub.f32 %v854, %v982
  %v1015 = vsub.f32 %v855, %v983
  %v1016 = vsub.f32 %v856, %v984
  %v1017 = vsub.f32 %v857, %v985
  %v1018 = vsub.f32 %v858, %v986
  %v1019 = vsub.f32 %v859, %v987
  %v1020 = vsub.f32 %v860, %v988
  %v1021 = vsub.f32 %v861, %v989
  %v1022 = vsub.f32 %v862, %v990
  %v1023 = vsub.f32 %v863, %v991
  %v1024 = vsub.f32 %v864, %v992
  %v1025 = vsub.f32 %v865, %v993
  %v1026 = vsub.f32 %v866, %v994
  %v1027 = vsub.f32 %v867, %v995
  %v1028 = vsub.f32 %v868, %v996
  %v1029 = vsub.f32 %v869, %v997
  %v1030 = vsub.f32 %v870, %v998
  %v1031 = vsub.f32 %v871, %v999
  %v1032 = vsub.f32 %v872, %v1000
  %v1033 = vsub.f32 %v873, %v1001
  %v1034 = vsub.f32 %v874, %v1002
  %v1035 = vsub.f32 %v875, %v1003
  %v1036 = vsub.f32 %v876, %v1004
  %v1037 = vsub.f32 %v877, %v1005
  %v1038 = vsub.f32 %v878, %v1006
  %v1039 = vsub.f32 %v879, %v1007
  %v1040 = vsub.f32 %v880, %v1008
  %v1041 = vsub.f32 %v881, %v1009
  %v1042 = vsub.f32 %v882, %v1010
  %v1043 = vsub.f32 %v883, %v1011
  %v1044 = vsub.f32 %v884, %v1012
  %v1045 = vsub.f32 %v885, %v1013
  %v1046 = vmul.f32 %v1014, 1.442695
  %v1047 = vpow.pop %v1046
  %v1048 = vmul.f32 %v1015, 1.442695
  %v1049 = vpow.pop %v1048
  %v1050 = vmul.f32 %v1016, 1.442695
  %v1051 = vpow.pop %v1050
  %v1052 = vmul.f32 %v1017, 1.442695
  %v1053 = vpow.pop %v1052
  %v1054 = vmul.f32 %v1018, 1.442695
  %v1055 = vpow.pop %v1054
  %v1056 = vmul.f32 %v1019, 1.442695
  %v1057 = vpow.pop %v1056
  %v1058 = vmul.f32 %v1020, 1.442695
  %v1059 = vpow.pop %v1058
  %v1060 = vmul.f32 %v1021, 1.442695
  %v1061 = vpow.pop %v1060
  %v1062 = vmul.f32 %v1022, 1.442695
  %v1063 = vpow.pop %v1062
  %v1064 = vmul.f32 %v1023, 1.442695
  %v1065 = vpow.pop %v1064
  %v1066 = vmul.f32 %v1024, 1.442695
  %v1067 = vpow.pop %v1066
  %v1068 = vmul.f32 %v1025, 1.442695
  %v1069 = vpow.pop %v1068
  %v1070 = vmul.f32 %v1026, 1.442695
  %v1071 = vpow.pop %v1070
  %v1072 = vmul.f32 %v1027, 1.442695
  %v1073 = vpow.pop %v1072
  %v1074 = vmul.f32 %v1028, 1.442695
  %v1075 = vpow.pop %v1074
  %v1076 = vmul.f32 %v1029, 1.442695
  %v1077 = vpow.pop %v1076
  %v1078 = vmul.f32 %v1030, 1.442695
  %v1079 = vpow.pop %v1078
  %v1080 = vmul.f32 %v1031, 1.442695
  %v1081 = vpow.pop %v1080
  %v1082 = vmul.f32 %v1032, 1.442695
  %v1083 = vpow.pop %v1082
  %v1084 = vmul.f32 %v1033, 1.442695
  %v1085 = vpow.pop %v1084
  %v1086 = vmul.f32 %v1034, 1.442695
  %v1087 = vpow.pop %v1086
  %v1088 = vmul.f32 %v1035, 1.442695
  %v1089 = vpow.pop %v1088
  %v1090 = vmul.f32 %v1036, 1.442695
  %v1091 = vpow.pop %v1090
  %v1092 = vmul.f32 %v1037, 1.442695
  %v1093 = vpow.pop %v1092
  %v1094 = vmul.f32 %v1038, 1.442695
  %v1095 = vpow.pop %v1094
  %v1096 = vmul.f32 %v1039, 1.442695
  %v1097 = vpow.pop %v1096
  %v1098 = vmul.f32 %v1040, 1.442695
  %v1099 = vpow.pop %v1098
  %v1100 = vmul.f32 %v1041, 1.442695
  %v1101 = vpow.pop %v1100
  %v1102 = vmul.f32 %v1042, 1.442695
  %v1103 = vpow.pop %v1102
  %v1104 = vmul.f32 %v1043, 1.442695
  %v1105 = vpow.pop %v1104
  %v1106 = vmul.f32 %v1044, 1.442695
  %v1107 = vpow.pop %v1106
  %v1108 = vmul.f32 %v1045, 1.442695
  %v1109 = vpow.pop %v1108
  %1111 = vset.pattern.permute.xlu0 0
  %1112 = vperm.xlu0 %1111, %v982
  %v1113 = vpop.permute.xlu0 %1112
  %1116 = vset.pattern.permute.xlu0 0
  %1117 = vperm.xlu0 %1116, %v983
  %v1118 = vpop.permute.xlu0 %1117
  %1121 = vset.pattern.permute.xlu0 0
  %1122 = vperm.xlu0 %1121, %v984
  %v1123 = vpop.permute.xlu0 %1122
  %1126 = vset.pattern.permute.xlu0 0
  %1127 = vperm.xlu0 %1126, %v985
  %v1128 = vpop.permute.xlu0 %1127
  %1131 = vset.pattern.permute.xlu0 0
  %1132 = vperm.xlu0 %1131, %v986
  %v1133 = vpop.permute.xlu0 %1132
  %1136 = vset.pattern.permute.xlu0 0
  %1137 = vperm.xlu0 %1136, %v987
  %v1138 = vpop.permute.xlu0 %1137
  %1141 = vset.pattern.permute.xlu0 0
  %1142 = vperm.xlu0 %1141, %v988
  %v1143 = vpop.permute.xlu0 %1142
  %1146 = vset.pattern.permute.xlu0 0
  %1147 = vperm.xlu0 %1146, %v989
  %v1148 = vpop.permute.xlu0 %1147
  %1151 = vset.pattern.permute.xlu0 0
  %1152 = vperm.xlu0 %1151, %v990
  %v1153 = vpop.permute.xlu0 %1152
  %1156 = vset.pattern.permute.xlu0 0
  %1157 = vperm.xlu0 %1156, %v991
  %v1158 = vpop.permute.xlu0 %1157
  %1161 = vset.pattern.permute.xlu0 0
  %1162 = vperm.xlu0 %1161, %v992
  %v1163 = vpop.permute.xlu0 %1162
  %1166 = vset.pattern.permute.xlu0 0
  %1167 = vperm.xlu0 %1166, %v993
  %v1168 = vpop.permute.xlu0 %1167
  %1171 = vset.pattern.permute.xlu0 0
  %1172 = vperm.xlu0 %1171, %v994
  %v1173 = vpop.permute.xlu0 %1172
  %1176 = vset.pattern.permute.xlu0 0
  %1177 = vperm.xlu0 %1176, %v995
  %v1178 = vpop.permute.xlu0 %1177
  %1181 = vset.pattern.permute.xlu0 0
  %1182 = vperm.xlu0 %1181, %v996
  %v1183 = vpop.permute.xlu0 %1182
  %1186 = vset.pattern.permute.xlu0 0
  %1187 = vperm.xlu0 %1186, %v997
  %v1188 = vpop.permute.xlu0 %1187
  %1191 = vset.pattern.permute.xlu0 0
  %1192 = vperm.xlu0 %1191, %v998
  %v1193 = vpop.permute.xlu0 %1192
  %1196 = vset.pattern.permute.xlu0 0
  %1197 = vperm.xlu0 %1196, %v999
  %v1198 = vpop.permute.xlu0 %1197
  %1201 = vset.pattern.permute.xlu0 0
  %1202 = vperm.xlu0 %1201, %v1000
  %v1203 = vpop.permute.xlu0 %1202
  %1206 = vset.pattern.permute.xlu0 0
  %1207 = vperm.xlu0 %1206, %v1001
  %v1208 = vpop.permute.xlu0 %1207
  %1211 = vset.pattern.permute.xlu0 0
  %1212 = vperm.xlu0 %1211, %v1002
  %v1213 = vpop.permute.xlu0 %1212
  %1216 = vset.pattern.permute.xlu0 0
  %1217 = vperm.xlu0 %1216, %v1003
  %v1218 = vpop.permute.xlu0 %1217
  %1221 = vset.pattern.permute.xlu0 0
  %1222 = vperm.xlu0 %1221, %v1004
  %v1223 = vpop.permute.xlu0 %1222
  %1226 = vset.pattern.permute.xlu0 0
  %1227 = vperm.xlu0 %1226, %v1005
  %v1228 = vpop.permute.xlu0 %1227
  %1231 = vset.pattern.permute.xlu0 0
  %1232 = vperm.xlu0 %1231, %v1006
  %v1233 = vpop.permute.xlu0 %1232
  %1236 = vset.pattern.permute.xlu0 0
  %1237 = vperm.xlu0 %1236, %v1007
  %v1238 = vpop.permute.xlu0 %1237
  %1241 = vset.pattern.permute.xlu0 0
  %1242 = vperm.xlu0 %1241, %v1008
  %v1243 = vpop.permute.xlu0 %1242
  %1246 = vset.pattern.permute.xlu0 0
  %1247 = vperm.xlu0 %1246, %v1009
  %v1248 = vpop.permute.xlu0 %1247
  %1251 = vset.pattern.permute.xlu0 0
  %1252 = vperm.xlu0 %1251, %v1010
  %v1253 = vpop.permute.xlu0 %1252
  %1256 = vset.pattern.permute.xlu0 0
  %1257 = vperm.xlu0 %1256, %v1011
  %v1258 = vpop.permute.xlu0 %1257
  %1261 = vset.pattern.permute.xlu0 0
  %1262 = vperm.xlu0 %1261, %v1012
  %v1263 = vpop.permute.xlu0 %1262
  %1266 = vset.pattern.permute.xlu0 0
  %1267 = vperm.xlu0 %1266, %v1013
  %v1268 = vpop.permute.xlu0 %1267
  %v1270 = vsub.f32 %v790, %v1113
  %v1271 = vsub.f32 %v791, %v1113
  %v1272 = vsub.f32 %v792, %v1118
  %v1273 = vsub.f32 %v793, %v1118
  %v1274 = vsub.f32 %v794, %v1123
  %v1275 = vsub.f32 %v795, %v1123
  %v1276 = vsub.f32 %v796, %v1128
  %v1277 = vsub.f32 %v797, %v1128
  %v1278 = vsub.f32 %v798, %v1133
  %v1279 = vsub.f32 %v799, %v1133
  %v1280 = vsub.f32 %v800, %v1138
  %v1281 = vsub.f32 %v801, %v1138
  %v1282 = vsub.f32 %v802, %v1143
  %v1283 = vsub.f32 %v803, %v1143
  %v1284 = vsub.f32 %v804, %v1148
  %v1285 = vsub.f32 %v805, %v1148
  %v1286 = vsub.f32 %v806, %v1153
  %v1287 = vsub.f32 %v807, %v1153
  %v1288 = vsub.f32 %v808, %v1158
  %v1289 = vsub.f32 %v809, %v1158
  %v1290 = vsub.f32 %v810, %v1163
  %v1291 = vsub.f32 %v811, %v1163
  %v1292 = vsub.f32 %v812, %v1168
  %v1293 = vsub.f32 %v813, %v1168
  %v1294 = vsub.f32 %v814, %v1173
  %v1295 = vsub.f32 %v815, %v1173
  %v1296 = vsub.f32 %v816, %v1178
  %v1297 = vsub.f32 %v817, %v1178
  %v1298 = vsub.f32 %v818, %v1183
  %v1299 = vsub.f32 %v819, %v1183
  %v1300 = vsub.f32 %v820, %v1188
  %v1301 = vsub.f32 %v821, %v1188
  %v1302 = vsub.f32 %v822, %v1193
  %v1303 = vsub.f32 %v823, %v1193
  %v1304 = vsub.f32 %v824, %v1198
  %v1305 = vsub.f32 %v825, %v1198
  %v1306 = vsub.f32 %v826, %v1203
  %v1307 = vsub.f32 %v827, %v1203
  %v1308 = vsub.f32 %v828, %v1208
  %v1309 = vsub.f32 %v829, %v1208
  %v1310 = vsub.f32 %v830, %v1213
  %v1311 = vsub.f32 %v831, %v1213
  %v1312 = vsub.f32 %v832, %v1218
  %v1313 = vsub.f32 %v833, %v1218
  %v1314 = vsub.f32 %v834, %v1223
  %v1315 = vsub.f32 %v835, %v1223
  %v1316 = vsub.f32 %v836, %v1228
  %v1317 = vsub.f32 %v837, %v1228
  %v1318 = vsub.f32 %v838, %v1233
  %v1319 = vsub.f32 %v839, %v1233
  %v1320 = vsub.f32 %v840, %v1238
  %v1321 = vsub.f32 %v841, %v1238
  %v1322 = vsub.f32 %v842, %v1243
  %v1323 = vsub.f32 %v843, %v1243
  %v1324 = vsub.f32 %v844, %v1248
  %v1325 = vsub.f32 %v845, %v1248
  %v1326 = vsub.f32 %v846, %v1253
  %v1327 = vsub.f32 %v847, %v1253
  %v1328 = vsub.f32 %v848, %v1258
  %v1329 = vsub.f32 %v849, %v1258
  %v1330 = vsub.f32 %v850, %v1263
  %v1331 = vsub.f32 %v851, %v1263
  %v1332 = vsub.f32 %v852, %v1268
  %v1333 = vsub.f32 %v853, %v1268
  %v1334 = vmul.f32 %v1270, 1.442695
  %v1335 = vpow.pop %v1334
  %v1336 = vmul.f32 %v1271, 1.442695
  %v1337 = vpow.pop %v1336
  %v1338 = vmul.f32 %v1272, 1.442695
  %v1339 = vpow.pop %v1338
  %v1340 = vmul.f32 %v1273, 1.442695
  %v1341 = vpow.pop %v1340
  %v1342 = vmul.f32 %v1274, 1.442695
  %v1343 = vpow.pop %v1342
  %v1344 = vmul.f32 %v1275, 1.442695
  %v1345 = vpow.pop %v1344
  %v1346 = vmul.f32 %v1276, 1.442695
  %v1347 = vpow.pop %v1346
  %v1348 = vmul.f32 %v1277, 1.442695
  %v1349 = vpow.pop %v1348
  %v1350 = vmul.f32 %v1278, 1.442695
  %v1351 = vpow.pop %v1350
  %v1352 = vmul.f32 %v1279, 1.442695
  %v1353 = vpow.pop %v1352
  %v1354 = vmul.f32 %v1280, 1.442695
  %v1355 = vpow.pop %v1354
  %v1356 = vmul.f32 %v1281, 1.442695
  %v1357 = vpow.pop %v1356
  %v1358 = vmul.f32 %v1282, 1.442695
  %v1359 = vpow.pop %v1358
  %v1360 = vmul.f32 %v1283, 1.442695
  %v1361 = vpow.pop %v1360
  %v1362 = vmul.f32 %v1284, 1.442695
  %v1363 = vpow.pop %v1362
  %v1364 = vmul.f32 %v1285, 1.442695
  %v1365 = vpow.pop %v1364
  %v1366 = vmul.f32 %v1286, 1.442695
  %v1367 = vpow.pop %v1366
  %v1368 = vmul.f32 %v1287, 1.442695
  %v1369 = vpow.pop %v1368
  %v1370 = vmul.f32 %v1288, 1.442695
  %v1371 = vpow.pop %v1370
  %v1372 = vmul.f32 %v1289, 1.442695
  %v1373 = vpow.pop %v1372
  %v1374 = vmul.f32 %v1290, 1.442695
  %v1375 = vpow.pop %v1374
  %v1376 = vmul.f32 %v1291, 1.442695
  %v1377 = vpow.pop %v1376
  %v1378 = vmul.f32 %v1292, 1.442695
  %v1379 = vpow.pop %v1378
  %v1380 = vmul.f32 %v1293, 1.442695
  %v1381 = vpow.pop %v1380
  %v1382 = vmul.f32 %v1294, 1.442695
  %v1383 = vpow.pop %v1382
  %v1384 = vmul.f32 %v1295, 1.442695
  %v1385 = vpow.pop %v1384
  %v1386 = vmul.f32 %v1296, 1.442695
  %v1387 = vpow.pop %v1386
  %v1388 = vmul.f32 %v1297, 1.442695
  %v1389 = vpow.pop %v1388
  %v1390 = vmul.f32 %v1298, 1.442695
  %v1391 = vpow.pop %v1390
  %v1392 = vmul.f32 %v1299, 1.442695
  %v1393 = vpow.pop %v1392
  %v1394 = vmul.f32 %v1300, 1.442695
  %v1395 = vpow.pop %v1394
  %v1396 = vmul.f32 %v1301, 1.442695
  %v1397 = vpow.pop %v1396
  %v1398 = vmul.f32 %v1302, 1.442695
  %v1399 = vpow.pop %v1398
  %v1400 = vmul.f32 %v1303, 1.442695
  %v1401 = vpow.pop %v1400
  %v1402 = vmul.f32 %v1304, 1.442695
  %v1403 = vpow.pop %v1402
  %v1404 = vmul.f32 %v1305, 1.442695
  %v1405 = vpow.pop %v1404
  %v1406 = vmul.f32 %v1306, 1.442695
  %v1407 = vpow.pop %v1406
  %v1408 = vmul.f32 %v1307, 1.442695
  %v1409 = vpow.pop %v1408
  %v1410 = vmul.f32 %v1308, 1.442695
  %v1411 = vpow.pop %v1410
  %v1412 = vmul.f32 %v1309, 1.442695
  %v1413 = vpow.pop %v1412
  %v1414 = vmul.f32 %v1310, 1.442695
  %v1415 = vpow.pop %v1414
  %v1416 = vmul.f32 %v1311, 1.442695
  %v1417 = vpow.pop %v1416
  %v1418 = vmul.f32 %v1312, 1.442695
  %v1419 = vpow.pop %v1418
  %v1420 = vmul.f32 %v1313, 1.442695
  %v1421 = vpow.pop %v1420
  %v1422 = vmul.f32 %v1314, 1.442695
  %v1423 = vpow.pop %v1422
  %v1424 = vmul.f32 %v1315, 1.442695
  %v1425 = vpow.pop %v1424
  %v1426 = vmul.f32 %v1316, 1.442695
  %v1427 = vpow.pop %v1426
  %v1428 = vmul.f32 %v1317, 1.442695
  %v1429 = vpow.pop %v1428
  %v1430 = vmul.f32 %v1318, 1.442695
  %v1431 = vpow.pop %v1430
  %v1432 = vmul.f32 %v1319, 1.442695
  %v1433 = vpow.pop %v1432
  %v1434 = vmul.f32 %v1320, 1.442695
  %v1435 = vpow.pop %v1434
  %v1436 = vmul.f32 %v1321, 1.442695
  %v1437 = vpow.pop %v1436
  %v1438 = vmul.f32 %v1322, 1.442695
  %v1439 = vpow.pop %v1438
  %v1440 = vmul.f32 %v1323, 1.442695
  %v1441 = vpow.pop %v1440
  %v1442 = vmul.f32 %v1324, 1.442695
  %v1443 = vpow.pop %v1442
  %v1444 = vmul.f32 %v1325, 1.442695
  %v1445 = vpow.pop %v1444
  %v1446 = vmul.f32 %v1326, 1.442695
  %v1447 = vpow.pop %v1446
  %v1448 = vmul.f32 %v1327, 1.442695
  %v1449 = vpow.pop %v1448
  %v1450 = vmul.f32 %v1328, 1.442695
  %v1451 = vpow.pop %v1450
  %v1452 = vmul.f32 %v1329, 1.442695
  %v1453 = vpow.pop %v1452
  %v1454 = vmul.f32 %v1330, 1.442695
  %v1455 = vpow.pop %v1454
  %v1456 = vmul.f32 %v1331, 1.442695
  %v1457 = vpow.pop %v1456
  %v1458 = vmul.f32 %v1332, 1.442695
  %v1459 = vpow.pop %v1458
  %v1460 = vmul.f32 %v1333, 1.442695
  %v1461 = vpow.pop %v1460
  %v1462 = vld [vmem:[#allocation3] sm:$0xff]
  %v1463 = vld [vmem:[#allocation3 + $0x8] sm:$0xff]
  %v1464 = vld [vmem:[#allocation3 + $0x10] sm:$0xff]
  %v1465 = vld [vmem:[#allocation3 + $0x18] sm:$0xff]
  %v1466 = vld [vmem:[#allocation3 + $0x20] sm:$0xff]
  %v1467 = vld [vmem:[#allocation3 + $0x28] sm:$0xff]
  %v1468 = vld [vmem:[#allocation3 + $0x30] sm:$0xff]
  %v1469 = vld [vmem:[#allocation3 + $0x38] sm:$0xff]
  %v1470 = vld [vmem:[#allocation3 + $0x40] sm:$0xff]
  %v1471 = vld [vmem:[#allocation3 + $0x48] sm:$0xff]
  %v1472 = vld [vmem:[#allocation3 + $0x50] sm:$0xff]
  %v1473 = vld [vmem:[#allocation3 + $0x58] sm:$0xff]
  %v1474 = vld [vmem:[#allocation3 + $0x60] sm:$0xff]
  %v1475 = vld [vmem:[#allocation3 + $0x68] sm:$0xff]
  %v1476 = vld [vmem:[#allocation3 + $0x70] sm:$0xff]
  %v1477 = vld [vmem:[#allocation3 + $0x78] sm:$0xff]
  %v1478 = vld [vmem:[#allocation3 + $0x80] sm:$0xff]
  %v1479 = vld [vmem:[#allocation3 + $0x88] sm:$0xff]
  %v1480 = vld [vmem:[#allocation3 + $0x90] sm:$0xff]
  %v1481 = vld [vmem:[#allocation3 + $0x98] sm:$0xff]
  %v1482 = vld [vmem:[#allocation3 + $0xa0] sm:$0xff]
  %v1483 = vld [vmem:[#allocation3 + $0xa8] sm:$0xff]
  %v1484 = vld [vmem:[#allocation3 + $0xb0] sm:$0xff]
  %v1485 = vld [vmem:[#allocation3 + $0xb8] sm:$0xff]
  %v1486 = vld [vmem:[#allocation3 + $0xc0] sm:$0xff]
  %v1487 = vld [vmem:[#allocation3 + $0xc8] sm:$0xff]
  %v1488 = vld [vmem:[#allocation3 + $0xd0] sm:$0xff]
  %v1489 = vld [vmem:[#allocation3 + $0xd8] sm:$0xff]
  %v1490 = vld [vmem:[#allocation3 + $0xe0] sm:$0xff]
  %v1491 = vld [vmem:[#allocation3 + $0xe8] sm:$0xff]
  %v1492 = vld [vmem:[#allocation3 + $0xf0] sm:$0xff]
  %v1493 = vld [vmem:[#allocation3 + $0xf8] sm:$0xff]
  %v1494 = vmul.f32 %v1047, %v1462
  %v1495 = vmul.f32 %v1049, %v1463
  %v1496 = vmul.f32 %v1051, %v1464
  %v1497 = vmul.f32 %v1053, %v1465
  %v1498 = vmul.f32 %v1055, %v1466
  %v1499 = vmul.f32 %v1057, %v1467
  %v1500 = vmul.f32 %v1059, %v1468
  %v1501 = vmul.f32 %v1061, %v1469
  %v1502 = vmul.f32 %v1063, %v1470
  %v1503 = vmul.f32 %v1065, %v1471
  %v1504 = vmul.f32 %v1067, %v1472
  %v1505 = vmul.f32 %v1069, %v1473
  %v1506 = vmul.f32 %v1071, %v1474
  %v1507 = vmul.f32 %v1073, %v1475
  %v1508 = vmul.f32 %v1075, %v1476
  %v1509 = vmul.f32 %v1077, %v1477
  %v1510 = vmul.f32 %v1079, %v1478
  %v1511 = vmul.f32 %v1081, %v1479
  %v1512 = vmul.f32 %v1083, %v1480
  %v1513 = vmul.f32 %v1085, %v1481
  %v1514 = vmul.f32 %v1087, %v1482
  %v1515 = vmul.f32 %v1089, %v1483
  %v1516 = vmul.f32 %v1091, %v1484
  %v1517 = vmul.f32 %v1093, %v1485
  %v1518 = vmul.f32 %v1095, %v1486
  %v1519 = vmul.f32 %v1097, %v1487
  %v1520 = vmul.f32 %v1099, %v1488
  %v1521 = vmul.f32 %v1101, %v1489
  %v1522 = vmul.f32 %v1103, %v1490
  %v1523 = vmul.f32 %v1105, %v1491
  %v1524 = vmul.f32 %v1107, %v1492
  %v1525 = vmul.f32 %v1109, %v1493
  %v1526 = vadd.f32 %v1335, %v1337
  %1527 = vadd.xlane.f32.xlu0 %v1526
  %v1528 = vpop.xlane.xlu0 %1527
  %v1529 = vadd.f32 %v1339, %v1341
  %1530 = vadd.xlane.f32.xlu0 %v1529
  %v1531 = vpop.xlane.xlu0 %1530
  %v1532 = vadd.f32 %v1343, %v1345
  %1533 = vadd.xlane.f32.xlu0 %v1532
  %v1534 = vpop.xlane.xlu0 %1533
  %v1535 = vadd.f32 %v1347, %v1349
  %1536 = vadd.xlane.f32.xlu0 %v1535
  %v1537 = vpop.xlane.xlu0 %1536
  %v1538 = vadd.f32 %v1351, %v1353
  %1539 = vadd.xlane.f32.xlu0 %v1538
  %v1540 = vpop.xlane.xlu0 %1539
  %v1541 = vadd.f32 %v1355, %v1357
  %1542 = vadd.xlane.f32.xlu0 %v1541
  %v1543 = vpop.xlane.xlu0 %1542
  %v1544 = vadd.f32 %v1359, %v1361
  %1545 = vadd.xlane.f32.xlu0 %v1544
  %v1546 = vpop.xlane.xlu0 %1545
  %v1547 = vadd.f32 %v1363, %v1365
  %1548 = vadd.xlane.f32.xlu0 %v1547
  %v1549 = vpop.xlane.xlu0 %1548
  %v1550 = vadd.f32 %v1367, %v1369
  %1551 = vadd.xlane.f32.xlu0 %v1550
  %v1552 = vpop.xlane.xlu0 %1551
  %v1553 = vadd.f32 %v1371, %v1373
  %1554 = vadd.xlane.f32.xlu0 %v1553
  %v1555 = vpop.xlane.xlu0 %1554
  %v1556 = vadd.f32 %v1375, %v1377
  %1557 = vadd.xlane.f32.xlu0 %v1556
  %v1558 = vpop.xlane.xlu0 %1557
  %v1559 = vadd.f32 %v1379, %v1381
  %1560 = vadd.xlane.f32.xlu0 %v1559
  %v1561 = vpop.xlane.xlu0 %1560
  %v1562 = vadd.f32 %v1383, %v1385
  %1563 = vadd.xlane.f32.xlu0 %v1562
  %v1564 = vpop.xlane.xlu0 %1563
  %v1565 = vadd.f32 %v1387, %v1389
  %1566 = vadd.xlane.f32.xlu0 %v1565
  %v1567 = vpop.xlane.xlu0 %1566
  %v1568 = vadd.f32 %v1391, %v1393
  %1569 = vadd.xlane.f32.xlu0 %v1568
  %v1570 = vpop.xlane.xlu0 %1569
  %v1571 = vadd.f32 %v1395, %v1397
  %1572 = vadd.xlane.f32.xlu0 %v1571
  %v1573 = vpop.xlane.xlu0 %1572
  %v1574 = vadd.f32 %v1399, %v1401
  %1575 = vadd.xlane.f32.xlu0 %v1574
  %v1576 = vpop.xlane.xlu0 %1575
  %v1577 = vadd.f32 %v1403, %v1405
  %1578 = vadd.xlane.f32.xlu0 %v1577
  %v1579 = vpop.xlane.xlu0 %1578
  %v1580 = vadd.f32 %v1407, %v1409
  %1581 = vadd.xlane.f32.xlu0 %v1580
  %v1582 = vpop.xlane.xlu0 %1581
  %v1583 = vadd.f32 %v1411, %v1413
  %1584 = vadd.xlane.f32.xlu0 %v1583
  %v1585 = vpop.xlane.xlu0 %1584
  %v1586 = vadd.f32 %v1415, %v1417
  %1587 = vadd.xlane.f32.xlu0 %v1586
  %v1588 = vpop.xlane.xlu0 %1587
  %v1589 = vadd.f32 %v1419, %v1421
  %1590 = vadd.xlane.f32.xlu0 %v1589
  %v1591 = vpop.xlane.xlu0 %1590
  %v1592 = vadd.f32 %v1423, %v1425
  %1593 = vadd.xlane.f32.xlu0 %v1592
  %v1594 = vpop.xlane.xlu0 %1593
  %v1595 = vadd.f32 %v1427, %v1429
  %1596 = vadd.xlane.f32.xlu0 %v1595
  %v1597 = vpop.xlane.xlu0 %1596
  %v1598 = vadd.f32 %v1431, %v1433
  %1599 = vadd.xlane.f32.xlu0 %v1598
  %v1600 = vpop.xlane.xlu0 %1599
  %v1601 = vadd.f32 %v1435, %v1437
  %1602 = vadd.xlane.f32.xlu0 %v1601
  %v1603 = vpop.xlane.xlu0 %1602
  %v1604 = vadd.f32 %v1439, %v1441
  %1605 = vadd.xlane.f32.xlu0 %v1604
  %v1606 = vpop.xlane.xlu0 %1605
  %v1607 = vadd.f32 %v1443, %v1445
  %1608 = vadd.xlane.f32.xlu0 %v1607
  %v1609 = vpop.xlane.xlu0 %1608
  %v1610 = vadd.f32 %v1447, %v1449
  %1611 = vadd.xlane.f32.xlu0 %v1610
  %v1612 = vpop.xlane.xlu0 %1611
  %v1613 = vadd.f32 %v1451, %v1453
  %1614 = vadd.xlane.f32.xlu0 %v1613
  %v1615 = vpop.xlane.xlu0 %1614
  %v1616 = vadd.f32 %v1455, %v1457
  %1617 = vadd.xlane.f32.xlu0 %v1616
  %v1618 = vpop.xlane.xlu0 %1617
  %v1619 = vadd.f32 %v1459, %v1461
  %1620 = vadd.xlane.f32.xlu0 %v1619
  %v1621 = vpop.xlane.xlu0 %1620
  %v1622 = vadd.f32 %v1494, %v1528
  %v1623 = vadd.f32 %v1495, %v1531
  %v1624 = vadd.f32 %v1496, %v1534
  %v1625 = vadd.f32 %v1497, %v1537
  %v1626 = vadd.f32 %v1498, %v1540
  %v1627 = vadd.f32 %v1499, %v1543
  %v1628 = vadd.f32 %v1500, %v1546
  %v1629 = vadd.f32 %v1501, %v1549
  %v1630 = vadd.f32 %v1502, %v1552
  %v1631 = vadd.f32 %v1503, %v1555
  %v1632 = vadd.f32 %v1504, %v1558
  %v1633 = vadd.f32 %v1505, %v1561
  %v1634 = vadd.f32 %v1506, %v1564
  %v1635 = vadd.f32 %v1507, %v1567
  %v1636 = vadd.f32 %v1508, %v1570
  %v1637 = vadd.f32 %v1509, %v1573
  %v1638 = vadd.f32 %v1510, %v1576
  %v1639 = vadd.f32 %v1511, %v1579
  %v1640 = vadd.f32 %v1512, %v1582
  %v1641 = vadd.f32 %v1513, %v1585
  %v1642 = vadd.f32 %v1514, %v1588
  %v1643 = vadd.f32 %v1515, %v1591
  %v1644 = vadd.f32 %v1516, %v1594
  %v1645 = vadd.f32 %v1517, %v1597
  %v1646 = vadd.f32 %v1518, %v1600
  %v1647 = vadd.f32 %v1519, %v1603
  %v1648 = vadd.f32 %v1520, %v1606
  %v1649 = vadd.f32 %v1521, %v1609
  %v1650 = vadd.f32 %v1522, %v1612
  %v1651 = vadd.f32 %v1523, %v1615
  %v1652 = vadd.f32 %v1524, %v1618
  %v1653 = vadd.f32 %v1525, %v1621
  %vm1654 = vcmask 7168
  %1655 = vst.msk [vmem:[#allocation3] sm:$0xff] %vm1654, %v1622
  %1656 = vst.msk [vmem:[#allocation3 + $0x8] sm:$0xff] %vm1654, %v1623
  %1657 = vst.msk [vmem:[#allocation3 + $0x10] sm:$0xff] %vm1654, %v1624
  %1658 = vst.msk [vmem:[#allocation3 + $0x18] sm:$0xff] %vm1654, %v1625
  %1659 = vst.msk [vmem:[#allocation3 + $0x20] sm:$0xff] %vm1654, %v1626
  %1660 = vst.msk [vmem:[#allocation3 + $0x28] sm:$0xff] %vm1654, %v1627
  %1661 = vst.msk [vmem:[#allocation3 + $0x30] sm:$0xff] %vm1654, %v1628
  %1662 = vst.msk [vmem:[#allocation3 + $0x38] sm:$0xff] %vm1654, %v1629
  %1663 = vst.msk [vmem:[#allocation3 + $0x40] sm:$0xff] %vm1654, %v1630
  %1664 = vst.msk [vmem:[#allocation3 + $0x48] sm:$0xff] %vm1654, %v1631
  %1665 = vst.msk [vmem:[#allocation3 + $0x50] sm:$0xff] %vm1654, %v1632
  %1666 = vst.msk [vmem:[#allocation3 + $0x58] sm:$0xff] %vm1654, %v1633
  %1667 = vst.msk [vmem:[#allocation3 + $0x60] sm:$0xff] %vm1654, %v1634
  %1668 = vst.msk [vmem:[#allocation3 + $0x68] sm:$0xff] %vm1654, %v1635
  %1669 = vst.msk [vmem:[#allocation3 + $0x70] sm:$0xff] %vm1654, %v1636
  %1670 = vst.msk [vmem:[#allocation3 + $0x78] sm:$0xff] %vm1654, %v1637
  %1671 = vst.msk [vmem:[#allocation3 + $0x80] sm:$0xff] %vm1654, %v1638
  %1672 = vst.msk [vmem:[#allocation3 + $0x88] sm:$0xff] %vm1654, %v1639
  %1673 = vst.msk [vmem:[#allocation3 + $0x90] sm:$0xff] %vm1654, %v1640
  %1674 = vst.msk [vmem:[#allocation3 + $0x98] sm:$0xff] %vm1654, %v1641
  %1675 = vst.msk [vmem:[#allocation3 + $0xa0] sm:$0xff] %vm1654, %v1642
  %1676 = vst.msk [vmem:[#allocation3 + $0xa8] sm:$0xff] %vm1654, %v1643
  %1677 = vst.msk [vmem:[#allocation3 + $0xb0] sm:$0xff] %vm1654, %v1644
  %1678 = vst.msk [vmem:[#allocation3 + $0xb8] sm:$0xff] %vm1654, %v1645
  %1679 = vst.msk [vmem:[#allocation3 + $0xc0] sm:$0xff] %vm1654, %v1646
  %1680 = vst.msk [vmem:[#allocation3 + $0xc8] sm:$0xff] %vm1654, %v1647
  %1681 = vst.msk [vmem:[#allocation3 + $0xd0] sm:$0xff] %vm1654, %v1648
  %1682 = vst.msk [vmem:[#allocation3 + $0xd8] sm:$0xff] %vm1654, %v1649
  %1683 = vst.msk [vmem:[#allocation3 + $0xe0] sm:$0xff] %vm1654, %v1650
  %1684 = vst.msk [vmem:[#allocation3 + $0xe8] sm:$0xff] %vm1654, %v1651
  %1685 = vst.msk [vmem:[#allocation3 + $0xf0] sm:$0xff] %vm1654, %v1652
  %1686 = vst.msk [vmem:[#allocation3 + $0xf8] sm:$0xff] %vm1654, %v1653
  %v1687 = vld [vmem:[#allocation4] sm:$0xff]
  %v1688 = vld [vmem:[#allocation4 + $0x8] sm:$0xff]
  %v1689 = vld [vmem:[#allocation4 + $0x10] sm:$0xff]
  %v1690 = vld [vmem:[#allocation4 + $0x18] sm:$0xff]
  %v1691 = vld [vmem:[#allocation4 + $0x20] sm:$0xff]
  %v1692 = vld [vmem:[#allocation4 + $0x28] sm:$0xff]
  %v1693 = vld [vmem:[#allocation4 + $0x30] sm:$0xff]
  %v1694 = vld [vmem:[#allocation4 + $0x38] sm:$0xff]
  %v1695 = vld [vmem:[#allocation4 + $0x40] sm:$0xff]
  %v1696 = vld [vmem:[#allocation4 + $0x48] sm:$0xff]
  %v1697 = vld [vmem:[#allocation4 + $0x50] sm:$0xff]
  %v1698 = vld [vmem:[#allocation4 + $0x58] sm:$0xff]
  %v1699 = vld [vmem:[#allocation4 + $0x60] sm:$0xff]
  %v1700 = vld [vmem:[#allocation4 + $0x68] sm:$0xff]
  %v1701 = vld [vmem:[#allocation4 + $0x70] sm:$0xff]
  %v1702 = vld [vmem:[#allocation4 + $0x78] sm:$0xff]
  %v1703 = vld [vmem:[#allocation4 + $0x80] sm:$0xff]
  %v1704 = vld [vmem:[#allocation4 + $0x88] sm:$0xff]
  %v1705 = vld [vmem:[#allocation4 + $0x90] sm:$0xff]
  %v1706 = vld [vmem:[#allocation4 + $0x98] sm:$0xff]
  %v1707 = vld [vmem:[#allocation4 + $0xa0] sm:$0xff]
  %v1708 = vld [vmem:[#allocation4 + $0xa8] sm:$0xff]
  %v1709 = vld [vmem:[#allocation4 + $0xb0] sm:$0xff]
  %v1710 = vld [vmem:[#allocation4 + $0xb8] sm:$0xff]
  %v1711 = vld [vmem:[#allocation4 + $0xc0] sm:$0xff]
  %v1712 = vld [vmem:[#allocation4 + $0xc8] sm:$0xff]
  %v1713 = vld [vmem:[#allocation4 + $0xd0] sm:$0xff]
  %v1714 = vld [vmem:[#allocation4 + $0xd8] sm:$0xff]
  %v1715 = vld [vmem:[#allocation4 + $0xe0] sm:$0xff]
  %v1716 = vld [vmem:[#allocation4 + $0xe8] sm:$0xff]
  %v1717 = vld [vmem:[#allocation4 + $0xf0] sm:$0xff]
  %v1718 = vld [vmem:[#allocation4 + $0xf8] sm:$0xff]
  %1720 = vset.pattern.permute.xlu0 0
  %1721 = vperm.xlu0 %1720, %v1047
  %v1722 = vpop.permute.xlu0 %1721
  %1725 = vset.pattern.permute.xlu0 0
  %1726 = vperm.xlu0 %1725, %v1049
  %v1727 = vpop.permute.xlu0 %1726
  %1730 = vset.pattern.permute.xlu0 0
  %1731 = vperm.xlu0 %1730, %v1051
  %v1732 = vpop.permute.xlu0 %1731
  %1735 = vset.pattern.permute.xlu0 0
  %1736 = vperm.xlu0 %1735, %v1053
  %v1737 = vpop.permute.xlu0 %1736
  %1740 = vset.pattern.permute.xlu0 0
  %1741 = vperm.xlu0 %1740, %v1055
  %v1742 = vpop.permute.xlu0 %1741
  %1745 = vset.pattern.permute.xlu0 0
  %1746 = vperm.xlu0 %1745, %v1057
  %v1747 = vpop.permute.xlu0 %1746
  %1750 = vset.pattern.permute.xlu0 0
  %1751 = vperm.xlu0 %1750, %v1059
  %v1752 = vpop.permute.xlu0 %1751
  %1755 = vset.pattern.permute.xlu0 0
  %1756 = vperm.xlu0 %1755, %v1061
  %v1757 = vpop.permute.xlu0 %1756
  %1760 = vset.pattern.permute.xlu0 0
  %1761 = vperm.xlu0 %1760, %v1063
  %v1762 = vpop.permute.xlu0 %1761
  %1765 = vset.pattern.permute.xlu0 0
  %1766 = vperm.xlu0 %1765, %v1065
  %v1767 = vpop.permute.xlu0 %1766
  %1770 = vset.pattern.permute.xlu0 0
  %1771 = vperm.xlu0 %1770, %v1067
  %v1772 = vpop.permute.xlu0 %1771
  %1775 = vset.pattern.permute.xlu0 0
  %1776 = vperm.xlu0 %1775, %v1069
  %v1777 = vpop.permute.xlu0 %1776
  %1780 = vset.pattern.permute.xlu0 0
  %1781 = vperm.xlu0 %1780, %v1071
  %v1782 = vpop.permute.xlu0 %1781
  %1785 = vset.pattern.permute.xlu0 0
  %1786 = vperm.xlu0 %1785, %v1073
  %v1787 = vpop.permute.xlu0 %1786
  %1790 = vset.pattern.permute.xlu0 0
  %1791 = vperm.xlu0 %1790, %v1075
  %v1792 = vpop.permute.xlu0 %1791
  %1795 = vset.pattern.permute.xlu0 0
  %1796 = vperm.xlu0 %1795, %v1077
  %v1797 = vpop.permute.xlu0 %1796
  %1800 = vset.pattern.permute.xlu0 0
  %1801 = vperm.xlu0 %1800, %v1079
  %v1802 = vpop.permute.xlu0 %1801
  %1805 = vset.pattern.permute.xlu0 0
  %1806 = vperm.xlu0 %1805, %v1081
  %v1807 = vpop.permute.xlu0 %1806
  %1810 = vset.pattern.permute.xlu0 0
  %1811 = vperm.xlu0 %1810, %v1083
  %v1812 = vpop.permute.xlu0 %1811
  %1815 = vset.pattern.permute.xlu0 0
  %1816 = vperm.xlu0 %1815, %v1085
  %v1817 = vpop.permute.xlu0 %1816
  %1820 = vset.pattern.permute.xlu0 0
  %1821 = vperm.xlu0 %1820, %v1087
  %v1822 = vpop.permute.xlu0 %1821
  %1825 = vset.pattern.permute.xlu0 0
  %1826 = vperm.xlu0 %1825, %v1089
  %v1827 = vpop.permute.xlu0 %1826
  %1830 = vset.pattern.permute.xlu0 0
  %1831 = vperm.xlu0 %1830, %v1091
  %v1832 = vpop.permute.xlu0 %1831
  %1835 = vset.pattern.permute.xlu0 0
  %1836 = vperm.xlu0 %1835, %v1093
  %v1837 = vpop.permute.xlu0 %1836
  %1840 = vset.pattern.permute.xlu0 0
  %1841 = vperm.xlu0 %1840, %v1095
  %v1842 = vpop.permute.xlu0 %1841
  %1845 = vset.pattern.permute.xlu0 0
  %1846 = vperm.xlu0 %1845, %v1097
  %v1847 = vpop.permute.xlu0 %1846
  %1850 = vset.pattern.permute.xlu0 0
  %1851 = vperm.xlu0 %1850, %v1099
  %v1852 = vpop.permute.xlu0 %1851
  %1855 = vset.pattern.permute.xlu0 0
  %1856 = vperm.xlu0 %1855, %v1101
  %v1857 = vpop.permute.xlu0 %1856
  %1860 = vset.pattern.permute.xlu0 0
  %1861 = vperm.xlu0 %1860, %v1103
  %v1862 = vpop.permute.xlu0 %1861
  %1865 = vset.pattern.permute.xlu0 0
  %1866 = vperm.xlu0 %1865, %v1105
  %v1867 = vpop.permute.xlu0 %1866
  %1870 = vset.pattern.permute.xlu0 0
  %1871 = vperm.xlu0 %1870, %v1107
  %v1872 = vpop.permute.xlu0 %1871
  %1875 = vset.pattern.permute.xlu0 0
  %1876 = vperm.xlu0 %1875, %v1109
  %v1877 = vpop.permute.xlu0 %1876
  %v1879 = vmul.f32 %v1722, %v1687
  %v1880 = vmul.f32 %v1727, %v1688
  %v1881 = vmul.f32 %v1732, %v1689
  %v1882 = vmul.f32 %v1737, %v1690
  %v1883 = vmul.f32 %v1742, %v1691
  %v1884 = vmul.f32 %v1747, %v1692
  %v1885 = vmul.f32 %v1752, %v1693
  %v1886 = vmul.f32 %v1757, %v1694
  %v1887 = vmul.f32 %v1762, %v1695
  %v1888 = vmul.f32 %v1767, %v1696
  %v1889 = vmul.f32 %v1772, %v1697
  %v1890 = vmul.f32 %v1777, %v1698
  %v1891 = vmul.f32 %v1782, %v1699
  %v1892 = vmul.f32 %v1787, %v1700
  %v1893 = vmul.f32 %v1792, %v1701
  %v1894 = vmul.f32 %v1797, %v1702
  %v1895 = vmul.f32 %v1802, %v1703
  %v1896 = vmul.f32 %v1807, %v1704
  %v1897 = vmul.f32 %v1812, %v1705
  %v1898 = vmul.f32 %v1817, %v1706
  %v1899 = vmul.f32 %v1822, %v1707
  %v1900 = vmul.f32 %v1827, %v1708
  %v1901 = vmul.f32 %v1832, %v1709
  %v1902 = vmul.f32 %v1837, %v1710
  %v1903 = vmul.f32 %v1842, %v1711
  %v1904 = vmul.f32 %v1847, %v1712
  %v1905 = vmul.f32 %v1852, %v1713
  %v1906 = vmul.f32 %v1857, %v1714
  %v1907 = vmul.f32 %v1862, %v1715
  %v1908 = vmul.f32 %v1867, %v1716
  %v1909 = vmul.f32 %v1872, %v1717
  %v1910 = vmul.f32 %v1877, %v1718
  %v1911 = vpack.c.bf16 %v1339, %v1335
  %v1912 = vpack.c.bf16 %v1341, %v1337
  %v1913 = vpack.c.bf16 %v1347, %v1343
  %v1914 = vpack.c.bf16 %v1349, %v1345
  %v1915 = vpack.c.bf16 %v1355, %v1351
  %v1916 = vpack.c.bf16 %v1357, %v1353
  %v1917 = vpack.c.bf16 %v1363, %v1359
  %v1918 = vpack.c.bf16 %v1365, %v1361
  %v1919 = vpack.c.bf16 %v1371, %v1367
  %v1920 = vpack.c.bf16 %v1373, %v1369
  %v1921 = vpack.c.bf16 %v1379, %v1375
  %v1922 = vpack.c.bf16 %v1381, %v1377
  %v1923 = vpack.c.bf16 %v1387, %v1383
  %v1924 = vpack.c.bf16 %v1389, %v1385
  %v1925 = vpack.c.bf16 %v1395, %v1391
  %v1926 = vpack.c.bf16 %v1397, %v1393
  %v1927 = vpack.c.bf16 %v1403, %v1399
  %v1928 = vpack.c.bf16 %v1405, %v1401
  %v1929 = vpack.c.bf16 %v1411, %v1407
  %v1930 = vpack.c.bf16 %v1413, %v1409
  %v1931 = vpack.c.bf16 %v1419, %v1415
  %v1932 = vpack.c.bf16 %v1421, %v1417
  %v1933 = vpack.c.bf16 %v1427, %v1423
  %v1934 = vpack.c.bf16 %v1429, %v1425
  %v1935 = vpack.c.bf16 %v1435, %v1431
  %v1936 = vpack.c.bf16 %v1437, %v1433
  %v1937 = vpack.c.bf16 %v1443, %v1439
  %v1938 = vpack.c.bf16 %v1445, %v1441
  %v1939 = vpack.c.bf16 %v1451, %v1447
  %v1940 = vpack.c.bf16 %v1453, %v1449
  %v1941 = vpack.c.bf16 %v1459, %v1455
  %v1942 = vpack.c.bf16 %v1461, %v1457
  %v1943 = vld [vmem:[%s3] sm:$0xf]
  %v1944 = vld [vmem:[%s3 + $0x4] sm:$0xf]
  %v1945 = vld [vmem:[%s3 + $0x8] sm:$0xf]
  %v1946 = vld [vmem:[%s3 + $0xc] sm:$0xf]
  %v1947 = vld [vmem:[%s3 + $0x10] sm:$0xf]
  %v1948 = vld [vmem:[%s3 + $0x14] sm:$0xf]
  %v1949 = vld [vmem:[%s3 + $0x18] sm:$0xf]
  %v1950 = vld [vmem:[%s3 + $0x1c] sm:$0xf]
  %v1951 = vld [vmem:[%s3 + $0x20] sm:$0xf]
  %v1952 = vld [vmem:[%s3 + $0x24] sm:$0xf]
  %v1953 = vld [vmem:[%s3 + $0x28] sm:$0xf]
  %v1954 = vld [vmem:[%s3 + $0x2c] sm:$0xf]
  %v1955 = vld [vmem:[%s3 + $0x30] sm:$0xf]
  %v1956 = vld [vmem:[%s3 + $0x34] sm:$0xf]
  %v1957 = vld [vmem:[%s3 + $0x38] sm:$0xf]
  %v1958 = vld [vmem:[%s3 + $0x3c] sm:$0xf]
  %v1959 = vld [vmem:[%s3 + $0x40] sm:$0xf]
  %v1960 = vld [vmem:[%s3 + $0x44] sm:$0xf]
  %v1961 = vld [vmem:[%s3 + $0x48] sm:$0xf]
  %v1962 = vld [vmem:[%s3 + $0x4c] sm:$0xf]
  %v1963 = vld [vmem:[%s3 + $0x50] sm:$0xf]
  %v1964 = vld [vmem:[%s3 + $0x54] sm:$0xf]
  %v1965 = vld [vmem:[%s3 + $0x58] sm:$0xf]
  %v1966 = vld [vmem:[%s3 + $0x5c] sm:$0xf]
  %v1967 = vld [vmem:[%s3 + $0x60] sm:$0xf]
  %v1968 = vld [vmem:[%s3 + $0x64] sm:$0xf]
  %v1969 = vld [vmem:[%s3 + $0x68] sm:$0xf]
  %v1970 = vld [vmem:[%s3 + $0x6c] sm:$0xf]
  %v1971 = vld [vmem:[%s3 + $0x70] sm:$0xf]
  %v1972 = vld [vmem:[%s3 + $0x74] sm:$0xf]
  %v1973 = vld [vmem:[%s3 + $0x78] sm:$0xf]
  %v1974 = vld [vmem:[%s3 + $0x7c] sm:$0xf]
  %v2007 = vunpack.c.l.b16 %v1943
  %v2008 = vunpack.c.l.b16 %v1944
  %v2009 = vunpack.c.l.b16 %v1945
  %v2010 = vunpack.c.l.b16 %v1946
  %v2011 = vunpack.c.l.b16 %v1947
  %v2012 = vunpack.c.l.b16 %v1948
  %v2013 = vunpack.c.l.b16 %v1949
  %v2014 = vunpack.c.l.b16 %v1950
  %v2015 = vunpack.c.l.b16 %v1951
  %v2016 = vunpack.c.l.b16 %v1952
  %v2017 = vunpack.c.l.b16 %v1953
  %v2018 = vunpack.c.l.b16 %v1954
  %v2019 = vunpack.c.l.b16 %v1955
  %v2020 = vunpack.c.l.b16 %v1956
  %v2021 = vunpack.c.l.b16 %v1957
  %v2022 = vunpack.c.l.b16 %v1958
  %v2023 = vunpack.c.l.b16 %v1959
  %v2024 = vunpack.c.l.b16 %v1960
  %v2025 = vunpack.c.l.b16 %v1961
  %v2026 = vunpack.c.l.b16 %v1962
  %v2027 = vunpack.c.l.b16 %v1963
  %v2028 = vunpack.c.l.b16 %v1964
  %v2029 = vunpack.c.l.b16 %v1965
  %v2030 = vunpack.c.l.b16 %v1966
  %v2031 = vunpack.c.l.b16 %v1967
  %v2032 = vunpack.c.l.b16 %v1968
  %v2033 = vunpack.c.l.b16 %v1969
  %v2034 = vunpack.c.l.b16 %v1970
  %v2035 = vunpack.c.l.b16 %v1971
  %v2036 = vunpack.c.l.b16 %v1972
  %v2037 = vunpack.c.l.b16 %v1973
  %v2038 = vunpack.c.l.b16 %v1974
  %v2039 = vpack.c.b16 %v2008, %v2007
  %v2040 = vpack.c.b16 %v2010, %v2009
  %v2041 = vpack.c.b16 %v2012, %v2011
  %v2042 = vpack.c.b16 %v2014, %v2013
  %v2043 = vpack.c.b16 %v2016, %v2015
  %v2044 = vpack.c.b16 %v2018, %v2017
  %v2045 = vpack.c.b16 %v2020, %v2019
  %v2046 = vpack.c.b16 %v2022, %v2021
  %v2047 = vpack.c.b16 %v2024, %v2023
  %v2048 = vpack.c.b16 %v2026, %v2025
  %v2049 = vpack.c.b16 %v2028, %v2027
  %v2050 = vpack.c.b16 %v2030, %v2029
  %v2051 = vpack.c.b16 %v2032, %v2031
  %v2052 = vpack.c.b16 %v2034, %v2033
  %v2053 = vpack.c.b16 %v2036, %v2035
  %v2054 = vpack.c.b16 %v2038, %v2037
  %2071 = vmatprep.subr.bf16.mxu0 0
  %2072 = vmatpush1.bf16.msra.mxu0 %v2039
  %2073 = vmatprep.subr.bf16.mxu0 0
  %2074 = vmatpush1.bf16.msra.mxu0 %v2040
  %2075 = vmatprep.subr.bf16.mxu0 0
  %2076 = vmatpush1.bf16.msra.mxu0 %v2041
  %2077 = vmatprep.subr.bf16.mxu0 0
  %2078 = vmatpush1.bf16.msra.mxu0 %v2042
  %2079 = vmatprep.subr.bf16.mxu0 0
  %2080 = vmatpush1.bf16.msra.mxu0 %v2043
  %2081 = vmatprep.subr.bf16.mxu0 0
  %2082 = vmatpush1.bf16.msra.mxu0 %v2044
  %2083 = vmatprep.subr.bf16.mxu0 0
  %2084 = vmatpush1.bf16.msra.mxu0 %v2045
  %2085 = vmatprep.subr.bf16.mxu0 0
  %2086 = vmatpush1.bf16.msra.mxu0 %v2046
  %2087 = vmatprep.subr.bf16.mxu0 0
  %2088 = vmatpush1.bf16.msra.mxu0 %v2047
  %2089 = vmatprep.subr.bf16.mxu0 0
  %2090 = vmatpush1.bf16.msra.mxu0 %v2048
  %2091 = vmatprep.subr.bf16.mxu0 0
  %2092 = vmatpush1.bf16.msra.mxu0 %v2049
  %2093 = vmatprep.subr.bf16.mxu0 0
  %2094 = vmatpush1.bf16.msra.mxu0 %v2050
  %2095 = vmatprep.subr.bf16.mxu0 0
  %2096 = vmatpush1.bf16.msra.mxu0 %v2051
  %2097 = vmatprep.subr.bf16.mxu0 0
  %2098 = vmatpush1.bf16.msra.mxu0 %v2052
  %2099 = vmatprep.subr.bf16.mxu0 0
  %2100 = vmatpush1.bf16.msra.mxu0 %v2053
  %2101 = vmatprep.subr.bf16.mxu0 0
  %2102 = vmatpush1.bf16.msra.mxu0 %v2054
  %2103 = vmatprep.mubr.bf16.mxu0 %v1912
  %2104 = vmatmul.mubr.bf16.gmra.mrb[0].mxu0 %v1911
  %v2105 = vpop.f32.mrb[0].mxu0
  %v2106 = vadd.f32 0.0, %v2105
  %v2107 = vpop.f32.mrb[0].mxu0
  %v2108 = vpop.f32.mrb[0].mxu0
  %v2109 = vadd.f32 0.0, %v2108
  %v2110 = vpop.f32.mrb[0].mxu0
  %2111 = vmatprep.mubr.bf16.mxu0 %v1914
  %2112 = vmatmul.mubr.bf16.gmra.mrb[0].mxu0 %v1913
  %v2113 = vpop.f32.mrb[0].mxu0
  %v2114 = vadd.f32 0.0, %v2113
  %v2115 = vpop.f32.mrb[0].mxu0
  %v2116 = vpop.f32.mrb[0].mxu0
  %v2117 = vadd.f32 0.0, %v2116
  %v2118 = vpop.f32.mrb[0].mxu0
  %2119 = vmatprep.mubr.bf16.mxu0 %v1916
  %2120 = vmatmul.mubr.bf16.gmra.mrb[0].mxu0 %v1915
  %v2121 = vpop.f32.mrb[0].mxu0
  %v2122 = vadd.f32 0.0, %v2121
  %v2123 = vpop.f32.mrb[0].mxu0
  %v2124 = vpop.f32.mrb[0].mxu0
  %v2125 = vadd.f32 0.0, %v2124
  %v2126 = vpop.f32.mrb[0].mxu0
  %2127 = vmatprep.mubr.bf16.mxu0 %v1918
  %2128 = vmatmul.mubr.bf16.gmra.mrb[0].mxu0 %v1917
  %v2129 = vpop.f32.mrb[0].mxu0
  %v2130 = vadd.f32 0.0, %v2129
  %v2131 = vpop.f32.mrb[0].mxu0
  %v2132 = vpop.f32.mrb[0].mxu0
  %v2133 = vadd.f32 0.0, %v2132
  %v2134 = vpop.f32.mrb[0].mxu0
  %2135 = vmatprep.mubr.bf16.mxu0 %v1920
  %2136 = vmatmul.mubr.bf16.gmra.mrb[0].mxu0 %v1919
  %v2137 = vpop.f32.mrb[0].mxu0
  %v2138 = vadd.f32 0.0, %v2137
  %v2139 = vpop.f32.mrb[0].mxu0
  %v2140 = vpop.f32.mrb[0].mxu0
  %v2141 = vadd.f32 0.0, %v2140
  %v2142 = vpop.f32.mrb[0].mxu0
  %2143 = vmatprep.mubr.bf16.mxu0 %v1922
  %2144 = vmatmul.mubr.bf16.gmra.mrb[0].mxu0 %v1921
  %v2145 = vpop.f32.mrb[0].mxu0
  %v2146 = vadd.f32 0.0, %v2145
  %v2147 = vpop.f32.mrb[0].mxu0
  %v2148 = vpop.f32.mrb[0].mxu0
  %v2149 = vadd.f32 0.0, %v2148
  %v2150 = vpop.f32.mrb[0].mxu0
  %2151 = vmatprep.mubr.bf16.mxu0 %v1924
  %2152 = vmatmul.mubr.bf16.gmra.mrb[0].mxu0 %v1923
  %v2153 = vpop.f32.mrb[0].mxu0
  %v2154 = vadd.f32 0.0, %v2153
  %v2155 = vpop.f32.mrb[0].mxu0
  %v2156 = vpop.f32.mrb[0].mxu0
  %v2157 = vadd.f32 0.0, %v2156
  %v2158 = vpop.f32.mrb[0].mxu0
  %2159 = vmatprep.mubr.bf16.mxu0 %v1926
  %2160 = vmatmul.mubr.bf16.gmra.mrb[0].mxu0 %v1925
  %v2161 = vpop.f32.mrb[0].mxu0
  %v2162 = vadd.f32 0.0, %v2161
  %v2163 = vpop.f32.mrb[0].mxu0
  %v2164 = vpop.f32.mrb[0].mxu0
  %v2165 = vadd.f32 0.0, %v2164
  %v2166 = vpop.f32.mrb[0].mxu0
  %2167 = vmatprep.mubr.bf16.mxu0 %v1928
  %2168 = vmatmul.mubr.bf16.gmra.mrb[0].mxu0 %v1927
  %v2169 = vpop.f32.mrb[0].mxu0
  %v2170 = vadd.f32 0.0, %v2169
  %v2171 = vpop.f32.mrb[0].mxu0
  %v2172 = vpop.f32.mrb[0].mxu0
  %v2173 = vadd.f32 0.0, %v2172
  %v2174 = vpop.f32.mrb[0].mxu0
  %2175 = vmatprep.mubr.bf16.mxu0 %v1930
  %2176 = vmatmul.mubr.bf16.gmra.mrb[0].mxu0 %v1929
  %v2177 = vpop.f32.mrb[0].mxu0
  %v2178 = vadd.f32 0.0, %v2177
  %v2179 = vpop.f32.mrb[0].mxu0
  %v2180 = vpop.f32.mrb[0].mxu0
  %v2181 = vadd.f32 0.0, %v2180
  %v2182 = vpop.f32.mrb[0].mxu0
  %2183 = vmatprep.mubr.bf16.mxu0 %v1932
  %2184 = vmatmul.mubr.bf16.gmra.mrb[0].mxu0 %v1931
  %v2185 = vpop.f32.mrb[0].mxu0
  %v2186 = vadd.f32 0.0, %v2185
  %v2187 = vpop.f32.mrb[0].mxu0
  %v2188 = vpop.f32.mrb[0].mxu0
  %v2189 = vadd.f32 0.0, %v2188
  %v2190 = vpop.f32.mrb[0].mxu0
  %2191 = vmatprep.mubr.bf16.mxu0 %v1934
  %2192 = vmatmul.mubr.bf16.gmra.mrb[0].mxu0 %v1933
  %v2193 = vpop.f32.mrb[0].mxu0
  %v2194 = vadd.f32 0.0, %v2193
  %v2195 = vpop.f32.mrb[0].mxu0
  %v2196 = vpop.f32.mrb[0].mxu0
  %v2197 = vadd.f32 0.0, %v2196
  %v2198 = vpop.f32.mrb[0].mxu0
  %2199 = vmatprep.mubr.bf16.mxu0 %v1936
  %2200 = vmatmul.mubr.bf16.gmra.mrb[0].mxu0 %v1935
  %v2201 = vpop.f32.mrb[0].mxu0
  %v2202 = vadd.f32 0.0, %v2201
  %v2203 = vpop.f32.mrb[0].mxu0
  %v2204 = vpop.f32.mrb[0].mxu0
  %v2205 = vadd.f32 0.0, %v2204
  %v2206 = vpop.f32.mrb[0].mxu0
  %2207 = vmatprep.mubr.bf16.mxu0 %v1938
  %2208 = vmatmul.mubr.bf16.gmra.mrb[0].mxu0 %v1937
  %v2209 = vpop.f32.mrb[0].mxu0
  %v2210 = vadd.f32 0.0, %v2209
  %v2211 = vpop.f32.mrb[0].mxu0
  %v2212 = vpop.f32.mrb[0].mxu0
  %v2213 = vadd.f32 0.0, %v2212
  %v2214 = vpop.f32.mrb[0].mxu0
  %2215 = vmatprep.mubr.bf16.mxu0 %v1940
  %2216 = vmatmul.mubr.bf16.gmra.mrb[0].mxu0 %v1939
  %v2217 = vpop.f32.mrb[0].mxu0
  %v2218 = vadd.f32 0.0, %v2217
  %v2219 = vpop.f32.mrb[0].mxu0
  %v2220 = vpop.f32.mrb[0].mxu0
  %v2221 = vadd.f32 0.0, %v2220
  %v2222 = vpop.f32.mrb[0].mxu0
  %2223 = vmatprep.mubr.bf16.mxu0 %v1942
  %2224 = vmatmul.mubr.bf16.gmra.mrb[0].mxu0 %v1941
  %v2225 = vpop.f32.mrb[0].mxu0
  %v2226 = vadd.f32 0.0, %v2225
  %v2227 = vpop.f32.mrb[0].mxu0
  %v2228 = vpop.f32.mrb[0].mxu0
  %v2229 = vadd.f32 0.0, %v2228
  %v2230 = vpop.f32.mrb[0].mxu0
  %2231 = vdwg.mxu0
  %v2232 = vadd.f32 %v1879, %v2106
  %v2233 = vadd.f32 %v1880, %v2109
  %v2234 = vadd.f32 %v1881, %v2114
  %v2235 = vadd.f32 %v1882, %v2117
  %v2236 = vadd.f32 %v1883, %v2122
  %v2237 = vadd.f32 %v1884, %v2125
  %v2238 = vadd.f32 %v1885, %v2130
  %v2239 = vadd.f32 %v1886, %v2133
  %v2240 = vadd.f32 %v1887, %v2138
  %v2241 = vadd.f32 %v1888, %v2141
  %v2242 = vadd.f32 %v1889, %v2146
  %v2243 = vadd.f32 %v1890, %v2149
  %v2244 = vadd.f32 %v1891, %v2154
  %v2245 = vadd.f32 %v1892, %v2157
  %v2246 = vadd.f32 %v1893, %v2162
  %v2247 = vadd.f32 %v1894, %v2165
  %v2248 = vadd.f32 %v1895, %v2170
  %v2249 = vadd.f32 %v1896, %v2173
  %v2250 = vadd.f32 %v1897, %v2178
  %v2251 = vadd.f32 %v1898, %v2181
  %v2252 = vadd.f32 %v1899, %v2186
  %v2253 = vadd.f32 %v1900, %v2189
  %v2254 = vadd.f32 %v1901, %v2194
  %v2255 = vadd.f32 %v1902, %v2197
  %v2256 = vadd.f32 %v1903, %v2202
  %v2257 = vadd.f32 %v1904, %v2205
  %v2258 = vadd.f32 %v1905, %v2210
  %v2259 = vadd.f32 %v1906, %v2213
  %v2260 = vadd.f32 %v1907, %v2218
  %v2261 = vadd.f32 %v1908, %v2221
  %v2262 = vadd.f32 %v1909, %v2226
  %v2263 = vadd.f32 %v1910, %v2229
  %2264 = vst [vmem:[#allocation4] sm:$0xff] %v2232
  %2265 = vst [vmem:[#allocation4 + $0x8] sm:$0xff] %v2233
  %2266 = vst [vmem:[#allocation4 + $0x10] sm:$0xff] %v2234
  %2267 = vst [vmem:[#allocation4 + $0x18] sm:$0xff] %v2235
  %2268 = vst [vmem:[#allocation4 + $0x20] sm:$0xff] %v2236
  %2269 = vst [vmem:[#allocation4 + $0x28] sm:$0xff] %v2237
  %2270 = vst [vmem:[#allocation4 + $0x30] sm:$0xff] %v2238
  %2271 = vst [vmem:[#allocation4 + $0x38] sm:$0xff] %v2239
  %2272 = vst [vmem:[#allocation4 + $0x40] sm:$0xff] %v2240
  %2273 = vst [vmem:[#allocation4 + $0x48] sm:$0xff] %v2241
  %2274 = vst [vmem:[#allocation4 + $0x50] sm:$0xff] %v2242
  %2275 = vst [vmem:[#allocation4 + $0x58] sm:$0xff] %v2243
  %2276 = vst [vmem:[#allocation4 + $0x60] sm:$0xff] %v2244
  %2277 = vst [vmem:[#allocation4 + $0x68] sm:$0xff] %v2245
  %2278 = vst [vmem:[#allocation4 + $0x70] sm:$0xff] %v2246
  %2279 = vst [vmem:[#allocation4 + $0x78] sm:$0xff] %v2247
  %2280 = vst [vmem:[#allocation4 + $0x80] sm:$0xff] %v2248
  %2281 = vst [vmem:[#allocation4 + $0x88] sm:$0xff] %v2249
  %2282 = vst [vmem:[#allocation4 + $0x90] sm:$0xff] %v2250
  %2283 = vst [vmem:[#allocation4 + $0x98] sm:$0xff] %v2251
  %2284 = vst [vmem:[#allocation4 + $0xa0] sm:$0xff] %v2252
  %2285 = vst [vmem:[#allocation4 + $0xa8] sm:$0xff] %v2253
  %2286 = vst [vmem:[#allocation4 + $0xb0] sm:$0xff] %v2254
  %2287 = vst [vmem:[#allocation4 + $0xb8] sm:$0xff] %v2255
  %2288 = vst [vmem:[#allocation4 + $0xc0] sm:$0xff] %v2256
  %2289 = vst [vmem:[#allocation4 + $0xc8] sm:$0xff] %v2257
  %2290 = vst [vmem:[#allocation4 + $0xd0] sm:$0xff] %v2258
  %2291 = vst [vmem:[#allocation4 + $0xd8] sm:$0xff] %v2259
  %2292 = vst [vmem:[#allocation4 + $0xe0] sm:$0xff] %v2260
  %2293 = vst [vmem:[#allocation4 + $0xe8] sm:$0xff] %v2261
  %2294 = vst [vmem:[#allocation4 + $0xf0] sm:$0xff] %v2262
  %2295 = vst [vmem:[#allocation4 + $0xf8] sm:$0xff] %v2263
  %2296 = vst.msk [vmem:[#allocation2] sm:$0xff] %vm1654, %v982
  %2297 = vst.msk [vmem:[#allocation2 + $0x8] sm:$0xff] %vm1654, %v983
  %2298 = vst.msk [vmem:[#allocation2 + $0x10] sm:$0xff] %vm1654, %v984
  %2299 = vst.msk [vmem:[#allocation2 + $0x18] sm:$0xff] %vm1654, %v985
  %2300 = vst.msk [vmem:[#allocation2 + $0x20] sm:$0xff] %vm1654, %v986
  %2301 = vst.msk [vmem:[#allocation2 + $0x28] sm:$0xff] %vm1654, %v987
  %2302 = vst.msk [vmem:[#allocation2 + $0x30] sm:$0xff] %vm1654, %v988
  %2303 = vst.msk [vmem:[#allocation2 + $0x38] sm:$0xff] %vm1654, %v989
  %2304 = vst.msk [vmem:[#allocation2 + $0x40] sm:$0xff] %vm1654, %v990
  %2305 = vst.msk [vmem:[#allocation2 + $0x48] sm:$0xff] %vm1654, %v991
  %2306 = vst.msk [vmem:[#allocation2 + $0x50] sm:$0xff] %vm1654, %v992
  %2307 = vst.msk [vmem:[#allocation2 + $0x58] sm:$0xff] %vm1654, %v993
  %2308 = vst.msk [vmem:[#allocation2 + $0x60] sm:$0xff] %vm1654, %v994
  %2309 = vst.msk [vmem:[#allocation2 + $0x68] sm:$0xff] %vm1654, %v995
  %2310 = vst.msk [vmem:[#allocation2 + $0x70] sm:$0xff] %vm1654, %v996
  %2311 = vst.msk [vmem:[#allocation2 + $0x78] sm:$0xff] %vm1654, %v997
  %2312 = vst.msk [vmem:[#allocation2 + $0x80] sm:$0xff] %vm1654, %v998
  %2313 = vst.msk [vmem:[#allocation2 + $0x88] sm:$0xff] %vm1654, %v999
  %2314 = vst.msk [vmem:[#allocation2 + $0x90] sm:$0xff] %vm1654, %v1000
  %2315 = vst.msk [vmem:[#allocation2 + $0x98] sm:$0xff] %vm1654, %v1001
  %2316 = vst.msk [vmem:[#allocation2 + $0xa0] sm:$0xff] %vm1654, %v1002
  %2317 = vst.msk [vmem:[#allocation2 + $0xa8] sm:$0xff] %vm1654, %v1003
  %2318 = vst.msk [vmem:[#allocation2 + $0xb0] sm:$0xff] %vm1654, %v1004
  %2319 = vst.msk [vmem:[#allocation2 + $0xb8] sm:$0xff] %vm1654, %v1005
  %2320 = vst.msk [vmem:[#allocation2 + $0xc0] sm:$0xff] %vm1654, %v1006
  %2321 = vst.msk [vmem:[#allocation2 + $0xc8] sm:$0xff] %vm1654, %v1007
  %2322 = vst.msk [vmem:[#allocation2 + $0xd0] sm:$0xff] %vm1654, %v1008
  %2323 = vst.msk [vmem:[#allocation2 + $0xd8] sm:$0xff] %vm1654, %v1009
  %2324 = vst.msk [vmem:[#allocation2 + $0xe0] sm:$0xff] %vm1654, %v1010
  %2325 = vst.msk [vmem:[#allocation2 + $0xe8] sm:$0xff] %vm1654, %v1011
  %2326 = vst.msk [vmem:[#allocation2 + $0xf0] sm:$0xff] %vm1654, %v1012
  %2327 = vst.msk [vmem:[#allocation2 + $0xf8] sm:$0xff] %vm1654, %v1013
  // Predicated region
  $region26: #{gnn_encoder_forward.6} parent=0 // pred_check
    %p2328 = pneg %p21
  $region27: #{gnn_encoder_forward.6} parent=0 // pred_check_branch
    %2330 = sbr.rel (%p2328) target = $region29
  $region28: #{gnn_encoder_forward.6} parent=0 // pred_region
    %v2331 = vld [vmem:[#allocation3] sm:$0xff]
    %v2332 = vld [vmem:[#allocation3 + $0x8] sm:$0xff]
    %v2333 = vld [vmem:[#allocation3 + $0x10] sm:$0xff]
    %v2334 = vld [vmem:[#allocation3 + $0x18] sm:$0xff]
    %v2335 = vld [vmem:[#allocation3 + $0x20] sm:$0xff]
    %v2336 = vld [vmem:[#allocation3 + $0x28] sm:$0xff]
    %v2337 = vld [vmem:[#allocation3 + $0x30] sm:$0xff]
    %v2338 = vld [vmem:[#allocation3 + $0x38] sm:$0xff]
    %v2339 = vld [vmem:[#allocation3 + $0x40] sm:$0xff]
    %v2340 = vld [vmem:[#allocation3 + $0x48] sm:$0xff]
    %v2341 = vld [vmem:[#allocation3 + $0x50] sm:$0xff]
    %v2342 = vld [vmem:[#allocation3 + $0x58] sm:$0xff]
    %v2343 = vld [vmem:[#allocation3 + $0x60] sm:$0xff]
    %v2344 = vld [vmem:[#allocation3 + $0x68] sm:$0xff]
    %v2345 = vld [vmem:[#allocation3 + $0x70] sm:$0xff]
    %v2346 = vld [vmem:[#allocation3 + $0x78] sm:$0xff]
    %v2347 = vld [vmem:[#allocation3 + $0x80] sm:$0xff]
    %v2348 = vld [vmem:[#allocation3 + $0x88] sm:$0xff]
    %v2349 = vld [vmem:[#allocation3 + $0x90] sm:$0xff]
    %v2350 = vld [vmem:[#allocation3 + $0x98] sm:$0xff]
    %v2351 = vld [vmem:[#allocation3 + $0xa0] sm:$0xff]
    %v2352 = vld [vmem:[#allocation3 + $0xa8] sm:$0xff]
    %v2353 = vld [vmem:[#allocation3 + $0xb0] sm:$0xff]
    %v2354 = vld [vmem:[#allocation3 + $0xb8] sm:$0xff]
    %v2355 = vld [vmem:[#allocation3 + $0xc0] sm:$0xff]
    %v2356 = vld [vmem:[#allocation3 + $0xc8] sm:$0xff]
    %v2357 = vld [vmem:[#allocation3 + $0xd0] sm:$0xff]
    %v2358 = vld [vmem:[#allocation3 + $0xd8] sm:$0xff]
    %v2359 = vld [vmem:[#allocation3 + $0xe0] sm:$0xff]
    %v2360 = vld [vmem:[#allocation3 + $0xe8] sm:$0xff]
    %v2361 = vld [vmem:[#allocation3 + $0xf0] sm:$0xff]
    %v2362 = vld [vmem:[#allocation3 + $0xf8] sm:$0xff]
    %v2363 = vrcp.pop %v2331
    %v2364 = vrcp.pop %v2332
    %v2365 = vrcp.pop %v2333
    %v2366 = vrcp.pop %v2334
    %v2367 = vrcp.pop %v2335
    %v2368 = vrcp.pop %v2336
    %v2369 = vrcp.pop %v2337
    %v2370 = vrcp.pop %v2338
    %v2371 = vrcp.pop %v2339
    %v2372 = vrcp.pop %v2340
    %v2373 = vrcp.pop %v2341
    %v2374 = vrcp.pop %v2342
    %v2375 = vrcp.pop %v2343
    %v2376 = vrcp.pop %v2344
    %v2377 = vrcp.pop %v2345
    %v2378 = vrcp.pop %v2346
    %v2379 = vrcp.pop %v2347
    %v2380 = vrcp.pop %v2348
    %v2381 = vrcp.pop %v2349
    %v2382 = vrcp.pop %v2350
    %v2383 = vrcp.pop %v2351
    %v2384 = vrcp.pop %v2352
    %v2385 = vrcp.pop %v2353
    %v2386 = vrcp.pop %v2354
    %v2387 = vrcp.pop %v2355
    %v2388 = vrcp.pop %v2356
    %v2389 = vrcp.pop %v2357
    %v2390 = vrcp.pop %v2358
    %v2391 = vrcp.pop %v2359
    %v2392 = vrcp.pop %v2360
    %v2393 = vrcp.pop %v2361
    %v2394 = vrcp.pop %v2362
    %v2395 = vld [vmem:[#allocation4] sm:$0xff]
    %v2396 = vld [vmem:[#allocation4 + $0x8] sm:$0xff]
    %v2397 = vld [vmem:[#allocation4 + $0x10] sm:$0xff]
    %v2398 = vld [vmem:[#allocation4 + $0x18] sm:$0xff]
    %v2399 = vld [vmem:[#allocation4 + $0x20] sm:$0xff]
    %v2400 = vld [vmem:[#allocation4 + $0x28] sm:$0xff]
    %v2401 = vld [vmem:[#allocation4 + $0x30] sm:$0xff]
    %v2402 = vld [vmem:[#allocation4 + $0x38] sm:$0xff]
    %v2403 = vld [vmem:[#allocation4 + $0x40] sm:$0xff]
    %v2404 = vld [vmem:[#allocation4 + $0x48] sm:$0xff]
    %v2405 = vld [vmem:[#allocation4 + $0x50] sm:$0xff]
    %v2406 = vld [vmem:[#allocation4 + $0x58] sm:$0xff]
    %v2407 = vld [vmem:[#allocation4 + $0x60] sm:$0xff]
    %v2408 = vld [vmem:[#allocation4 + $0x68] sm:$0xff]
    %v2409 = vld [vmem:[#allocation4 + $0x70] sm:$0xff]
    %v2410 = vld [vmem:[#allocation4 + $0x78] sm:$0xff]
    %v2411 = vld [vmem:[#allocation4 + $0x80] sm:$0xff]
    %v2412 = vld [vmem:[#allocation4 + $0x88] sm:$0xff]
    %v2413 = vld [vmem:[#allocation4 + $0x90] sm:$0xff]
    %v2414 = vld [vmem:[#allocation4 + $0x98] sm:$0xff]
    %v2415 = vld [vmem:[#allocation4 + $0xa0] sm:$0xff]
    %v2416 = vld [vmem:[#allocation4 + $0xa8] sm:$0xff]
    %v2417 = vld [vmem:[#allocation4 + $0xb0] sm:$0xff]
    %v2418 = vld [vmem:[#allocation4 + $0xb8] sm:$0xff]
    %v2419 = vld [vmem:[#allocation4 + $0xc0] sm:$0xff]
    %v2420 = vld [vmem:[#allocation4 + $0xc8] sm:$0xff]
    %v2421 = vld [vmem:[#allocation4 + $0xd0] sm:$0xff]
    %v2422 = vld [vmem:[#allocation4 + $0xd8] sm:$0xff]
    %v2423 = vld [vmem:[#allocation4 + $0xe0] sm:$0xff]
    %v2424 = vld [vmem:[#allocation4 + $0xe8] sm:$0xff]
    %v2425 = vld [vmem:[#allocation4 + $0xf0] sm:$0xff]
    %v2426 = vld [vmem:[#allocation4 + $0xf8] sm:$0xff]
    %2428 = vset.pattern.permute.xlu0 0
    %2429 = vperm.xlu0 %2428, %v2363
    %v2430 = vpop.permute.xlu0 %2429
    %2433 = vset.pattern.permute.xlu0 0
    %2434 = vperm.xlu0 %2433, %v2364
    %v2435 = vpop.permute.xlu0 %2434
    %2438 = vset.pattern.permute.xlu0 0
    %2439 = vperm.xlu0 %2438, %v2365
    %v2440 = vpop.permute.xlu0 %2439
    %2443 = vset.pattern.permute.xlu0 0
    %2444 = vperm.xlu0 %2443, %v2366
    %v2445 = vpop.permute.xlu0 %2444
    %2448 = vset.pattern.permute.xlu0 0
    %2449 = vperm.xlu0 %2448, %v2367
    %v2450 = vpop.permute.xlu0 %2449
    %2453 = vset.pattern.permute.xlu0 0
    %2454 = vperm.xlu0 %2453, %v2368
    %v2455 = vpop.permute.xlu0 %2454
    %2458 = vset.pattern.permute.xlu0 0
    %2459 = vperm.xlu0 %2458, %v2369
    %v2460 = vpop.permute.xlu0 %2459
    %2463 = vset.pattern.permute.xlu0 0
    %2464 = vperm.xlu0 %2463, %v2370
    %v2465 = vpop.permute.xlu0 %2464
    %2468 = vset.pattern.permute.xlu0 0
    %2469 = vperm.xlu0 %2468, %v2371
    %v2470 = vpop.permute.xlu0 %2469
    %2473 = vset.pattern.permute.xlu0 0
    %2474 = vperm.xlu0 %2473, %v2372
    %v2475 = vpop.permute.xlu0 %2474
    %2478 = vset.pattern.permute.xlu0 0
    %2479 = vperm.xlu0 %2478, %v2373
    %v2480 = vpop.permute.xlu0 %2479
    %2483 = vset.pattern.permute.xlu0 0
    %2484 = vperm.xlu0 %2483, %v2374
    %v2485 = vpop.permute.xlu0 %2484
    %2488 = vset.pattern.permute.xlu0 0
    %2489 = vperm.xlu0 %2488, %v2375
    %v2490 = vpop.permute.xlu0 %2489
    %2493 = vset.pattern.permute.xlu0 0
    %2494 = vperm.xlu0 %2493, %v2376
    %v2495 = vpop.permute.xlu0 %2494
    %2498 = vset.pattern.permute.xlu0 0
    %2499 = vperm.xlu0 %2498, %v2377
    %v2500 = vpop.permute.xlu0 %2499
    %2503 = vset.pattern.permute.xlu0 0
    %2504 = vperm.xlu0 %2503, %v2378
    %v2505 = vpop.permute.xlu0 %2504
    %2508 = vset.pattern.permute.xlu0 0
    %2509 = vperm.xlu0 %2508, %v2379
    %v2510 = vpop.permute.xlu0 %2509
    %2513 = vset.pattern.permute.xlu0 0
    %2514 = vperm.xlu0 %2513, %v2380
    %v2515 = vpop.permute.xlu0 %2514
    %2518 = vset.pattern.permute.xlu0 0
    %2519 = vperm.xlu0 %2518, %v2381
    %v2520 = vpop.permute.xlu0 %2519
    %2523 = vset.pattern.permute.xlu0 0
    %2524 = vperm.xlu0 %2523, %v2382
    %v2525 = vpop.permute.xlu0 %2524
    %2528 = vset.pattern.permute.xlu0 0
    %2529 = vperm.xlu0 %2528, %v2383
    %v2530 = vpop.permute.xlu0 %2529
    %2533 = vset.pattern.permute.xlu0 0
    %2534 = vperm.xlu0 %2533, %v2384
    %v2535 = vpop.permute.xlu0 %2534
    %2538 = vset.pattern.permute.xlu0 0
    %2539 = vperm.xlu0 %2538, %v2385
    %v2540 = vpop.permute.xlu0 %2539
    %2543 = vset.pattern.permute.xlu0 0
    %2544 = vperm.xlu0 %2543, %v2386
    %v2545 = vpop.permute.xlu0 %2544
    %2548 = vset.pattern.permute.xlu0 0
    %2549 = vperm.xlu0 %2548, %v2387
    %v2550 = vpop.permute.xlu0 %2549
    %2553 = vset.pattern.permute.xlu0 0
    %2554 = vperm.xlu0 %2553, %v2388
    %v2555 = vpop.permute.xlu0 %2554
    %2558 = vset.pattern.permute.xlu0 0
    %2559 = vperm.xlu0 %2558, %v2389
    %v2560 = vpop.permute.xlu0 %2559
    %2563 = vset.pattern.permute.xlu0 0
    %2564 = vperm.xlu0 %2563, %v2390
    %v2565 = vpop.permute.xlu0 %2564
    %2568 = vset.pattern.permute.xlu0 0
    %2569 = vperm.xlu0 %2568, %v2391
    %v2570 = vpop.permute.xlu0 %2569
    %2573 = vset.pattern.permute.xlu0 0
    %2574 = vperm.xlu0 %2573, %v2392
    %v2575 = vpop.permute.xlu0 %2574
    %2578 = vset.pattern.permute.xlu0 0
    %2579 = vperm.xlu0 %2578, %v2393
    %v2580 = vpop.permute.xlu0 %2579
    %2583 = vset.pattern.permute.xlu0 0
    %2584 = vperm.xlu0 %2583, %v2394
    %v2585 = vpop.permute.xlu0 %2584
    %v2587 = vmul.f32 %v2395, %v2430
    %v2588 = vmul.f32 %v2396, %v2435
    %v2589 = vmul.f32 %v2397, %v2440
    %v2590 = vmul.f32 %v2398, %v2445
    %v2591 = vmul.f32 %v2399, %v2450
    %v2592 = vmul.f32 %v2400, %v2455
    %v2593 = vmul.f32 %v2401, %v2460
    %v2594 = vmul.f32 %v2402, %v2465
    %v2595 = vmul.f32 %v2403, %v2470
    %v2596 = vmul.f32 %v2404, %v2475
    %v2597 = vmul.f32 %v2405, %v2480
    %v2598 = vmul.f32 %v2406, %v2485
    %v2599 = vmul.f32 %v2407, %v2490
    %v2600 = vmul.f32 %v2408, %v2495
    %v2601 = vmul.f32 %v2409, %v2500
    %v2602 = vmul.f32 %v2410, %v2505
    %v2603 = vmul.f32 %v2411, %v2510
    %v2604 = vmul.f32 %v2412, %v2515
    %v2605 = vmul.f32 %v2413, %v2520
    %v2606 = vmul.f32 %v2414, %v2525
    %v2607 = vmul.f32 %v2415, %v2530
    %v2608 = vmul.f32 %v2416, %v2535
    %v2609 = vmul.f32 %v2417, %v2540
    %v2610 = vmul.f32 %v2418, %v2545
    %v2611 = vmul.f32 %v2419, %v2550
    %v2612 = vmul.f32 %v2420, %v2555
    %v2613 = vmul.f32 %v2421, %v2560
    %v2614 = vmul.f32 %v2422, %v2565
    %v2615 = vmul.f32 %v2423, %v2570
    %v2616 = vmul.f32 %v2424, %v2575
    %v2617 = vmul.f32 %v2425, %v2580
    %v2618 = vmul.f32 %v2426, %v2585
    %v2619 = vld [vmem:[%s4] sm:$0x1]
    %v2621 = vlaneseq
    %v2622 = vshrl.u32 %v2621, 7
    %v2623 = vsub.s32 0, %v2622
    %v2624 = vrot.slane %v2619, %v2623
    %v2626 = vadd.f32 %v2587, %v2624
    %v2627 = vadd.f32 %v2588, %v2624
    %v2628 = vadd.f32 %v2589, %v2624
    %v2629 = vadd.f32 %v2590, %v2624
    %v2630 = vadd.f32 %v2591, %v2624
    %v2631 = vadd.f32 %v2592, %v2624
    %v2632 = vadd.f32 %v2593, %v2624
    %v2633 = vadd.f32 %v2594, %v2624
    %v2634 = vadd.f32 %v2595, %v2624
    %v2635 = vadd.f32 %v2596, %v2624
    %v2636 = vadd.f32 %v2597, %v2624
    %v2637 = vadd.f32 %v2598, %v2624
    %v2638 = vadd.f32 %v2599, %v2624
    %v2639 = vadd.f32 %v2600, %v2624
    %v2640 = vadd.f32 %v2601, %v2624
    %v2641 = vadd.f32 %v2602, %v2624
    %v2642 = vadd.f32 %v2603, %v2624
    %v2643 = vadd.f32 %v2604, %v2624
    %v2644 = vadd.f32 %v2605, %v2624
    %v2645 = vadd.f32 %v2606, %v2624
    %v2646 = vadd.f32 %v2607, %v2624
    %v2647 = vadd.f32 %v2608, %v2624
    %v2648 = vadd.f32 %v2609, %v2624
    %v2649 = vadd.f32 %v2610, %v2624
    %v2650 = vadd.f32 %v2611, %v2624
    %v2651 = vadd.f32 %v2612, %v2624
    %v2652 = vadd.f32 %v2613, %v2624
    %v2653 = vadd.f32 %v2614, %v2624
    %v2654 = vadd.f32 %v2615, %v2624
    %v2655 = vadd.f32 %v2616, %v2624
    %v2656 = vadd.f32 %v2617, %v2624
    %v2657 = vadd.f32 %v2618, %v2624
    %v2658 = vmax.f32 %v2626, 0.0
    %v2659 = vmax.f32 %v2627, 0.0
    %v2660 = vmax.f32 %v2628, 0.0
    %v2661 = vmax.f32 %v2629, 0.0
    %v2662 = vmax.f32 %v2630, 0.0
    %v2663 = vmax.f32 %v2631, 0.0
    %v2664 = vmax.f32 %v2632, 0.0
    %v2665 = vmax.f32 %v2633, 0.0
    %v2666 = vmax.f32 %v2634, 0.0
    %v2667 = vmax.f32 %v2635, 0.0
    %v2668 = vmax.f32 %v2636, 0.0
    %v2669 = vmax.f32 %v2637, 0.0
    %v2670 = vmax.f32 %v2638, 0.0
    %v2671 = vmax.f32 %v2639, 0.0
    %v2672 = vmax.f32 %v2640, 0.0
    %v2673 = vmax.f32 %v2641, 0.0
    %v2674 = vmax.f32 %v2642, 0.0
    %v2675 = vmax.f32 %v2643, 0.0
    %v2676 = vmax.f32 %v2644, 0.0
    %v2677 = vmax.f32 %v2645, 0.0
    %v2678 = vmax.f32 %v2646, 0.0
    %v2679 = vmax.f32 %v2647, 0.0
    %v2680 = vmax.f32 %v2648, 0.0
    %v2681 = vmax.f32 %v2649, 0.0
    %v2682 = vmax.f32 %v2650, 0.0
    %v2683 = vmax.f32 %v2651, 0.0
    %v2684 = vmax.f32 %v2652, 0.0
    %v2685 = vmax.f32 %v2653, 0.0
    %v2686 = vmax.f32 %v2654, 0.0
    %v2687 = vmax.f32 %v2655, 0.0
    %v2688 = vmax.f32 %v2656, 0.0
    %v2689 = vmax.f32 %v2657, 0.0
    %2690 = vst [vmem:[%s5] sm:$0xff] %v2658
    %2691 = vst [vmem:[%s5 + $0x8] sm:$0xff] %v2659
    %2692 = vst [vmem:[%s5 + $0x10] sm:$0xff] %v2660
    %2693 = vst [vmem:[%s5 + $0x18] sm:$0xff] %v2661
    %2694 = vst [vmem:[%s5 + $0x20] sm:$0xff] %v2662
    %2695 = vst [vmem:[%s5 + $0x28] sm:$0xff] %v2663
    %2696 = vst [vmem:[%s5 + $0x30] sm:$0xff] %v2664
    %2697 = vst [vmem:[%s5 + $0x38] sm:$0xff] %v2665
    %2698 = vst [vmem:[%s5 + $0x40] sm:$0xff] %v2666
    %2699 = vst [vmem:[%s5 + $0x48] sm:$0xff] %v2667
    %2700 = vst [vmem:[%s5 + $0x50] sm:$0xff] %v2668
    %2701 = vst [vmem:[%s5 + $0x58] sm:$0xff] %v2669
    %2702 = vst [vmem:[%s5 + $0x60] sm:$0xff] %v2670
    %2703 = vst [vmem:[%s5 + $0x68] sm:$0xff] %v2671
    %2704 = vst [vmem:[%s5 + $0x70] sm:$0xff] %v2672
    %2705 = vst [vmem:[%s5 + $0x78] sm:$0xff] %v2673
    %2706 = vst [vmem:[%s5 + $0x80] sm:$0xff] %v2674
    %2707 = vst [vmem:[%s5 + $0x88] sm:$0xff] %v2675
    %2708 = vst [vmem:[%s5 + $0x90] sm:$0xff] %v2676
    %2709 = vst [vmem:[%s5 + $0x98] sm:$0xff] %v2677
    %2710 = vst [vmem:[%s5 + $0xa0] sm:$0xff] %v2678
    %2711 = vst [vmem:[%s5 + $0xa8] sm:$0xff] %v2679
    %2712 = vst [vmem:[%s5 + $0xb0] sm:$0xff] %v2680
    %2713 = vst [vmem:[%s5 + $0xb8] sm:$0xff] %v2681
    %2714 = vst [vmem:[%s5 + $0xc0] sm:$0xff] %v2682
    %2715 = vst [vmem:[%s5 + $0xc8] sm:$0xff] %v2683
    %2716 = vst [vmem:[%s5 + $0xd0] sm:$0xff] %v2684
    %2717 = vst [vmem:[%s5 + $0xd8] sm:$0xff] %v2685
    %2718 = vst [vmem:[%s5 + $0xe0] sm:$0xff] %v2686
    %2719 = vst [vmem:[%s5 + $0xe8] sm:$0xff] %v2687
    %2720 = vst [vmem:[%s5 + $0xf0] sm:$0xff] %v2688
    %2721 = vst [vmem:[%s5 + $0xf8] sm:$0xff] %v2689
  $region29: #{gnn_encoder_forward.6} parent=0 // pred_fallthru
    _
  // Predicated region
  $region30: #{gnn_encoder_forward.6} parent=0 // pred_check
    _
  $region31: #{gnn_encoder_forward.6} parent=0 // pred_check_branch
    %2723 = sbr.rel (0) target = $region33
  $region32: #{gnn_encoder_forward.6} parent=0 // pred_region
    _
  $region33: #{gnn_encoder_forward.6} parent=0 // pred_fallthru
    _
  // Predicated region
  $region34: #{gnn_encoder_forward.6} parent=0 // pred_check
    _
  $region35: #{gnn_encoder_forward.6} parent=0 // pred_check_branch
    %2725 = sbr.rel (0) target = $region37
  $region36: #{gnn_encoder_forward.6} parent=0 // pred_region
    _
  $region37: #{gnn_encoder_forward.6} parent=0 // pred_fallthru
    _

</llo_original>
